<compile_context>
chip_gen: v5e
topology: v5e:2x2
jax: 0.10.0
libtpu: 0.0.40
codegen_flags: <defaults>
</compile_context>

<pallas_src>
import jax
import jax.numpy as jnp
from jax.experimental import pallas as pl
from jax.experimental.pallas import tpu as pltpu


def conba_kernel(x_ref, prev_ref,       # [TB, D] bf16 streamed tiles
                 wAB_ref,               # [2D, D] bf16 (rows 0:D -> A^T, D:2D -> B^T)
                 wsel_ref,              # [D, D]  bf16 (selective_fc W^T)
                 wout_ref,              # [D, D]  bf16 (= C^T @ W2^T, fused on host)
                 vecs_ref,              # [4, D]  f32  (bsel, control_w, feedback_w, b2)
                 out_ref, state_ref):   # [TB, D] f32 outputs
    d = wAB_ref.shape[1]

    x_bf = x_ref[...]                   # bf16 [TB, D]
    prev_bf = prev_ref[...]             # bf16 [TB, D]
    x = x_bf.astype(jnp.float32)        # f32 for the element-wise path

    # state = A(prev) + B(x): two MXU launches on static slices of the packed
    # weight (no [TB, 2D] concat buffer); f32 accumulation.
    state = (jnp.dot(prev_bf, wAB_ref[:d, :], preferred_element_type=jnp.float32)
             + jnp.dot(x_bf, wAB_ref[d:, :], preferred_element_type=jnp.float32))

    vecs = vecs_ref[...]                # f32 [4, D]
    bsel = vecs[0:1, :]
    control_w = vecs[1:2, :]
    feedback_w = vecs[2:3, :]
    b2 = vecs[3:4, :]

    # selective_output = SiLU(selective_fc(x)) * x
    sel = jnp.dot(x_bf, wsel_ref[...], preferred_element_type=jnp.float32) + bsel
    sel = sel * jax.nn.sigmoid(sel)     # SiLU / swish
    selective_output = sel * x

    # adjusted = selective_output * control_weight + state * feedback_weight
    adjusted = selective_output * control_w + state * feedback_w

    # output = fc2(C(adjusted)) == adjusted @ (C^T @ W2^T) + b2  (fused weight)
    out = jnp.dot(adjusted.astype(jnp.bfloat16), wout_ref[...],
                  preferred_element_type=jnp.float32) + b2

    out_ref[...] = out.astype(out_ref.dtype)
    state_ref[...] = state.astype(state_ref.dtype)


def _build_call(Bp, D, tb, n_tiles, single_buffer_weights):
    """Construct the pallas_call for padded batch Bp with tile tb."""
    row_in = pl.BlockSpec((tb, D), lambda i: (i, 0))      # streamed bf16 tiles
    row_out = pl.BlockSpec((tb, D), lambda i: (i, 0))     # streamed f32 tiles

    w_kwargs = {"pipeline_mode": pl.Buffered(1)} if single_buffer_weights else {}

    def resident(shape, **kw):
        return pl.BlockSpec(shape, lambda i: (0,) * len(shape), **kw)

    in_specs = [
        row_in,                                   # x (bf16)
        row_in,                                   # previous_state (bf16)
        resident((2 * D, D), **w_kwargs),         # packed [A^T ; B^T] (bf16)
        resident((D, D), **w_kwargs),             # selective_fc W^T   (bf16)
        resident((D, D), **w_kwargs),             # fused C^T @ W2^T   (bf16)
        resident((4, D)),                         # packed f32 vectors
    ]
    out_specs = (row_out, row_out)
    out_shape = (jax.ShapeDtypeStruct((Bp, D), jnp.float32),
                 jax.ShapeDtypeStruct((Bp, D), jnp.float32))

    # VMEM budget: single-buffered bf16 weights + double-buffered activation
    # tiles, with headroom; raised only when the footprint actually needs it.
    n_w_buf = 1 if single_buffer_weights else 2
    weight_bytes = (2 * D * D + D * D + D * D) * 2 * n_w_buf
    vec_bytes = 4 * D * 4 * 2
    act_in_bytes = 2 * (tb * D * 2) * 2          # x, prev (bf16) double-buffered
    act_out_bytes = 2 * (tb * D * 4) * 2         # out, state (f32) double-buffered
    footprint = weight_bytes + vec_bytes + act_in_bytes + act_out_bytes
    vmem_limit = int(min(120 * 1024 * 1024,
                         max(16 * 1024 * 1024, int(footprint * 1.5) + (4 << 20))))

    # Megacore: only split the batch across cores when it is big enough to
    # amortize a second copy of the resident-weight DMA (v7x has 2 TCs).
    dim_sem = ("parallel",) if (n_tiles > 1 and Bp >= 512) else ("arbitrary",)

    return pl.pallas_call(
        conba_kernel,
        grid=(n_tiles,),
        in_specs=in_specs,
        out_specs=out_specs,
        out_shape=out_shape,
        compiler_params=pltpu.CompilerParams(
            dimension_semantics=dim_sem,
            vmem_limit_bytes=vmem_limit),
    )


def conba_forward(x, prev_state, params, *, tb=None):
    """x, prev_state: [B, D] f32.  params: dict from init_params."""
    B, D = x.shape
    if prev_state is None:
        prev_state = jnp.zeros_like(x)
    if tb is None:
        tb = min(B, 256)                 # 256-row tiles fill the v6e/v7x MXU
    tb = min(tb, B)
    assert tb == B or tb % 8 == 0, "batch tile must be 8-aligned or the full batch"

    n_tiles = pl.cdiv(B, tb)
    Bp = n_tiles * tb

    # Stream activations as bf16 (halves HBM traffic for the per-step tensors).
    x_bf = x.astype(jnp.bfloat16)
    prev_bf = prev_state.astype(jnp.bfloat16)
    if Bp != B:                          # ragged batch -> pad, slice back below
        pad = Bp - B
        x_bf = jnp.pad(x_bf, ((0, pad), (0, 0)))
        prev_bf = jnp.pad(prev_bf, ((0, pad), (0, 0)))

    args = (x_bf, prev_bf,
            params["wAB_T"], params["wsel_T"], params["w_out_T"], params["vecs"])

    try:
        out, state = _build_call(Bp, D, tb, n_tiles, True)(*args)
    except Exception:
        # Fallback if this JAX build rejects single-buffered (Buffered(1)) specs.
        out, state = _build_call(Bp, D, tb, n_tiles, False)(*args)

    if Bp != B:
        out = out[:B]
        state = state[:B]
    return out, state


def init_params(key, D):
    """Deterministic synthetic parameters with the module's shapes.

    Returns both the raw f32 (unfused) weights used by the plain-JAX reference
    and the fused / packed bf16 weights consumed by the kernel.
    """
    ks = jax.random.split(key, 8)
    s = 0.05
    # torch Linear weight is [out, in]; we store the transpose [in, out].
    wA_T = (jax.random.normal(ks[0], (D, D), jnp.float32) * s).T
    wB_T = (jax.random.normal(ks[1], (D, D), jnp.float32) * s).T
    wsel_T = (jax.random.normal(ks[2], (D, D), jnp.float32) * s).T
    bsel = (jax.random.normal(ks[3], (D,), jnp.float32) * s).reshape(1, D)
    wC_T = (jax.random.normal(ks[4], (D, D), jnp.float32) * s).T
    w2_T = (jax.random.normal(ks[5], (D, D), jnp.float32) * s).T
    b2 = (jax.random.normal(ks[6], (D,), jnp.float32) * s).reshape(1, D)
    control_w = jnp.ones((1, D), jnp.float32)     # nn.Parameter(torch.ones(D))
    feedback_w = jnp.ones((1, D), jnp.float32)    # nn.Parameter(torch.ones(D))

    # Host-side packing / fusion for the kernel.
    wAB_T = jnp.concatenate([wA_T, wB_T], axis=0).astype(jnp.bfloat16)  # [2D, D]
    w_out_T = (wC_T @ w2_T).astype(jnp.bfloat16)                        # [D, D]
    vecs = jnp.concatenate([bsel, control_w, feedback_w, b2], axis=0)   # [4, D] f32

    return {
        # kernel operands
        "wAB_T": wAB_T,
        "wsel_T": wsel_T.astype(jnp.bfloat16),
        "w_out_T": w_out_T,
        "vecs": vecs,
        # raw f32 weights for the reference
        "wA_T": wA_T, "wB_T": wB_T, "wsel_T_f32": wsel_T,
        "bsel": bsel, "control_w": control_w, "feedback_w": feedback_w,
        "wC_T": wC_T, "w2_T": w2_T, "b2": b2,
    }


def conba_reference(x, prev, p):
    """Plain-JAX (f32, unfused) reference mirroring the PyTorch forward."""
    state = prev @ p["wA_T"] + x @ p["wB_T"]
    sel = x @ p["wsel_T_f32"] + p["bsel"]
    sel = sel * jax.nn.sigmoid(sel)
    selective_output = sel * x
    adjusted = selective_output * p["control_w"] + state * p["feedback_w"]
    out = adjusted @ p["wC_T"]
    out = out @ p["w2_T"] + p["b2"]
    return out, state


if __name__ == "__main__":
    key = jax.random.PRNGKey(0)
    k_x, k_s, k_p = jax.random.split(key, 3)

    B, D = 64, 256          # small, lane/sublane-aligned shapes
    x = jax.random.normal(k_x, (B, D), jnp.float32)
    prev_state = jax.random.normal(k_s, (B, D), jnp.float32)

    params = init_params(k_p, D)

    # f32 unfused reference.
    ref_out, ref_state = conba_reference(x, prev_state, params)

    # Whole batch in a single grid step at this size (tb defaults to B=64).
    out, state = conba_forward(x, prev_state, params)
    out, state = jax.block_until_ready((out, state))

    # bf16 MXU operands / activation I/O + fused C@W2 change rounding order vs.
    # the f32 reference -> loosened tolerance.
    assert jnp.allclose(out, ref_out, atol=3e-2, rtol=3e-2)
    assert jnp.allclose(state, ref_state, atol=3e-2, rtol=3e-2)

    # Also exercise the previous_state=None path (zeros), as in the module.
    out0, state0 = conba_forward(x, None, params)
    out0, state0 = jax.block_until_ready((out0, state0))
    ref_out0, ref_state0 = conba_reference(x, jnp.zeros_like(x), params)
    assert jnp.allclose(out0, ref_out0, atol=3e-2, rtol=3e-2)
    assert jnp.allclose(state0, ref_state0, atol=3e-2, rtol=3e-2)

    print("KERNEL_OK")
</pallas_src>

<mosaic_0001>
module attributes {stable_mosaic.version = 11 : i64} {
  func.func @conba_kernel(%arg0: i32, %arg1: memref<64x256xbf16, #tpu.memory_space<vmem>>, %arg2: memref<64x256xbf16, #tpu.memory_space<vmem>>, %arg3: memref<512x256xbf16, #tpu.memory_space<vmem>>, %arg4: memref<256x256xbf16, #tpu.memory_space<vmem>>, %arg5: memref<256x256xbf16, #tpu.memory_space<vmem>>, %arg6: memref<4x256xf32, #tpu.memory_space<vmem>>, %arg7: memref<64x256xf32, #tpu.memory_space<vmem>>, %arg8: memref<64x256xf32, #tpu.memory_space<vmem>>) attributes {dimension_semantics = [#tpu.dimension_semantics<arbitrary>], iteration_bounds = array<i64: 1>, scalar_prefetch = 0 : i64, scratch_operands = 0 : i64, tpu.core_type = #tpu.core_type<tc>, window_params = [{transform_indices = @transform_0, window_bounds = array<i64: 64, 256>}, {transform_indices = @transform_1, window_bounds = array<i64: 64, 256>}, {pipeline_mode = #tpu.pipeline_mode<synchronous>, transform_indices = @transform_2, window_bounds = array<i64: 512, 256>}, {pipeline_mode = #tpu.pipeline_mode<synchronous>, transform_indices = @transform_3, window_bounds = array<i64: 256, 256>}, {pipeline_mode = #tpu.pipeline_mode<synchronous>, transform_indices = @transform_4, window_bounds = array<i64: 256, 256>}, {pipeline_mode = #tpu.pipeline_mode<synchronous>, transform_indices = @transform_5, window_bounds = array<i64: 4, 256>}, {transform_indices = @transform_6, window_bounds = array<i64: 64, 256>}, {transform_indices = @transform_7, window_bounds = array<i64: 64, 256>}]} {
    %c0 = arith.constant 0 : index
    %c0_0 = arith.constant 0 : index
    %0 = vector.load %arg1[%c0, %c0_0] : memref<64x256xbf16, #tpu.memory_space<vmem>>, vector<64x256xbf16>
    %c0_1 = arith.constant 0 : index
    %c0_2 = arith.constant 0 : index
    %1 = vector.load %arg2[%c0_1, %c0_2] : memref<64x256xbf16, #tpu.memory_space<vmem>>, vector<64x256xbf16>
    %2 = arith.extf %0 : vector<64x256xbf16> to vector<64x256xf32>
    %c0_3 = arith.constant 0 : index
    %c0_4 = arith.constant 0 : index
    %3 = vector.load %arg3[%c0_3, %c0_4] : memref<512x256xbf16, #tpu.memory_space<vmem>>, vector<256x256xbf16>
    %cst = arith.constant dense<0.000000e+00> : vector<64x256xf32>
    %4 = tpu.matmul %1, %3, %cst {dimension_numbers = #tpu.dot_dimension_numbers<[1], [0], [0], [1], [0, 0, 1, 1], [], []>} : vector<64x256xbf16>, vector<256x256xbf16>, vector<64x256xf32> -> vector<64x256xf32>
    %c256 = arith.constant 256 : index
    %c0_5 = arith.constant 0 : index
    %5 = vector.load %arg3[%c256, %c0_5] : memref<512x256xbf16, #tpu.memory_space<vmem>>, vector<256x256xbf16>
    %cst_6 = arith.constant dense<0.000000e+00> : vector<64x256xf32>
    %6 = tpu.matmul %0, %5, %cst_6 {dimension_numbers = #tpu.dot_dimension_numbers<[1], [0], [0], [1], [0, 0, 1, 1], [], []>} : vector<64x256xbf16>, vector<256x256xbf16>, vector<64x256xf32> -> vector<64x256xf32>
    %7 = arith.addf %4, %6 : vector<64x256xf32>
    %c0_7 = arith.constant 0 : index
    %c0_8 = arith.constant 0 : index
    %8 = vector.load %arg6[%c0_7, %c0_8] : memref<4x256xf32, #tpu.memory_space<vmem>>, vector<4x256xf32>
    %9 = vector.extract_strided_slice %8 {offsets = [0, 0], sizes = [1, 256], strides = [1, 1]} : vector<4x256xf32> to vector<1x256xf32>
    %10 = vector.extract_strided_slice %8 {offsets = [1, 0], sizes = [1, 256], strides = [1, 1]} : vector<4x256xf32> to vector<1x256xf32>
    %11 = vector.extract_strided_slice %8 {offsets = [2, 0], sizes = [1, 256], strides = [1, 1]} : vector<4x256xf32> to vector<1x256xf32>
    %12 = vector.extract_strided_slice %8 {offsets = [3, 0], sizes = [1, 256], strides = [1, 1]} : vector<4x256xf32> to vector<1x256xf32>
    %c0_9 = arith.constant 0 : index
    %c0_10 = arith.constant 0 : index
    %13 = vector.load %arg4[%c0_9, %c0_10] : memref<256x256xbf16, #tpu.memory_space<vmem>>, vector<256x256xbf16>
    %cst_11 = arith.constant dense<0.000000e+00> : vector<64x256xf32>
    %14 = tpu.matmul %0, %13, %cst_11 {dimension_numbers = #tpu.dot_dimension_numbers<[1], [0], [0], [1], [0, 0, 1, 1], [], []>} : vector<64x256xbf16>, vector<256x256xbf16>, vector<64x256xf32> -> vector<64x256xf32>
    %15 = vector.broadcast %9 : vector<1x256xf32> to vector<64x256xf32>
    %16 = arith.addf %14, %15 : vector<64x256xf32>
    %17 = arith.negf %16 : vector<64x256xf32>
    %18 = math.exp %17 : vector<64x256xf32>
    %cst_12 = arith.constant 1.000000e+00 : f32
    %19 = vector.broadcast %cst_12 : f32 to vector<64x256xf32>
    %20 = arith.addf %19, %18 : vector<64x256xf32>
    %21 = arith.divf %19, %20 : vector<64x256xf32>
    %22 = arith.mulf %16, %21 : vector<64x256xf32>
    %23 = arith.mulf %22, %2 : vector<64x256xf32>
    %24 = vector.broadcast %10 : vector<1x256xf32> to vector<64x256xf32>
    %25 = arith.mulf %23, %24 : vector<64x256xf32>
    %26 = vector.broadcast %11 : vector<1x256xf32> to vector<64x256xf32>
    %27 = arith.mulf %7, %26 : vector<64x256xf32>
    %28 = arith.addf %25, %27 : vector<64x256xf32>
    %29 = arith.truncf %28 : vector<64x256xf32> to vector<64x256xbf16>
    %c0_13 = arith.constant 0 : index
    %c0_14 = arith.constant 0 : index
    %30 = vector.load %arg5[%c0_13, %c0_14] : memref<256x256xbf16, #tpu.memory_space<vmem>>, vector<256x256xbf16>
    %cst_15 = arith.constant dense<0.000000e+00> : vector<64x256xf32>
    %31 = tpu.matmul %29, %30, %cst_15 {dimension_numbers = #tpu.dot_dimension_numbers<[1], [0], [0], [1], [0, 0, 1, 1], [], []>} : vector<64x256xbf16>, vector<256x256xbf16>, vector<64x256xf32> -> vector<64x256xf32>
    %32 = vector.broadcast %12 : vector<1x256xf32> to vector<64x256xf32>
    %33 = arith.addf %31, %32 : vector<64x256xf32>
    %c0_16 = arith.constant 0 : index
    %c0_17 = arith.constant 0 : index
    %34 = vector.load %arg7[%c0_16, %c0_17] : memref<64x256xf32, #tpu.memory_space<vmem>>, vector<64x256xf32>
    tpu.vector_store %arg7[%c0_16, %c0_17], %33 {strides = array<i32>} : memref<64x256xf32, #tpu.memory_space<vmem>>, vector<64x256xf32>,
    %c0_18 = arith.constant 0 : index
    %c0_19 = arith.constant 0 : index
    %35 = vector.load %arg8[%c0_18, %c0_19] : memref<64x256xf32, #tpu.memory_space<vmem>>, vector<64x256xf32>
    tpu.vector_store %arg8[%c0_18, %c0_19], %7 {strides = array<i32>} : memref<64x256xf32, #tpu.memory_space<vmem>>, vector<64x256xf32>,
    return
  }
  func.func @transform_0(%arg0: i32) -> (i32, i32) {
    %c0_i32 = arith.constant 0 : i32
    %c0_i32_0 = arith.constant 0 : i32
    return %arg0, %c0_i32 : i32, i32
  }
  func.func @transform_1(%arg0: i32) -> (i32, i32) {
    %c0_i32 = arith.constant 0 : i32
    %c0_i32_0 = arith.constant 0 : i32
    return %arg0, %c0_i32 : i32, i32
  }
  func.func @transform_2(%arg0: i32) -> (i32, i32) {
    %c0_i32 = arith.constant 0 : i32
    %c0_i32_0 = arith.constant 0 : i32
    %c0_i32_1 = arith.constant 0 : i32
    return %c0_i32, %c0_i32_0 : i32, i32
  }
  func.func @transform_3(%arg0: i32) -> (i32, i32) {
    %c0_i32 = arith.constant 0 : i32
    %c0_i32_0 = arith.constant 0 : i32
    %c0_i32_1 = arith.constant 0 : i32
    return %c0_i32, %c0_i32_0 : i32, i32
  }
  func.func @transform_4(%arg0: i32) -> (i32, i32) {
    %c0_i32 = arith.constant 0 : i32
    %c0_i32_0 = arith.constant 0 : i32
    %c0_i32_1 = arith.constant 0 : i32
    return %c0_i32, %c0_i32_0 : i32, i32
  }
  func.func @transform_5(%arg0: i32) -> (i32, i32) {
    %c0_i32 = arith.constant 0 : i32
    %c0_i32_0 = arith.constant 0 : i32
    %c0_i32_1 = arith.constant 0 : i32
    return %c0_i32, %c0_i32_0 : i32, i32
  }
  func.func @transform_6(%arg0: i32) -> (i32, i32) {
    %c0_i32 = arith.constant 0 : i32
    %c0_i32_0 = arith.constant 0 : i32
    return %arg0, %c0_i32 : i32, i32
  }
  func.func @transform_7(%arg0: i32) -> (i32, i32) {
    %c0_i32 = arith.constant 0 : i32
    %c0_i32_0 = arith.constant 0 : i32
    return %arg0, %c0_i32 : i32, i32
  }
}

module attributes {stable_mosaic.version = 11 : i64} {
  func.func @conba_kernel(%arg0: i32, %arg1: memref<64x256xbf16, #tpu.memory_space<vmem>>, %arg2: memref<64x256xbf16, #tpu.memory_space<vmem>>, %arg3: memref<512x256xbf16, #tpu.memory_space<vmem>>, %arg4: memref<256x256xbf16, #tpu.memory_space<vmem>>, %arg5: memref<256x256xbf16, #tpu.memory_space<vmem>>, %arg6: memref<4x256xf32, #tpu.memory_space<vmem>>, %arg7: memref<64x256xf32, #tpu.memory_space<vmem>>, %arg8: memref<64x256xf32, #tpu.memory_space<vmem>>) attributes {dimension_semantics = [#tpu.dimension_semantics<arbitrary>], iteration_bounds = array<i64: 1>, scalar_prefetch = 0 : i64, scratch_operands = 0 : i64, tpu.core_type = #tpu.core_type<tc>, window_params = [{transform_indices = @transform_0, window_bounds = array<i64: 64, 256>}, {transform_indices = @transform_1, window_bounds = array<i64: 64, 256>}, {pipeline_mode = #tpu.pipeline_mode<synchronous>, transform_indices = @transform_2, window_bounds = array<i64: 512, 256>}, {pipeline_mode = #tpu.pipeline_mode<synchronous>, transform_indices = @transform_3, window_bounds = array<i64: 256, 256>}, {pipeline_mode = #tpu.pipeline_mode<synchronous>, transform_indices = @transform_4, window_bounds = array<i64: 256, 256>}, {pipeline_mode = #tpu.pipeline_mode<synchronous>, transform_indices = @transform_5, window_bounds = array<i64: 4, 256>}, {transform_indices = @transform_6, window_bounds = array<i64: 64, 256>}, {transform_indices = @transform_7, window_bounds = array<i64: 64, 256>}]} {
    %c0 = arith.constant 0 : index
    %c0_0 = arith.constant 0 : index
    %0 = vector.load %arg1[%c0, %c0_0] : memref<64x256xbf16, #tpu.memory_space<vmem>>, vector<64x256xbf16>
    %c0_1 = arith.constant 0 : index
    %c0_2 = arith.constant 0 : index
    %1 = vector.load %arg2[%c0_1, %c0_2] : memref<64x256xbf16, #tpu.memory_space<vmem>>, vector<64x256xbf16>
    %2 = arith.extf %0 : vector<64x256xbf16> to vector<64x256xf32>
    %c0_3 = arith.constant 0 : index
    %c0_4 = arith.constant 0 : index
    %3 = vector.load %arg3[%c0_3, %c0_4] : memref<512x256xbf16, #tpu.memory_space<vmem>>, vector<256x256xbf16>
    %cst = arith.constant dense<0.000000e+00> : vector<64x256xf32>
    %4 = tpu.matmul %1, %3, %cst {dimension_numbers = #tpu.dot_dimension_numbers<[1], [0], [0], [1], [0, 0, 1, 1], [], []>} : vector<64x256xbf16>, vector<256x256xbf16>, vector<64x256xf32> -> vector<64x256xf32>
    %c256 = arith.constant 256 : index
    %c0_5 = arith.constant 0 : index
    %5 = vector.load %arg3[%c256, %c0_5] : memref<512x256xbf16, #tpu.memory_space<vmem>>, vector<256x256xbf16>
    %cst_6 = arith.constant dense<0.000000e+00> : vector<64x256xf32>
    %6 = tpu.matmul %0, %5, %cst_6 {dimension_numbers = #tpu.dot_dimension_numbers<[1], [0], [0], [1], [0, 0, 1, 1], [], []>} : vector<64x256xbf16>, vector<256x256xbf16>, vector<64x256xf32> -> vector<64x256xf32>
    %7 = arith.addf %4, %6 : vector<64x256xf32>
    %c0_7 = arith.constant 0 : index
    %c0_8 = arith.constant 0 : index
    %8 = vector.load %arg6[%c0_7, %c0_8] : memref<4x256xf32, #tpu.memory_space<vmem>>, vector<4x256xf32>
    %9 = vector.extract_strided_slice %8 {offsets = [0, 0], sizes = [1, 256], strides = [1, 1]} : vector<4x256xf32> to vector<1x256xf32>
    %10 = vector.extract_strided_slice %8 {offsets = [1, 0], sizes = [1, 256], strides = [1, 1]} : vector<4x256xf32> to vector<1x256xf32>
    %11 = vector.extract_strided_slice %8 {offsets = [2, 0], sizes = [1, 256], strides = [1, 1]} : vector<4x256xf32> to vector<1x256xf32>
    %12 = vector.extract_strided_slice %8 {offsets = [3, 0], sizes = [1, 256], strides = [1, 1]} : vector<4x256xf32> to vector<1x256xf32>
    %c0_9 = arith.constant 0 : index
    %c0_10 = arith.constant 0 : index
    %13 = vector.load %arg4[%c0_9, %c0_10] : memref<256x256xbf16, #tpu.memory_space<vmem>>, vector<256x256xbf16>
    %cst_11 = arith.constant dense<0.000000e+00> : vector<64x256xf32>
    %14 = tpu.matmul %0, %13, %cst_11 {dimension_numbers = #tpu.dot_dimension_numbers<[1], [0], [0], [1], [0, 0, 1, 1], [], []>} : vector<64x256xbf16>, vector<256x256xbf16>, vector<64x256xf32> -> vector<64x256xf32>
    %15 = vector.broadcast %9 : vector<1x256xf32> to vector<64x256xf32>
    %16 = arith.addf %14, %15 : vector<64x256xf32>
    %17 = arith.negf %16 : vector<64x256xf32>
    %18 = math.exp %17 : vector<64x256xf32>
    %cst_12 = arith.constant 1.000000e+00 : f32
    %19 = vector.broadcast %cst_12 : f32 to vector<64x256xf32>
    %20 = arith.addf %19, %18 : vector<64x256xf32>
    %21 = arith.divf %19, %20 : vector<64x256xf32>
    %22 = arith.mulf %16, %21 : vector<64x256xf32>
    %23 = arith.mulf %22, %2 : vector<64x256xf32>
    %24 = vector.broadcast %10 : vector<1x256xf32> to vector<64x256xf32>
    %25 = arith.mulf %23, %24 : vector<64x256xf32>
    %26 = vector.broadcast %11 : vector<1x256xf32> to vector<64x256xf32>
    %27 = arith.mulf %7, %26 : vector<64x256xf32>
    %28 = arith.addf %25, %27 : vector<64x256xf32>
    %29 = arith.truncf %28 : vector<64x256xf32> to vector<64x256xbf16>
    %c0_13 = arith.constant 0 : index
    %c0_14 = arith.constant 0 : index
    %30 = vector.load %arg5[%c0_13, %c0_14] : memref<256x256xbf16, #tpu.memory_space<vmem>>, vector<256x256xbf16>
    %cst_15 = arith.constant dense<0.000000e+00> : vector<64x256xf32>
    %31 = tpu.matmul %29, %30, %cst_15 {dimension_numbers = #tpu.dot_dimension_numbers<[1], [0], [0], [1], [0, 0, 1, 1], [], []>} : vector<64x256xbf16>, vector<256x256xbf16>, vector<64x256xf32> -> vector<64x256xf32>
    %32 = vector.broadcast %12 : vector<1x256xf32> to vector<64x256xf32>
    %33 = arith.addf %31, %32 : vector<64x256xf32>
    %c0_16 = arith.constant 0 : index
    %c0_17 = arith.constant 0 : index
    %34 = vector.load %arg7[%c0_16, %c0_17] : memref<64x256xf32, #tpu.memory_space<vmem>>, vector<64x256xf32>
    tpu.vector_store %arg7[%c0_16, %c0_17], %33 {strides = array<i32>} : memref<64x256xf32, #tpu.memory_space<vmem>>, vector<64x256xf32>,
    %c0_18 = arith.constant 0 : index
    %c0_19 = arith.constant 0 : index
    %35 = vector.load %arg8[%c0_18, %c0_19] : memref<64x256xf32, #tpu.memory_space<vmem>>, vector<64x256xf32>
    tpu.vector_store %arg8[%c0_18, %c0_19], %7 {strides = array<i32>} : memref<64x256xf32, #tpu.memory_space<vmem>>, vector<64x256xf32>,
    return
  }
  func.func @transform_0(%arg0: i32) -> (i32, i32) {
    %c0_i32 = arith.constant 0 : i32
    %c0_i32_0 = arith.constant 0 : i32
    return %arg0, %c0_i32 : i32, i32
  }
  func.func @transform_1(%arg0: i32) -> (i32, i32) {
    %c0_i32 = arith.constant 0 : i32
    %c0_i32_0 = arith.constant 0 : i32
    return %arg0, %c0_i32 : i32, i32
  }
  func.func @transform_2(%arg0: i32) -> (i32, i32) {
    %c0_i32 = arith.constant 0 : i32
    %c0_i32_0 = arith.constant 0 : i32
    %c0_i32_1 = arith.constant 0 : i32
    return %c0_i32, %c0_i32_0 : i32, i32
  }
  func.func @transform_3(%arg0: i32) -> (i32, i32) {
    %c0_i32 = arith.constant 0 : i32
    %c0_i32_0 = arith.constant 0 : i32
    %c0_i32_1 = arith.constant 0 : i32
    return %c0_i32, %c0_i32_0 : i32, i32
  }
  func.func @transform_4(%arg0: i32) -> (i32, i32) {
    %c0_i32 = arith.constant 0 : i32
    %c0_i32_0 = arith.constant 0 : i32
    %c0_i32_1 = arith.constant 0 : i32
    return %c0_i32, %c0_i32_0 : i32, i32
  }
  func.func @transform_5(%arg0: i32) -> (i32, i32) {
    %c0_i32 = arith.constant 0 : i32
    %c0_i32_0 = arith.constant 0 : i32
    %c0_i32_1 = arith.constant 0 : i32
    return %c0_i32, %c0_i32_0 : i32, i32
  }
  func.func @transform_6(%arg0: i32) -> (i32, i32) {
    %c0_i32 = arith.constant 0 : i32
    %c0_i32_0 = arith.constant 0 : i32
    return %arg0, %c0_i32 : i32, i32
  }
  func.func @transform_7(%arg0: i32) -> (i32, i32) {
    %c0_i32 = arith.constant 0 : i32
    %c0_i32_0 = arith.constant 0 : i32
    return %arg0, %c0_i32 : i32, i32
  }
}

</mosaic_0001>

<llo_original>
// kernel: tpu_custom_call.1
$region0: #{tpu_custom_call.1}
  #allocation0 [shape = 'u32[]', space=smem, size = 0x4, offset = 0x4, fixed_abs, tag = 'smem constant byte address 0x4 - core index']
  #allocation1 [shape = 'u32[72,128]{1,0:T(1,128)}', space=vmem, size = 0x9000, scoped, tag = 'internal scratch']
  %s0 = inlined_call_operand.hbm [shape: bf16[64,256], index: 0, kind: input, shape index: {}]
  %s1 = inlined_call_operand.hbm [shape: bf16[64,256], index: 1, kind: input, shape index: {}]
  %s2 = inlined_call_operand.hbm [shape: bf16[512,256], index: 2, kind: input, shape index: {}]
  %s3 = inlined_call_operand.hbm [shape: bf16[256,256], index: 3, kind: input, shape index: {}]
  %s4 = inlined_call_operand.hbm [shape: bf16[256,256], index: 4, kind: input, shape index: {}]
  %s5 = inlined_call_operand.hbm [shape: f32[4,256], index: 5, kind: input, shape index: {}]
  %s6 = inlined_call_operand.hbm [shape: f32[64,256], index: 6, kind: output, shape index: {0}]
  %s7 = inlined_call_operand.hbm [shape: f32[64,256], index: 7, kind: output, shape index: {1}]
  %8 = xla_tuple %s6, %s7
  %s9 = sld [smem:[#allocation0]]
  $region66: #{tpu_custom_call.1} parent=0
    _
  %s11 = ssub.s32 1, %s9
  %s12 = scalar_select 0, %s11, %s9
  $region1: #{tpu_custom_call.1} parent=0
    #allocation2 [shape = 'u8[32768]{0}', space=vmem, size = 0x8000, scoped, tag = 'input window, operand 0, single buffered']
    #allocation3 [shape = 's32[1]{0}', space=sflag, size = 0x4, scoped, tag = 'scoped memory for tpu_custom_call.1']
    #allocation4 [shape = 's32[1]{0}', space=sflag, size = 0x4, scoped, tag = 'scoped memory for tpu_custom_call.1']
    #allocation5 [shape = 'u8[32768]{0}', space=vmem, size = 0x8000, scoped, tag = 'input window, operand 1, single buffered']
    #allocation6 [shape = 's32[1]{0}', space=sflag, size = 0x4, scoped, tag = 'scoped memory for tpu_custom_call.1']
    #allocation7 [shape = 'u8[262144]{0}', space=vmem, size = 0x40000, scoped, tag = 'input window, operand 2, single buffered']
    #allocation8 [shape = 'u8[131072]{0}', space=vmem, size = 0x20000, scoped, tag = 'input window, operand 3, single buffered']
    #allocation9 [shape = 's32[1]{0}', space=sflag, size = 0x4, scoped, tag = 'scoped memory for tpu_custom_call.1']
    #allocation10 [shape = 'u8[131072]{0}', space=vmem, size = 0x20000, scoped, tag = 'input window, operand 4, single buffered']
    #allocation11 [shape = 'u8[4096]{0}', space=vmem, size = 0x1000, scoped, tag = 'input window, operand 5, single buffered']
    #allocation12 [shape = 's32[1]{0}', space=sflag, size = 0x4, scoped, tag = 'scoped memory for tpu_custom_call.1']
    #allocation13 [shape = 'u8[65536]{0}', space=vmem, size = 0x10000, scoped, tag = 'output window, operand 0, single buffered']
    #allocation14 [shape = 'u8[65536]{0}', space=vmem, size = 0x10000, scoped, tag = 'output window, operand 1, single buffered']
    #allocation15 [shape = 's32[1]{0}', space=sflag, size = 0x4, scoped, tag = 'scoped memory for tpu_custom_call.1']
    %13 = vsyncpa [#allocation3], 0
    %14 = vsyncpa [#allocation6], 0
    %15 = vsyncpa [#allocation9], 0
    %16 = vsyncpa [#allocation12], 0
    %17 = vsyncpa [#allocation4], 0
    %18 = vsyncpa [#allocation15], 0
    // Predicated region
    $region2: #{tpu_custom_call.1} parent=1 // pred_check
      _
    $region3: #{tpu_custom_call.1} parent=1 // pred_check_branch
      %20 = sbr.rel (0) target = $region5
    $region4: #{tpu_custom_call.1} parent=1 // pred_region
      %22 = vsyncadd [#allocation3], 0
      %s23 = sshll.u32 %s0, 4
      %s24 = int_to_ptr.hbm [resolvable:$true] %s23
      %s25 = sshll.u32 [#allocation2], 4
      %s26 = int_to_ptr.vmem [resolvable:$true] %s25
      %31 = dma.hbm_to_vmem [thread:$0]  %s24, 1024, %s26, [#allocation3], 128, 128, 8
    $region5: #{tpu_custom_call.1} parent=1 // pred_fallthru
      _
    // Predicated region
    $region6: #{tpu_custom_call.1} parent=1 // pred_check
      _
    $region7: #{tpu_custom_call.1} parent=1 // pred_check_branch
      %33 = sbr.rel (0) target = $region9
    $region8: #{tpu_custom_call.1} parent=1 // pred_region
      %35 = vsyncadd [#allocation6], 0
      %s36 = sshll.u32 %s1, 4
      %s37 = int_to_ptr.hbm [resolvable:$true] %s36
      %s38 = sshll.u32 [#allocation5], 4
      %s39 = int_to_ptr.vmem [resolvable:$true] %s38
      %44 = dma.hbm_to_vmem [thread:$0]  %s37, 1024, %s39, [#allocation6], 128, 128, 8
    $region9: #{tpu_custom_call.1} parent=1 // pred_fallthru
      _
    // Predicated region
    $region10: #{tpu_custom_call.1} parent=1 // pred_check
      _
    $region11: #{tpu_custom_call.1} parent=1 // pred_check_branch
      %46 = sbr.rel (0) target = $region13
    $region12: #{tpu_custom_call.1} parent=1 // pred_region
      %48 = vsyncadd [#allocation6], 0
      %s49 = sshll.u32 %s2, 4
      %s50 = int_to_ptr.hbm [resolvable:$true] %s49
      %s51 = sshll.u32 [#allocation7], 4
      %s52 = int_to_ptr.vmem [resolvable:$true] %s51
      %57 = dma.hbm_to_vmem [thread:$0]  %s50, 8192, %s52, [#allocation6], 128, 128, 8
    $region13: #{tpu_custom_call.1} parent=1 // pred_fallthru
      _
    // Predicated region
    $region14: #{tpu_custom_call.1} parent=1 // pred_check
      _
    $region15: #{tpu_custom_call.1} parent=1 // pred_check_branch
      %59 = sbr.rel (0) target = $region17
    $region16: #{tpu_custom_call.1} parent=1 // pred_region
      %61 = vsyncadd [#allocation9], 0
      %s62 = sshll.u32 %s3, 4
      %s63 = int_to_ptr.hbm [resolvable:$true] %s62
      %s64 = sshll.u32 [#allocation8], 4
      %s65 = int_to_ptr.vmem [resolvable:$true] %s64
      %70 = dma.hbm_to_vmem [thread:$0]  %s63, 4096, %s65, [#allocation9], 128, 128, 8
    $region17: #{tpu_custom_call.1} parent=1 // pred_fallthru
      _
    // Predicated region
    $region18: #{tpu_custom_call.1} parent=1 // pred_check
      _
    $region19: #{tpu_custom_call.1} parent=1 // pred_check_branch
      %72 = sbr.rel (0) target = $region21
    $region20: #{tpu_custom_call.1} parent=1 // pred_region
      %74 = vsyncadd [#allocation9], 0
      %s75 = sshll.u32 %s4, 4
      %s76 = int_to_ptr.hbm [resolvable:$true] %s75
      %s77 = sshll.u32 [#allocation10], 4
      %s78 = int_to_ptr.vmem [resolvable:$true] %s77
      %83 = dma.hbm_to_vmem [thread:$0]  %s76, 4096, %s78, [#allocation9], 128, 128, 8
    $region21: #{tpu_custom_call.1} parent=1 // pred_fallthru
      _
    // Predicated region
    $region22: #{tpu_custom_call.1} parent=1 // pred_check
      _
    $region23: #{tpu_custom_call.1} parent=1 // pred_check_branch
      %85 = sbr.rel (0) target = $region25
    $region24: #{tpu_custom_call.1} parent=1 // pred_region
      %87 = vsyncadd [#allocation12], 0
      %s89 = sshll.u32 %s5, 4
      %s90 = int_to_ptr.hbm [resolvable:$true] %s89
      %s91 = sshll.u32 [#allocation11], 4
      %s92 = int_to_ptr.vmem [resolvable:$true] %s91
      %94 = dma.hbm_to_vmem [thread:$0]  %s90, 128, %s92, [#allocation12]
    $region25: #{tpu_custom_call.1} parent=1 // pred_fallthru
      _
    // Predicated region
    $region26: #{tpu_custom_call.1} parent=1 // pred_check
      _
    $region27: #{tpu_custom_call.1} parent=1 // pred_check_branch
      %96 = sbr.rel (0) target = $region29
    $region28: #{tpu_custom_call.1} parent=1 // pred_region
      %98 = dma.done [#allocation3], 1024
    $region29: #{tpu_custom_call.1} parent=1 // pred_fallthru
      _
    // Predicated region
    $region30: #{tpu_custom_call.1} parent=1 // pred_check
      _
    $region31: #{tpu_custom_call.1} parent=1 // pred_check_branch
      %100 = sbr.rel (0) target = $region33
    $region32: #{tpu_custom_call.1} parent=1 // pred_region
      %102 = dma.done [#allocation6], 1024
    $region33: #{tpu_custom_call.1} parent=1 // pred_fallthru
      _
    // Predicated region
    $region34: #{tpu_custom_call.1} parent=1 // pred_check
      _
    $region35: #{tpu_custom_call.1} parent=1 // pred_check_branch
      %104 = sbr.rel (0) target = $region37
    $region36: #{tpu_custom_call.1} parent=1 // pred_region
      %106 = dma.done [#allocation6], 8192
    $region37: #{tpu_custom_call.1} parent=1 // pred_fallthru
      _
    // Predicated region
    $region38: #{tpu_custom_call.1} parent=1 // pred_check
      _
    $region39: #{tpu_custom_call.1} parent=1 // pred_check_branch
      %108 = sbr.rel (0) target = $region41
    $region40: #{tpu_custom_call.1} parent=1 // pred_region
      %110 = dma.done [#allocation9], 4096
    $region41: #{tpu_custom_call.1} parent=1 // pred_fallthru
      _
    // Predicated region
    $region42: #{tpu_custom_call.1} parent=1 // pred_check
      _
    $region43: #{tpu_custom_call.1} parent=1 // pred_check_branch
      %112 = sbr.rel (0) target = $region45
    $region44: #{tpu_custom_call.1} parent=1 // pred_region
      %114 = dma.done [#allocation9], 4096
    $region45: #{tpu_custom_call.1} parent=1 // pred_fallthru
      _
    // Predicated region
    $region46: #{tpu_custom_call.1} parent=1 // pred_check
      _
    $region47: #{tpu_custom_call.1} parent=1 // pred_check_branch
      %116 = sbr.rel (0) target = $region49
    $region48: #{tpu_custom_call.1} parent=1 // pred_region
      %118 = dma.done [#allocation12], 128
    $region49: #{tpu_custom_call.1} parent=1 // pred_fallthru
      _
    %v119 = vld [vmem:[#allocation2] sm:$0xff]
    %v120 = vld [vmem:[#allocation2 + $0x8] sm:$0xff]
    %v121 = vld [vmem:[#allocation2 + $0x10] sm:$0xff]
    %v122 = vld [vmem:[#allocation2 + $0x18] sm:$0xff]
    %v123 = vld [vmem:[#allocation2 + $0x20] sm:$0xff]
    %v124 = vld [vmem:[#allocation2 + $0x28] sm:$0xff]
    %v125 = vld [vmem:[#allocation2 + $0x30] sm:$0xff]
    %v126 = vld [vmem:[#allocation2 + $0x38] sm:$0xff]
    %v127 = vld [vmem:[#allocation5] sm:$0xff]
    %v128 = vld [vmem:[#allocation5 + $0x8] sm:$0xff]
    %v129 = vld [vmem:[#allocation5 + $0x10] sm:$0xff]
    %v130 = vld [vmem:[#allocation5 + $0x18] sm:$0xff]
    %v131 = vld [vmem:[#allocation5 + $0x20] sm:$0xff]
    %v132 = vld [vmem:[#allocation5 + $0x28] sm:$0xff]
    %v133 = vld [vmem:[#allocation5 + $0x30] sm:$0xff]
    %v134 = vld [vmem:[#allocation5 + $0x38] sm:$0xff]
    %v135 = vunpack.c.l.bf16 %v119
    %v136 = vunpack.c.h.bf16 %v119
    %v137 = vunpack.c.l.bf16 %v120
    %v138 = vunpack.c.h.bf16 %v120
    %v139 = vunpack.c.l.bf16 %v121
    %v140 = vunpack.c.h.bf16 %v121
    %v141 = vunpack.c.l.bf16 %v122
    %v142 = vunpack.c.h.bf16 %v122
    %v143 = vunpack.c.l.bf16 %v123
    %v144 = vunpack.c.h.bf16 %v123
    %v145 = vunpack.c.l.bf16 %v124
    %v146 = vunpack.c.h.bf16 %v124
    %v147 = vunpack.c.l.bf16 %v125
    %v148 = vunpack.c.h.bf16 %v125
    %v149 = vunpack.c.l.bf16 %v126
    %v150 = vunpack.c.h.bf16 %v126
    %v151 = vld [vmem:[#allocation7] sm:$0xff]
    %v152 = vld [vmem:[#allocation7 + $0x8] sm:$0xff]
    %v153 = vld [vmem:[#allocation7 + $0x10] sm:$0xff]
    %v154 = vld [vmem:[#allocation7 + $0x18] sm:$0xff]
    %v155 = vld [vmem:[#allocation7 + $0x20] sm:$0xff]
    %v156 = vld [vmem:[#allocation7 + $0x28] sm:$0xff]
    %v157 = vld [vmem:[#allocation7 + $0x30] sm:$0xff]
    %v158 = vld [vmem:[#allocation7 + $0x38] sm:$0xff]
    %v159 = vld [vmem:[#allocation7 + $0x40] sm:$0xff]
    %v160 = vld [vmem:[#allocation7 + $0x48] sm:$0xff]
    %v161 = vld [vmem:[#allocation7 + $0x50] sm:$0xff]
    %v162 = vld [vmem:[#allocation7 + $0x58] sm:$0xff]
    %v163 = vld [vmem:[#allocation7 + $0x60] sm:$0xff]
    %v164 = vld [vmem:[#allocation7 + $0x68] sm:$0xff]
    %v165 = vld [vmem:[#allocation7 + $0x70] sm:$0xff]
    %v166 = vld [vmem:[#allocation7 + $0x78] sm:$0xff]
    %v167 = vld [vmem:[#allocation7 + $0x80] sm:$0xff]
    %v168 = vld [vmem:[#allocation7 + $0x88] sm:$0xff]
    %v169 = vld [vmem:[#allocation7 + $0x90] sm:$0xff]
    %v170 = vld [vmem:[#allocation7 + $0x98] sm:$0xff]
    %v171 = vld [vmem:[#allocation7 + $0xa0] sm:$0xff]
    %v172 = vld [vmem:[#allocation7 + $0xa8] sm:$0xff]
    %v173 = vld [vmem:[#allocation7 + $0xb0] sm:$0xff]
    %v174 = vld [vmem:[#allocation7 + $0xb8] sm:$0xff]
    %v175 = vld [vmem:[#allocation7 + $0xc0] sm:$0xff]
    %v176 = vld [vmem:[#allocation7 + $0xc8] sm:$0xff]
    %v177 = vld [vmem:[#allocation7 + $0xd0] sm:$0xff]
    %v178 = vld [vmem:[#allocation7 + $0xd8] sm:$0xff]
    %v179 = vld [vmem:[#allocation7 + $0xe0] sm:$0xff]
    %v180 = vld [vmem:[#allocation7 + $0xe8] sm:$0xff]
    %v181 = vld [vmem:[#allocation7 + $0xf0] sm:$0xff]
    %v182 = vld [vmem:[#allocation7 + $0xf8] sm:$0xff]
    %v183 = vld [vmem:[#allocation7 + $0x100] sm:$0xff]
    %v184 = vld [vmem:[#allocation7 + $0x108] sm:$0xff]
    %v185 = vld [vmem:[#allocation7 + $0x110] sm:$0xff]
    %v186 = vld [vmem:[#allocation7 + $0x118] sm:$0xff]
    %v187 = vld [vmem:[#allocation7 + $0x120] sm:$0xff]
    %v188 = vld [vmem:[#allocation7 + $0x128] sm:$0xff]
    %v189 = vld [vmem:[#allocation7 + $0x130] sm:$0xff]
    %v190 = vld [vmem:[#allocation7 + $0x138] sm:$0xff]
    %v191 = vld [vmem:[#allocation7 + $0x140] sm:$0xff]
    %v192 = vld [vmem:[#allocation7 + $0x148] sm:$0xff]
    %v193 = vld [vmem:[#allocation7 + $0x150] sm:$0xff]
    %v194 = vld [vmem:[#allocation7 + $0x158] sm:$0xff]
    %v195 = vld [vmem:[#allocation7 + $0x160] sm:$0xff]
    %v196 = vld [vmem:[#allocation7 + $0x168] sm:$0xff]
    %v197 = vld [vmem:[#allocation7 + $0x170] sm:$0xff]
    %v198 = vld [vmem:[#allocation7 + $0x178] sm:$0xff]
    %v199 = vld [vmem:[#allocation7 + $0x180] sm:$0xff]
    %v200 = vld [vmem:[#allocation7 + $0x188] sm:$0xff]
    %v201 = vld [vmem:[#allocation7 + $0x190] sm:$0xff]
    %v202 = vld [vmem:[#allocation7 + $0x198] sm:$0xff]
    %v203 = vld [vmem:[#allocation7 + $0x1a0] sm:$0xff]
    %v204 = vld [vmem:[#allocation7 + $0x1a8] sm:$0xff]
    %v205 = vld [vmem:[#allocation7 + $0x1b0] sm:$0xff]
    %v206 = vld [vmem:[#allocation7 + $0x1b8] sm:$0xff]
    %v207 = vld [vmem:[#allocation7 + $0x1c0] sm:$0xff]
    %v208 = vld [vmem:[#allocation7 + $0x1c8] sm:$0xff]
    %v209 = vld [vmem:[#allocation7 + $0x1d0] sm:$0xff]
    %v210 = vld [vmem:[#allocation7 + $0x1d8] sm:$0xff]
    %v211 = vld [vmem:[#allocation7 + $0x1e0] sm:$0xff]
    %v212 = vld [vmem:[#allocation7 + $0x1e8] sm:$0xff]
    %v213 = vld [vmem:[#allocation7 + $0x1f0] sm:$0xff]
    %v214 = vld [vmem:[#allocation7 + $0x1f8] sm:$0xff]
    %v223 = vunpack.c.l.b16 %v119
    %v224 = vunpack.c.h.b16 %v119
    %v225 = vunpack.c.l.b16 %v120
    %v226 = vunpack.c.h.b16 %v120
    %v227 = vunpack.c.l.b16 %v121
    %v228 = vunpack.c.h.b16 %v121
    %v229 = vunpack.c.l.b16 %v122
    %v230 = vunpack.c.h.b16 %v122
    %v231 = vunpack.c.l.b16 %v123
    %v232 = vunpack.c.h.b16 %v123
    %v233 = vunpack.c.l.b16 %v124
    %v234 = vunpack.c.h.b16 %v124
    %v235 = vunpack.c.l.b16 %v125
    %v236 = vunpack.c.h.b16 %v125
    %v237 = vunpack.c.l.b16 %v126
    %v238 = vunpack.c.h.b16 %v126
    %v239 = vpack.c.b16 %v225, %v223
    %v240 = vpack.c.b16 %v226, %v224
    %v241 = vpack.c.b16 %v229, %v227
    %v242 = vpack.c.b16 %v230, %v228
    %v243 = vpack.c.b16 %v233, %v231
    %v244 = vpack.c.b16 %v234, %v232
    %v245 = vpack.c.b16 %v237, %v235
    %v246 = vpack.c.b16 %v238, %v236
    %v287 = vunpack.c.l.b16 %v183
    %v288 = vunpack.c.h.b16 %v183
    %v289 = vunpack.c.l.b16 %v184
    %v290 = vunpack.c.h.b16 %v184
    %v291 = vunpack.c.l.b16 %v185
    %v292 = vunpack.c.h.b16 %v185
    %v293 = vunpack.c.l.b16 %v186
    %v294 = vunpack.c.h.b16 %v186
    %v295 = vunpack.c.l.b16 %v187
    %v296 = vunpack.c.h.b16 %v187
    %v297 = vunpack.c.l.b16 %v188
    %v298 = vunpack.c.h.b16 %v188
    %v299 = vunpack.c.l.b16 %v189
    %v300 = vunpack.c.h.b16 %v189
    %v301 = vunpack.c.l.b16 %v190
    %v302 = vunpack.c.h.b16 %v190
    %v303 = vunpack.c.l.b16 %v191
    %v304 = vunpack.c.h.b16 %v191
    %v305 = vunpack.c.l.b16 %v192
    %v306 = vunpack.c.h.b16 %v192
    %v307 = vunpack.c.l.b16 %v193
    %v308 = vunpack.c.h.b16 %v193
    %v309 = vunpack.c.l.b16 %v194
    %v310 = vunpack.c.h.b16 %v194
    %v311 = vunpack.c.l.b16 %v195
    %v312 = vunpack.c.h.b16 %v195
    %v313 = vunpack.c.l.b16 %v196
    %v314 = vunpack.c.h.b16 %v196
    %v315 = vunpack.c.l.b16 %v197
    %v316 = vunpack.c.h.b16 %v197
    %v317 = vunpack.c.l.b16 %v198
    %v318 = vunpack.c.h.b16 %v198
    %v319 = vunpack.c.l.b16 %v199
    %v320 = vunpack.c.h.b16 %v199
    %v321 = vunpack.c.l.b16 %v200
    %v322 = vunpack.c.h.b16 %v200
    %v323 = vunpack.c.l.b16 %v201
    %v324 = vunpack.c.h.b16 %v201
    %v325 = vunpack.c.l.b16 %v202
    %v326 = vunpack.c.h.b16 %v202
    %v327 = vunpack.c.l.b16 %v203
    %v328 = vunpack.c.h.b16 %v203
    %v329 = vunpack.c.l.b16 %v204
    %v330 = vunpack.c.h.b16 %v204
    %v331 = vunpack.c.l.b16 %v205
    %v332 = vunpack.c.h.b16 %v205
    %v333 = vunpack.c.l.b16 %v206
    %v334 = vunpack.c.h.b16 %v206
    %v335 = vunpack.c.l.b16 %v207
    %v336 = vunpack.c.h.b16 %v207
    %v337 = vunpack.c.l.b16 %v208
    %v338 = vunpack.c.h.b16 %v208
    %v339 = vunpack.c.l.b16 %v209
    %v340 = vunpack.c.h.b16 %v209
    %v341 = vunpack.c.l.b16 %v210
    %v342 = vunpack.c.h.b16 %v210
    %v343 = vunpack.c.l.b16 %v211
    %v344 = vunpack.c.h.b16 %v211
    %v345 = vunpack.c.l.b16 %v212
    %v346 = vunpack.c.h.b16 %v212
    %v347 = vunpack.c.l.b16 %v213
    %v348 = vunpack.c.h.b16 %v213
    %v349 = vunpack.c.l.b16 %v214
    %v350 = vunpack.c.h.b16 %v214
    %v351 = vpack.c.b16 %v289, %v287
    %v352 = vpack.c.b16 %v290, %v288
    %v353 = vpack.c.b16 %v293, %v291
    %v354 = vpack.c.b16 %v294, %v292
    %v355 = vpack.c.b16 %v297, %v295
    %v356 = vpack.c.b16 %v298, %v296
    %v357 = vpack.c.b16 %v301, %v299
    %v358 = vpack.c.b16 %v302, %v300
    %v359 = vpack.c.b16 %v305, %v303
    %v360 = vpack.c.b16 %v306, %v304
    %v361 = vpack.c.b16 %v309, %v307
    %v362 = vpack.c.b16 %v310, %v308
    %v363 = vpack.c.b16 %v313, %v311
    %v364 = vpack.c.b16 %v314, %v312
    %v365 = vpack.c.b16 %v317, %v315
    %v366 = vpack.c.b16 %v318, %v316
    %v367 = vpack.c.b16 %v321, %v319
    %v368 = vpack.c.b16 %v322, %v320
    %v369 = vpack.c.b16 %v325, %v323
    %v370 = vpack.c.b16 %v326, %v324
    %v371 = vpack.c.b16 %v329, %v327
    %v372 = vpack.c.b16 %v330, %v328
    %v373 = vpack.c.b16 %v333, %v331
    %v374 = vpack.c.b16 %v334, %v332
    %v375 = vpack.c.b16 %v337, %v335
    %v376 = vpack.c.b16 %v338, %v336
    %v377 = vpack.c.b16 %v341, %v339
    %v378 = vpack.c.b16 %v342, %v340
    %v379 = vpack.c.b16 %v345, %v343
    %v380 = vpack.c.b16 %v346, %v344
    %v381 = vpack.c.b16 %v349, %v347
    %v382 = vpack.c.b16 %v350, %v348
    %415 = vmatpush.bf16.msra.mxu0 %v365
    %416 = vmatpush.bf16.msra.mxu0 %v363
    %417 = vmatpush.bf16.msra.mxu0 %v361
    %418 = vmatpush.bf16.msra.mxu0 %v359
    %419 = vmatpush.bf16.msra.mxu0 %v357
    %420 = vmatpush.bf16.msra.mxu0 %v355
    %421 = vmatpush.bf16.msra.mxu0 %v353
    %422 = vmatpush.bf16.msra.mxu0 %v351
    %423 = vmatmul.bf16.gmra.mxu0 %v239
    %v424 = vpop.f32.mrf.mxu0
    %v425 = vadd.f32 0.0, %v424
    %v426 = vpop.f32.mrf.mxu0
    %v427 = vadd.f32 0.0, %v426
    %428 = vmatmul.bf16.gmra.mxu0 %v241
    %v429 = vpop.f32.mrf.mxu0
    %v430 = vadd.f32 0.0, %v429
    %v431 = vpop.f32.mrf.mxu0
    %v432 = vadd.f32 0.0, %v431
    %433 = vmatmul.bf16.gmra.mxu0 %v243
    %v434 = vpop.f32.mrf.mxu0
    %v435 = vadd.f32 0.0, %v434
    %v436 = vpop.f32.mrf.mxu0
    %v437 = vadd.f32 0.0, %v436
    %438 = vmatmul.bf16.gmra.mxu0 %v245
    %v439 = vpop.f32.mrf.mxu0
    %v440 = vadd.f32 0.0, %v439
    %v441 = vpop.f32.mrf.mxu0
    %v442 = vadd.f32 0.0, %v441
    %443 = vdwg.mxu0
    %444 = vmatpush.bf16.msra.mxu0 %v381
    %445 = vmatpush.bf16.msra.mxu0 %v379
    %446 = vmatpush.bf16.msra.mxu0 %v377
    %447 = vmatpush.bf16.msra.mxu0 %v375
    %448 = vmatpush.bf16.msra.mxu0 %v373
    %449 = vmatpush.bf16.msra.mxu0 %v371
    %450 = vmatpush.bf16.msra.mxu0 %v369
    %451 = vmatpush.bf16.msra.mxu0 %v367
    %452 = vmatmul.bf16.gmra.mxu0 %v240
    %v453 = vpop.f32.mrf.mxu0
    %v454 = vadd.f32 %v425, %v453
    %v455 = vpop.f32.mrf.mxu0
    %v456 = vadd.f32 %v427, %v455
    %457 = vmatmul.bf16.gmra.mxu0 %v242
    %v458 = vpop.f32.mrf.mxu0
    %v459 = vadd.f32 %v430, %v458
    %v460 = vpop.f32.mrf.mxu0
    %v461 = vadd.f32 %v432, %v460
    %462 = vmatmul.bf16.gmra.mxu0 %v244
    %v463 = vpop.f32.mrf.mxu0
    %v464 = vadd.f32 %v435, %v463
    %v465 = vpop.f32.mrf.mxu0
    %v466 = vadd.f32 %v437, %v465
    %467 = vmatmul.bf16.gmra.mxu0 %v246
    %v468 = vpop.f32.mrf.mxu0
    %v469 = vadd.f32 %v440, %v468
    %v470 = vpop.f32.mrf.mxu0
    %v471 = vadd.f32 %v442, %v470
    %472 = vdwg.mxu0
    %473 = vmatpush.bf16.msra.mxu0 %v366
    %474 = vmatpush.bf16.msra.mxu0 %v364
    %475 = vmatpush.bf16.msra.mxu0 %v362
    %476 = vmatpush.bf16.msra.mxu0 %v360
    %477 = vmatpush.bf16.msra.mxu0 %v358
    %478 = vmatpush.bf16.msra.mxu0 %v356
    %479 = vmatpush.bf16.msra.mxu0 %v354
    %480 = vmatpush.bf16.msra.mxu0 %v352
    %481 = vmatmul.bf16.gmra.mxu0 %v239
    %v482 = vpop.f32.mrf.mxu0
    %v483 = vadd.f32 0.0, %v482
    %v484 = vpop.f32.mrf.mxu0
    %v485 = vadd.f32 0.0, %v484
    %486 = vmatmul.bf16.gmra.mxu0 %v241
    %v487 = vpop.f32.mrf.mxu0
    %v488 = vadd.f32 0.0, %v487
    %v489 = vpop.f32.mrf.mxu0
    %v490 = vadd.f32 0.0, %v489
    %491 = vmatmul.bf16.gmra.mxu0 %v243
    %v492 = vpop.f32.mrf.mxu0
    %v493 = vadd.f32 0.0, %v492
    %v494 = vpop.f32.mrf.mxu0
    %v495 = vadd.f32 0.0, %v494
    %496 = vmatmul.bf16.gmra.mxu0 %v245
    %v497 = vpop.f32.mrf.mxu0
    %v498 = vadd.f32 0.0, %v497
    %v499 = vpop.f32.mrf.mxu0
    %v500 = vadd.f32 0.0, %v499
    %501 = vdwg.mxu0
    %502 = vmatpush.bf16.msra.mxu0 %v382
    %503 = vmatpush.bf16.msra.mxu0 %v380
    %504 = vmatpush.bf16.msra.mxu0 %v378
    %505 = vmatpush.bf16.msra.mxu0 %v376
    %506 = vmatpush.bf16.msra.mxu0 %v374
    %507 = vmatpush.bf16.msra.mxu0 %v372
    %508 = vmatpush.bf16.msra.mxu0 %v370
    %509 = vmatpush.bf16.msra.mxu0 %v368
    %510 = vmatmul.bf16.gmra.mxu0 %v240
    %v511 = vpop.f32.mrf.mxu0
    %v512 = vadd.f32 %v483, %v511
    %v513 = vpop.f32.mrf.mxu0
    %v514 = vadd.f32 %v485, %v513
    %515 = vmatmul.bf16.gmra.mxu0 %v242
    %v516 = vpop.f32.mrf.mxu0
    %v517 = vadd.f32 %v488, %v516
    %v518 = vpop.f32.mrf.mxu0
    %v519 = vadd.f32 %v490, %v518
    %520 = vmatmul.bf16.gmra.mxu0 %v244
    %v521 = vpop.f32.mrf.mxu0
    %v522 = vadd.f32 %v493, %v521
    %v523 = vpop.f32.mrf.mxu0
    %v524 = vadd.f32 %v495, %v523
    %525 = vmatmul.bf16.gmra.mxu0 %v246
    %v526 = vpop.f32.mrf.mxu0
    %v527 = vadd.f32 %v498, %v526
    %v528 = vpop.f32.mrf.mxu0
    %v529 = vadd.f32 %v500, %v528
    %530 = vdwg.mxu0
    %v539 = vunpack.c.l.b16 %v127
    %v540 = vunpack.c.h.b16 %v127
    %v541 = vunpack.c.l.b16 %v128
    %v542 = vunpack.c.h.b16 %v128
    %v543 = vunpack.c.l.b16 %v129
    %v544 = vunpack.c.h.b16 %v129
    %v545 = vunpack.c.l.b16 %v130
    %v546 = vunpack.c.h.b16 %v130
    %v547 = vunpack.c.l.b16 %v131
    %v548 = vunpack.c.h.b16 %v131
    %v549 = vunpack.c.l.b16 %v132
    %v550 = vunpack.c.h.b16 %v132
    %v551 = vunpack.c.l.b16 %v133
    %v552 = vunpack.c.h.b16 %v133
    %v553 = vunpack.c.l.b16 %v134
    %v554 = vunpack.c.h.b16 %v134
    %v555 = vpack.c.b16 %v541, %v539
    %v556 = vpack.c.b16 %v542, %v540
    %v557 = vpack.c.b16 %v545, %v543
    %v558 = vpack.c.b16 %v546, %v544
    %v559 = vpack.c.b16 %v549, %v547
    %v560 = vpack.c.b16 %v550, %v548
    %v561 = vpack.c.b16 %v553, %v551
    %v562 = vpack.c.b16 %v554, %v552
    %v603 = vunpack.c.l.b16 %v151
    %v604 = vunpack.c.h.b16 %v151
    %v605 = vunpack.c.l.b16 %v152
    %v606 = vunpack.c.h.b16 %v152
    %v607 = vunpack.c.l.b16 %v153
    %v608 = vunpack.c.h.b16 %v153
    %v609 = vunpack.c.l.b16 %v154
    %v610 = vunpack.c.h.b16 %v154
    %v611 = vunpack.c.l.b16 %v155
    %v612 = vunpack.c.h.b16 %v155
    %v613 = vunpack.c.l.b16 %v156
    %v614 = vunpack.c.h.b16 %v156
    %v615 = vunpack.c.l.b16 %v157
    %v616 = vunpack.c.h.b16 %v157
    %v617 = vunpack.c.l.b16 %v158
    %v618 = vunpack.c.h.b16 %v158
    %v619 = vunpack.c.l.b16 %v159
    %v620 = vunpack.c.h.b16 %v159
    %v621 = vunpack.c.l.b16 %v160
    %v622 = vunpack.c.h.b16 %v160
    %v623 = vunpack.c.l.b16 %v161
    %v624 = vunpack.c.h.b16 %v161
    %v625 = vunpack.c.l.b16 %v162
    %v626 = vunpack.c.h.b16 %v162
    %v627 = vunpack.c.l.b16 %v163
    %v628 = vunpack.c.h.b16 %v163
    %v629 = vunpack.c.l.b16 %v164
    %v630 = vunpack.c.h.b16 %v164
    %v631 = vunpack.c.l.b16 %v165
    %v632 = vunpack.c.h.b16 %v165
    %v633 = vunpack.c.l.b16 %v166
    %v634 = vunpack.c.h.b16 %v166
    %v635 = vunpack.c.l.b16 %v167
    %v636 = vunpack.c.h.b16 %v167
    %v637 = vunpack.c.l.b16 %v168
    %v638 = vunpack.c.h.b16 %v168
    %v639 = vunpack.c.l.b16 %v169
    %v640 = vunpack.c.h.b16 %v169
    %v641 = vunpack.c.l.b16 %v170
    %v642 = vunpack.c.h.b16 %v170
    %v643 = vunpack.c.l.b16 %v171
    %v644 = vunpack.c.h.b16 %v171
    %v645 = vunpack.c.l.b16 %v172
    %v646 = vunpack.c.h.b16 %v172
    %v647 = vunpack.c.l.b16 %v173
    %v648 = vunpack.c.h.b16 %v173
    %v649 = vunpack.c.l.b16 %v174
    %v650 = vunpack.c.h.b16 %v174
    %v651 = vunpack.c.l.b16 %v175
    %v652 = vunpack.c.h.b16 %v175
    %v653 = vunpack.c.l.b16 %v176
    %v654 = vunpack.c.h.b16 %v176
    %v655 = vunpack.c.l.b16 %v177
    %v656 = vunpack.c.h.b16 %v177
    %v657 = vunpack.c.l.b16 %v178
    %v658 = vunpack.c.h.b16 %v178
    %v659 = vunpack.c.l.b16 %v179
    %v660 = vunpack.c.h.b16 %v179
    %v661 = vunpack.c.l.b16 %v180
    %v662 = vunpack.c.h.b16 %v180
    %v663 = vunpack.c.l.b16 %v181
    %v664 = vunpack.c.h.b16 %v181
    %v665 = vunpack.c.l.b16 %v182
    %v666 = vunpack.c.h.b16 %v182
    %v667 = vpack.c.b16 %v605, %v603
    %v668 = vpack.c.b16 %v606, %v604
    %v669 = vpack.c.b16 %v609, %v607
    %v670 = vpack.c.b16 %v610, %v608
    %v671 = vpack.c.b16 %v613, %v611
    %v672 = vpack.c.b16 %v614, %v612
    %v673 = vpack.c.b16 %v617, %v615
    %v674 = vpack.c.b16 %v618, %v616
    %v675 = vpack.c.b16 %v621, %v619
    %v676 = vpack.c.b16 %v622, %v620
    %v677 = vpack.c.b16 %v625, %v623
    %v678 = vpack.c.b16 %v626, %v624
    %v679 = vpack.c.b16 %v629, %v627
    %v680 = vpack.c.b16 %v630, %v628
    %v681 = vpack.c.b16 %v633, %v631
    %v682 = vpack.c.b16 %v634, %v632
    %v683 = vpack.c.b16 %v637, %v635
    %v684 = vpack.c.b16 %v638, %v636
    %v685 = vpack.c.b16 %v641, %v639
    %v686 = vpack.c.b16 %v642, %v640
    %v687 = vpack.c.b16 %v645, %v643
    %v688 = vpack.c.b16 %v646, %v644
    %v689 = vpack.c.b16 %v649, %v647
    %v690 = vpack.c.b16 %v650, %v648
    %v691 = vpack.c.b16 %v653, %v651
    %v692 = vpack.c.b16 %v654, %v652
    %v693 = vpack.c.b16 %v657, %v655
    %v694 = vpack.c.b16 %v658, %v656
    %v695 = vpack.c.b16 %v661, %v659
    %v696 = vpack.c.b16 %v662, %v660
    %v697 = vpack.c.b16 %v665, %v663
    %v698 = vpack.c.b16 %v666, %v664
    %731 = vmatpush.bf16.msra.mxu0 %v681
    %732 = vmatpush.bf16.msra.mxu0 %v679
    %733 = vmatpush.bf16.msra.mxu0 %v677
    %734 = vmatpush.bf16.msra.mxu0 %v675
    %735 = vmatpush.bf16.msra.mxu0 %v673
    %736 = vmatpush.bf16.msra.mxu0 %v671
    %737 = vmatpush.bf16.msra.mxu0 %v669
    %738 = vmatpush.bf16.msra.mxu0 %v667
    %739 = vmatmul.bf16.gmra.mxu0 %v555
    %v740 = vpop.f32.mrf.mxu0
    %v741 = vadd.f32 %v454, %v740
    %v742 = vpop.f32.mrf.mxu0
    %v743 = vadd.f32 %v456, %v742
    %744 = vmatmul.bf16.gmra.mxu0 %v557
    %v745 = vpop.f32.mrf.mxu0
    %v746 = vadd.f32 %v459, %v745
    %v747 = vpop.f32.mrf.mxu0
    %v748 = vadd.f32 %v461, %v747
    %749 = vmatmul.bf16.gmra.mxu0 %v559
    %v750 = vpop.f32.mrf.mxu0
    %v751 = vadd.f32 %v464, %v750
    %v752 = vpop.f32.mrf.mxu0
    %v753 = vadd.f32 %v466, %v752
    %754 = vmatmul.bf16.gmra.mxu0 %v561
    %v755 = vpop.f32.mrf.mxu0
    %v756 = vadd.f32 %v469, %v755
    %v757 = vpop.f32.mrf.mxu0
    %v758 = vadd.f32 %v471, %v757
    %759 = vdwg.mxu0
    %760 = vmatpush.bf16.msra.mxu0 %v697
    %761 = vmatpush.bf16.msra.mxu0 %v695
    %762 = vmatpush.bf16.msra.mxu0 %v693
    %763 = vmatpush.bf16.msra.mxu0 %v691
    %764 = vmatpush.bf16.msra.mxu0 %v689
    %765 = vmatpush.bf16.msra.mxu0 %v687
    %766 = vmatpush.bf16.msra.mxu0 %v685
    %767 = vmatpush.bf16.msra.mxu0 %v683
    %768 = vmatmul.bf16.gmra.mxu0 %v556
    %v769 = vpop.f32.mrf.mxu0
    %v770 = vadd.f32 %v741, %v769
    %v771 = vpop.f32.mrf.mxu0
    %v772 = vadd.f32 %v743, %v771
    %773 = vmatmul.bf16.gmra.mxu0 %v558
    %v774 = vpop.f32.mrf.mxu0
    %v775 = vadd.f32 %v746, %v774
    %v776 = vpop.f32.mrf.mxu0
    %v777 = vadd.f32 %v748, %v776
    %778 = vmatmul.bf16.gmra.mxu0 %v560
    %v779 = vpop.f32.mrf.mxu0
    %v780 = vadd.f32 %v751, %v779
    %v781 = vpop.f32.mrf.mxu0
    %v782 = vadd.f32 %v753, %v781
    %783 = vmatmul.bf16.gmra.mxu0 %v562
    %v784 = vpop.f32.mrf.mxu0
    %v785 = vadd.f32 %v756, %v784
    %v786 = vpop.f32.mrf.mxu0
    %v787 = vadd.f32 %v758, %v786
    %788 = vdwg.mxu0
    %789 = vmatpush.bf16.msra.mxu0 %v682
    %790 = vmatpush.bf16.msra.mxu0 %v680
    %791 = vmatpush.bf16.msra.mxu0 %v678
    %792 = vmatpush.bf16.msra.mxu0 %v676
    %793 = vmatpush.bf16.msra.mxu0 %v674
    %794 = vmatpush.bf16.msra.mxu0 %v672
    %795 = vmatpush.bf16.msra.mxu0 %v670
    %796 = vmatpush.bf16.msra.mxu0 %v668
    %797 = vmatmul.bf16.gmra.mxu0 %v555
    %v798 = vpop.f32.mrf.mxu0
    %v799 = vadd.f32 %v512, %v798
    %v800 = vpop.f32.mrf.mxu0
    %v801 = vadd.f32 %v514, %v800
    %802 = vmatmul.bf16.gmra.mxu0 %v557
    %v803 = vpop.f32.mrf.mxu0
    %v804 = vadd.f32 %v517, %v803
    %v805 = vpop.f32.mrf.mxu0
    %v806 = vadd.f32 %v519, %v805
    %807 = vmatmul.bf16.gmra.mxu0 %v559
    %v808 = vpop.f32.mrf.mxu0
    %v809 = vadd.f32 %v522, %v808
    %v810 = vpop.f32.mrf.mxu0
    %v811 = vadd.f32 %v524, %v810
    %812 = vmatmul.bf16.gmra.mxu0 %v561
    %v813 = vpop.f32.mrf.mxu0
    %v814 = vadd.f32 %v527, %v813
    %v815 = vpop.f32.mrf.mxu0
    %v816 = vadd.f32 %v529, %v815
    %817 = vdwg.mxu0
    %818 = vmatpush.bf16.msra.mxu0 %v698
    %819 = vmatpush.bf16.msra.mxu0 %v696
    %820 = vmatpush.bf16.msra.mxu0 %v694
    %821 = vmatpush.bf16.msra.mxu0 %v692
    %822 = vmatpush.bf16.msra.mxu0 %v690
    %823 = vmatpush.bf16.msra.mxu0 %v688
    %824 = vmatpush.bf16.msra.mxu0 %v686
    %825 = vmatpush.bf16.msra.mxu0 %v684
    %826 = vmatmul.bf16.gmra.mxu0 %v556
    %v827 = vpop.f32.mrf.mxu0
    %v828 = vadd.f32 %v799, %v827
    %v829 = vpop.f32.mrf.mxu0
    %v830 = vadd.f32 %v801, %v829
    %831 = vmatmul.bf16.gmra.mxu0 %v558
    %v832 = vpop.f32.mrf.mxu0
    %v833 = vadd.f32 %v804, %v832
    %v834 = vpop.f32.mrf.mxu0
    %v835 = vadd.f32 %v806, %v834
    %836 = vmatmul.bf16.gmra.mxu0 %v560
    %v837 = vpop.f32.mrf.mxu0
    %v838 = vadd.f32 %v809, %v837
    %v839 = vpop.f32.mrf.mxu0
    %v840 = vadd.f32 %v811, %v839
    %841 = vmatmul.bf16.gmra.mxu0 %v562
    %v842 = vpop.f32.mrf.mxu0
    %v843 = vadd.f32 %v814, %v842
    %v844 = vpop.f32.mrf.mxu0
    %v845 = vadd.f32 %v816, %v844
    %846 = vdwg.mxu0
    %v847 = vld [vmem:[#allocation11] sm:$0xff]
    %v848 = vld [vmem:[#allocation8] sm:$0xff]
    %v849 = vld [vmem:[#allocation8 + $0x8] sm:$0xff]
    %v850 = vld [vmem:[#allocation8 + $0x10] sm:$0xff]
    %v851 = vld [vmem:[#allocation8 + $0x18] sm:$0xff]
    %v852 = vld [vmem:[#allocation8 + $0x20] sm:$0xff]
    %v853 = vld [vmem:[#allocation8 + $0x28] sm:$0xff]
    %v854 = vld [vmem:[#allocation8 + $0x30] sm:$0xff]
    %v855 = vld [vmem:[#allocation8 + $0x38] sm:$0xff]
    %v856 = vld [vmem:[#allocation8 + $0x40] sm:$0xff]
    %v857 = vld [vmem:[#allocation8 + $0x48] sm:$0xff]
    %v858 = vld [vmem:[#allocation8 + $0x50] sm:$0xff]
    %v859 = vld [vmem:[#allocation8 + $0x58] sm:$0xff]
    %v860 = vld [vmem:[#allocation8 + $0x60] sm:$0xff]
    %v861 = vld [vmem:[#allocation8 + $0x68] sm:$0xff]
    %v862 = vld [vmem:[#allocation8 + $0x70] sm:$0xff]
    %v863 = vld [vmem:[#allocation8 + $0x78] sm:$0xff]
    %v864 = vld [vmem:[#allocation8 + $0x80] sm:$0xff]
    %v865 = vld [vmem:[#allocation8 + $0x88] sm:$0xff]
    %v866 = vld [vmem:[#allocation8 + $0x90] sm:$0xff]
    %v867 = vld [vmem:[#allocation8 + $0x98] sm:$0xff]
    %v868 = vld [vmem:[#allocation8 + $0xa0] sm:$0xff]
    %v869 = vld [vmem:[#allocation8 + $0xa8] sm:$0xff]
    %v870 = vld [vmem:[#allocation8 + $0xb0] sm:$0xff]
    %v871 = vld [vmem:[#allocation8 + $0xb8] sm:$0xff]
    %v872 = vld [vmem:[#allocation8 + $0xc0] sm:$0xff]
    %v873 = vld [vmem:[#allocation8 + $0xc8] sm:$0xff]
    %v874 = vld [vmem:[#allocation8 + $0xd0] sm:$0xff]
    %v875 = vld [vmem:[#allocation8 + $0xd8] sm:$0xff]
    %v876 = vld [vmem:[#allocation8 + $0xe0] sm:$0xff]
    %v877 = vld [vmem:[#allocation8 + $0xe8] sm:$0xff]
    %v878 = vld [vmem:[#allocation8 + $0xf0] sm:$0xff]
    %v879 = vld [vmem:[#allocation8 + $0xf8] sm:$0xff]
    %v881 = vperm.slane %v847, 0
    %v882 = vperm.slane %v847, 4
    %v885 = vperm.slane %v881, 0
    %v886 = vperm.slane %v882, 0
    %v919 = vunpack.c.l.b16 %v848
    %v920 = vunpack.c.h.b16 %v848
    %v921 = vunpack.c.l.b16 %v849
    %v922 = vunpack.c.h.b16 %v849
    %v923 = vunpack.c.l.b16 %v850
    %v924 = vunpack.c.h.b16 %v850
    %v925 = vunpack.c.l.b16 %v851
    %v926 = vunpack.c.h.b16 %v851
    %v927 = vunpack.c.l.b16 %v852
    %v928 = vunpack.c.h.b16 %v852
    %v929 = vunpack.c.l.b16 %v853
    %v930 = vunpack.c.h.b16 %v853
    %v931 = vunpack.c.l.b16 %v854
    %v932 = vunpack.c.h.b16 %v854
    %v933 = vunpack.c.l.b16 %v855
    %v934 = vunpack.c.h.b16 %v855
    %v935 = vunpack.c.l.b16 %v856
    %v936 = vunpack.c.h.b16 %v856
    %v937 = vunpack.c.l.b16 %v857
    %v938 = vunpack.c.h.b16 %v857
    %v939 = vunpack.c.l.b16 %v858
    %v940 = vunpack.c.h.b16 %v858
    %v941 = vunpack.c.l.b16 %v859
    %v942 = vunpack.c.h.b16 %v859
    %v943 = vunpack.c.l.b16 %v860
    %v944 = vunpack.c.h.b16 %v860
    %v945 = vunpack.c.l.b16 %v861
    %v946 = vunpack.c.h.b16 %v861
    %v947 = vunpack.c.l.b16 %v862
    %v948 = vunpack.c.h.b16 %v862
    %v949 = vunpack.c.l.b16 %v863
    %v950 = vunpack.c.h.b16 %v863
    %v951 = vunpack.c.l.b16 %v864
    %v952 = vunpack.c.h.b16 %v864
    %v953 = vunpack.c.l.b16 %v865
    %v954 = vunpack.c.h.b16 %v865
    %v955 = vunpack.c.l.b16 %v866
    %v956 = vunpack.c.h.b16 %v866
    %v957 = vunpack.c.l.b16 %v867
    %v958 = vunpack.c.h.b16 %v867
    %v959 = vunpack.c.l.b16 %v868
    %v960 = vunpack.c.h.b16 %v868
    %v961 = vunpack.c.l.b16 %v869
    %v962 = vunpack.c.h.b16 %v869
    %v963 = vunpack.c.l.b16 %v870
    %v964 = vunpack.c.h.b16 %v870
    %v965 = vunpack.c.l.b16 %v871
    %v966 = vunpack.c.h.b16 %v871
    %v967 = vunpack.c.l.b16 %v872
    %v968 = vunpack.c.h.b16 %v872
    %v969 = vunpack.c.l.b16 %v873
    %v970 = vunpack.c.h.b16 %v873
    %v971 = vunpack.c.l.b16 %v874
    %v972 = vunpack.c.h.b16 %v874
    %v973 = vunpack.c.l.b16 %v875
    %v974 = vunpack.c.h.b16 %v875
    %v975 = vunpack.c.l.b16 %v876
    %v976 = vunpack.c.h.b16 %v876
    %v977 = vunpack.c.l.b16 %v877
    %v978 = vunpack.c.h.b16 %v877
    %v979 = vunpack.c.l.b16 %v878
    %v980 = vunpack.c.h.b16 %v878
    %v981 = vunpack.c.l.b16 %v879
    %v982 = vunpack.c.h.b16 %v879
    %v983 = vpack.c.b16 %v921, %v919
    %v984 = vpack.c.b16 %v922, %v920
    %v985 = vpack.c.b16 %v925, %v923
    %v986 = vpack.c.b16 %v926, %v924
    %v987 = vpack.c.b16 %v929, %v927
    %v988 = vpack.c.b16 %v930, %v928
    %v989 = vpack.c.b16 %v933, %v931
    %v990 = vpack.c.b16 %v934, %v932
    %v991 = vpack.c.b16 %v937, %v935
    %v992 = vpack.c.b16 %v938, %v936
    %v993 = vpack.c.b16 %v941, %v939
    %v994 = vpack.c.b16 %v942, %v940
    %v995 = vpack.c.b16 %v945, %v943
    %v996 = vpack.c.b16 %v946, %v944
    %v997 = vpack.c.b16 %v949, %v947
    %v998 = vpack.c.b16 %v950, %v948
    %v999 = vpack.c.b16 %v953, %v951
    %v1000 = vpack.c.b16 %v954, %v952
    %v1001 = vpack.c.b16 %v957, %v955
    %v1002 = vpack.c.b16 %v958, %v956
    %v1003 = vpack.c.b16 %v961, %v959
    %v1004 = vpack.c.b16 %v962, %v960
    %v1005 = vpack.c.b16 %v965, %v963
    %v1006 = vpack.c.b16 %v966, %v964
    %v1007 = vpack.c.b16 %v969, %v967
    %v1008 = vpack.c.b16 %v970, %v968
    %v1009 = vpack.c.b16 %v973, %v971
    %v1010 = vpack.c.b16 %v974, %v972
    %v1011 = vpack.c.b16 %v977, %v975
    %v1012 = vpack.c.b16 %v978, %v976
    %v1013 = vpack.c.b16 %v981, %v979
    %v1014 = vpack.c.b16 %v982, %v980
    %1047 = vmatpush.bf16.msra.mxu0 %v997
    %1048 = vmatpush.bf16.msra.mxu0 %v995
    %1049 = vmatpush.bf16.msra.mxu0 %v993
    %1050 = vmatpush.bf16.msra.mxu0 %v991
    %1051 = vmatpush.bf16.msra.mxu0 %v989
    %1052 = vmatpush.bf16.msra.mxu0 %v987
    %1053 = vmatpush.bf16.msra.mxu0 %v985
    %1054 = vmatpush.bf16.msra.mxu0 %v983
    %1055 = vmatmul.bf16.gmra.mxu0 %v239
    %v1056 = vpop.f32.mrf.mxu0
    %v1057 = vadd.f32 %v885, %v1056
    %v1058 = vpop.f32.mrf.mxu0
    %v1059 = vadd.f32 %v885, %v1058
    %1060 = vmatmul.bf16.gmra.mxu0 %v241
    %v1061 = vpop.f32.mrf.mxu0
    %v1062 = vadd.f32 %v885, %v1061
    %v1063 = vpop.f32.mrf.mxu0
    %v1064 = vadd.f32 %v885, %v1063
    %1065 = vmatmul.bf16.gmra.mxu0 %v243
    %v1066 = vpop.f32.mrf.mxu0
    %v1067 = vadd.f32 %v885, %v1066
    %v1068 = vpop.f32.mrf.mxu0
    %v1069 = vadd.f32 %v885, %v1068
    %1070 = vmatmul.bf16.gmra.mxu0 %v245
    %v1071 = vpop.f32.mrf.mxu0
    %v1072 = vadd.f32 %v885, %v1071
    %v1073 = vpop.f32.mrf.mxu0
    %v1074 = vadd.f32 %v885, %v1073
    %1075 = vdwg.mxu0
    %1076 = vmatpush.bf16.msra.mxu0 %v1013
    %1077 = vmatpush.bf16.msra.mxu0 %v1011
    %1078 = vmatpush.bf16.msra.mxu0 %v1009
    %1079 = vmatpush.bf16.msra.mxu0 %v1007
    %1080 = vmatpush.bf16.msra.mxu0 %v1005
    %1081 = vmatpush.bf16.msra.mxu0 %v1003
    %1082 = vmatpush.bf16.msra.mxu0 %v1001
    %1083 = vmatpush.bf16.msra.mxu0 %v999
    %1084 = vmatmul.bf16.gmra.mxu0 %v240
    %v1085 = vpop.f32.mrf.mxu0
    %v1086 = vadd.f32 %v1057, %v1085
    %v1087 = vpop.f32.mrf.mxu0
    %v1088 = vadd.f32 %v1059, %v1087
    %1089 = vmatmul.bf16.gmra.mxu0 %v242
    %v1090 = vpop.f32.mrf.mxu0
    %v1091 = vadd.f32 %v1062, %v1090
    %v1092 = vpop.f32.mrf.mxu0
    %v1093 = vadd.f32 %v1064, %v1092
    %1094 = vmatmul.bf16.gmra.mxu0 %v244
    %v1095 = vpop.f32.mrf.mxu0
    %v1096 = vadd.f32 %v1067, %v1095
    %v1097 = vpop.f32.mrf.mxu0
    %v1098 = vadd.f32 %v1069, %v1097
    %1099 = vmatmul.bf16.gmra.mxu0 %v246
    %v1100 = vpop.f32.mrf.mxu0
    %v1101 = vadd.f32 %v1072, %v1100
    %v1102 = vpop.f32.mrf.mxu0
    %v1103 = vadd.f32 %v1074, %v1102
    %1104 = vdwg.mxu0
    %1105 = vmatpush.bf16.msra.mxu0 %v998
    %1106 = vmatpush.bf16.msra.mxu0 %v996
    %1107 = vmatpush.bf16.msra.mxu0 %v994
    %1108 = vmatpush.bf16.msra.mxu0 %v992
    %1109 = vmatpush.bf16.msra.mxu0 %v990
    %1110 = vmatpush.bf16.msra.mxu0 %v988
    %1111 = vmatpush.bf16.msra.mxu0 %v986
    %1112 = vmatpush.bf16.msra.mxu0 %v984
    %1113 = vmatmul.bf16.gmra.mxu0 %v239
    %v1114 = vpop.f32.mrf.mxu0
    %v1115 = vadd.f32 %v886, %v1114
    %v1116 = vpop.f32.mrf.mxu0
    %v1117 = vadd.f32 %v886, %v1116
    %1118 = vmatmul.bf16.gmra.mxu0 %v241
    %v1119 = vpop.f32.mrf.mxu0
    %v1120 = vadd.f32 %v886, %v1119
    %v1121 = vpop.f32.mrf.mxu0
    %v1122 = vadd.f32 %v886, %v1121
    %1123 = vmatmul.bf16.gmra.mxu0 %v243
    %v1124 = vpop.f32.mrf.mxu0
    %v1125 = vadd.f32 %v886, %v1124
    %v1126 = vpop.f32.mrf.mxu0
    %v1127 = vadd.f32 %v886, %v1126
    %1128 = vmatmul.bf16.gmra.mxu0 %v245
    %v1129 = vpop.f32.mrf.mxu0
    %v1130 = vadd.f32 %v886, %v1129
    %v1131 = vpop.f32.mrf.mxu0
    %v1132 = vadd.f32 %v886, %v1131
    %1133 = vdwg.mxu0
    %1134 = vmatpush.bf16.msra.mxu0 %v1014
    %1135 = vmatpush.bf16.msra.mxu0 %v1012
    %1136 = vmatpush.bf16.msra.mxu0 %v1010
    %1137 = vmatpush.bf16.msra.mxu0 %v1008
    %1138 = vmatpush.bf16.msra.mxu0 %v1006
    %1139 = vmatpush.bf16.msra.mxu0 %v1004
    %1140 = vmatpush.bf16.msra.mxu0 %v1002
    %1141 = vmatpush.bf16.msra.mxu0 %v1000
    %1142 = vmatmul.bf16.gmra.mxu0 %v240
    %v1143 = vpop.f32.mrf.mxu0
    %v1144 = vadd.f32 %v1115, %v1143
    %v1145 = vpop.f32.mrf.mxu0
    %v1146 = vadd.f32 %v1117, %v1145
    %1147 = vmatmul.bf16.gmra.mxu0 %v242
    %v1148 = vpop.f32.mrf.mxu0
    %v1149 = vadd.f32 %v1120, %v1148
    %v1150 = vpop.f32.mrf.mxu0
    %v1151 = vadd.f32 %v1122, %v1150
    %1152 = vmatmul.bf16.gmra.mxu0 %v244
    %v1153 = vpop.f32.mrf.mxu0
    %v1154 = vadd.f32 %v1125, %v1153
    %v1155 = vpop.f32.mrf.mxu0
    %v1156 = vadd.f32 %v1127, %v1155
    %1157 = vmatmul.bf16.gmra.mxu0 %v246
    %v1158 = vpop.f32.mrf.mxu0
    %v1159 = vadd.f32 %v1130, %v1158
    %v1160 = vpop.f32.mrf.mxu0
    %v1161 = vadd.f32 %v1132, %v1160
    %1162 = vdwg.mxu0
    %v1163 = vxor.u32 %v1086, 2147483648
    %v1164 = vxor.u32 %v1144, 2147483648
    %v1165 = vxor.u32 %v1088, 2147483648
    %v1166 = vxor.u32 %v1146, 2147483648
    %v1167 = vxor.u32 %v1091, 2147483648
    %v1168 = vxor.u32 %v1149, 2147483648
    %v1169 = vxor.u32 %v1093, 2147483648
    %v1170 = vxor.u32 %v1151, 2147483648
    %v1171 = vxor.u32 %v1096, 2147483648
    %v1172 = vxor.u32 %v1154, 2147483648
    %v1173 = vxor.u32 %v1098, 2147483648
    %v1174 = vxor.u32 %v1156, 2147483648
    %v1175 = vxor.u32 %v1101, 2147483648
    %v1176 = vxor.u32 %v1159, 2147483648
    %v1177 = vxor.u32 %v1103, 2147483648
    %v1178 = vxor.u32 %v1161, 2147483648
    %v1179 = vmul.f32 %v1163, 1.442695
    %v1180 = vpow.pop %v1179
    %v1181 = vmul.f32 %v1164, 1.442695
    %v1182 = vpow.pop %v1181
    %v1183 = vmul.f32 %v1165, 1.442695
    %v1184 = vpow.pop %v1183
    %v1185 = vmul.f32 %v1166, 1.442695
    %v1186 = vpow.pop %v1185
    %v1187 = vmul.f32 %v1167, 1.442695
    %v1188 = vpow.pop %v1187
    %v1189 = vmul.f32 %v1168, 1.442695
    %v1190 = vpow.pop %v1189
    %v1191 = vmul.f32 %v1169, 1.442695
    %v1192 = vpow.pop %v1191
    %v1193 = vmul.f32 %v1170, 1.442695
    %v1194 = vpow.pop %v1193
    %v1195 = vmul.f32 %v1171, 1.442695
    %v1196 = vpow.pop %v1195
    %v1197 = vmul.f32 %v1172, 1.442695
    %v1198 = vpow.pop %v1197
    %v1199 = vmul.f32 %v1173, 1.442695
    %v1200 = vpow.pop %v1199
    %v1201 = vmul.f32 %v1174, 1.442695
    %v1202 = vpow.pop %v1201
    %v1203 = vmul.f32 %v1175, 1.442695
    %v1204 = vpow.pop %v1203
    %v1205 = vmul.f32 %v1176, 1.442695
    %v1206 = vpow.pop %v1205
    %v1207 = vmul.f32 %v1177, 1.442695
    %v1208 = vpow.pop %v1207
    %v1209 = vmul.f32 %v1178, 1.442695
    %v1210 = vpow.pop %v1209
    %v1211 = vadd.f32 %v1180, 1.0
    %v1212 = vadd.f32 %v1182, 1.0
    %v1213 = vadd.f32 %v1184, 1.0
    %v1214 = vadd.f32 %v1186, 1.0
    %v1215 = vadd.f32 %v1188, 1.0
    %v1216 = vadd.f32 %v1190, 1.0
    %v1217 = vadd.f32 %v1192, 1.0
    %v1218 = vadd.f32 %v1194, 1.0
    %v1219 = vadd.f32 %v1196, 1.0
    %v1220 = vadd.f32 %v1198, 1.0
    %v1221 = vadd.f32 %v1200, 1.0
    %v1222 = vadd.f32 %v1202, 1.0
    %v1223 = vadd.f32 %v1204, 1.0
    %v1224 = vadd.f32 %v1206, 1.0
    %v1225 = vadd.f32 %v1208, 1.0
    %v1226 = vadd.f32 %v1210, 1.0
    %v1227 = vrcp.pop %v1211
    %v1228 = vmul.f32 %v1211, %v1227
    %v1229 = vsub.f32 1.0, %v1228
    %v1230 = vmul.f32 %v1227, %v1229
    %v1231 = vadd.f32 %v1227, %v1230
    %vm1232 = vweird.f32 %v1211
    %vm1233 = vweird.f32 %v1227
    %vm1234 = vmor %vm1232, %vm1233
    %v1235 = vsel %vm1234, %v1227, %v1231
    %v1236 = vand.u32 2147483647, %v1211
    %vm1237 = vcmp.eq.f32.partialorder %v1236, 8.507059e+37
    %v1238 = vand.u32 %v1211, 2147483648
    %v1239 = vor.u32 1.1754944e-38, %v1238
    %v1240 = vsel %vm1237, %v1239, %v1235
    %v1241 = vmul.f32 1.0, %v1240
    %v1242 = vrcp.pop %v1212
    %v1243 = vmul.f32 %v1212, %v1242
    %v1244 = vsub.f32 1.0, %v1243
    %v1245 = vmul.f32 %v1242, %v1244
    %v1246 = vadd.f32 %v1242, %v1245
    %vm1247 = vweird.f32 %v1212
    %vm1248 = vweird.f32 %v1242
    %vm1249 = vmor %vm1247, %vm1248
    %v1250 = vsel %vm1249, %v1242, %v1246
    %v1251 = vand.u32 2147483647, %v1212
    %vm1252 = vcmp.eq.f32.partialorder %v1251, 8.507059e+37
    %v1253 = vand.u32 %v1212, 2147483648
    %v1254 = vor.u32 1.1754944e-38, %v1253
    %v1255 = vsel %vm1252, %v1254, %v1250
    %v1256 = vmul.f32 1.0, %v1255
    %v1257 = vrcp.pop %v1213
    %v1258 = vmul.f32 %v1213, %v1257
    %v1259 = vsub.f32 1.0, %v1258
    %v1260 = vmul.f32 %v1257, %v1259
    %v1261 = vadd.f32 %v1257, %v1260
    %vm1262 = vweird.f32 %v1213
    %vm1263 = vweird.f32 %v1257
    %vm1264 = vmor %vm1262, %vm1263
    %v1265 = vsel %vm1264, %v1257, %v1261
    %v1266 = vand.u32 2147483647, %v1213
    %vm1267 = vcmp.eq.f32.partialorder %v1266, 8.507059e+37
    %v1268 = vand.u32 %v1213, 2147483648
    %v1269 = vor.u32 1.1754944e-38, %v1268
    %v1270 = vsel %vm1267, %v1269, %v1265
    %v1271 = vmul.f32 1.0, %v1270
    %v1272 = vrcp.pop %v1214
    %v1273 = vmul.f32 %v1214, %v1272
    %v1274 = vsub.f32 1.0, %v1273
    %v1275 = vmul.f32 %v1272, %v1274
    %v1276 = vadd.f32 %v1272, %v1275
    %vm1277 = vweird.f32 %v1214
    %vm1278 = vweird.f32 %v1272
    %vm1279 = vmor %vm1277, %vm1278
    %v1280 = vsel %vm1279, %v1272, %v1276
    %v1281 = vand.u32 2147483647, %v1214
    %vm1282 = vcmp.eq.f32.partialorder %v1281, 8.507059e+37
    %v1283 = vand.u32 %v1214, 2147483648
    %v1284 = vor.u32 1.1754944e-38, %v1283
    %v1285 = vsel %vm1282, %v1284, %v1280
    %v1286 = vmul.f32 1.0, %v1285
    %v1287 = vrcp.pop %v1215
    %v1288 = vmul.f32 %v1215, %v1287
    %v1289 = vsub.f32 1.0, %v1288
    %v1290 = vmul.f32 %v1287, %v1289
    %v1291 = vadd.f32 %v1287, %v1290
    %vm1292 = vweird.f32 %v1215
    %vm1293 = vweird.f32 %v1287
    %vm1294 = vmor %vm1292, %vm1293
    %v1295 = vsel %vm1294, %v1287, %v1291
    %v1296 = vand.u32 2147483647, %v1215
    %vm1297 = vcmp.eq.f32.partialorder %v1296, 8.507059e+37
    %v1298 = vand.u32 %v1215, 2147483648
    %v1299 = vor.u32 1.1754944e-38, %v1298
    %v1300 = vsel %vm1297, %v1299, %v1295
    %v1301 = vmul.f32 1.0, %v1300
    %v1302 = vrcp.pop %v1216
    %v1303 = vmul.f32 %v1216, %v1302
    %v1304 = vsub.f32 1.0, %v1303
    %v1305 = vmul.f32 %v1302, %v1304
    %v1306 = vadd.f32 %v1302, %v1305
    %vm1307 = vweird.f32 %v1216
    %vm1308 = vweird.f32 %v1302
    %vm1309 = vmor %vm1307, %vm1308
    %v1310 = vsel %vm1309, %v1302, %v1306
    %v1311 = vand.u32 2147483647, %v1216
    %vm1312 = vcmp.eq.f32.partialorder %v1311, 8.507059e+37
    %v1313 = vand.u32 %v1216, 2147483648
    %v1314 = vor.u32 1.1754944e-38, %v1313
    %v1315 = vsel %vm1312, %v1314, %v1310
    %v1316 = vmul.f32 1.0, %v1315
    %v1317 = vrcp.pop %v1217
    %v1318 = vmul.f32 %v1217, %v1317
    %v1319 = vsub.f32 1.0, %v1318
    %v1320 = vmul.f32 %v1317, %v1319
    %v1321 = vadd.f32 %v1317, %v1320
    %vm1322 = vweird.f32 %v1217
    %vm1323 = vweird.f32 %v1317
    %vm1324 = vmor %vm1322, %vm1323
    %v1325 = vsel %vm1324, %v1317, %v1321
    %v1326 = vand.u32 2147483647, %v1217
    %vm1327 = vcmp.eq.f32.partialorder %v1326, 8.507059e+37
    %v1328 = vand.u32 %v1217, 2147483648
    %v1329 = vor.u32 1.1754944e-38, %v1328
    %v1330 = vsel %vm1327, %v1329, %v1325
    %v1331 = vmul.f32 1.0, %v1330
    %v1332 = vrcp.pop %v1218
    %v1333 = vmul.f32 %v1218, %v1332
    %v1334 = vsub.f32 1.0, %v1333
    %v1335 = vmul.f32 %v1332, %v1334
    %v1336 = vadd.f32 %v1332, %v1335
    %vm1337 = vweird.f32 %v1218
    %vm1338 = vweird.f32 %v1332
    %vm1339 = vmor %vm1337, %vm1338
    %v1340 = vsel %vm1339, %v1332, %v1336
    %v1341 = vand.u32 2147483647, %v1218
    %vm1342 = vcmp.eq.f32.partialorder %v1341, 8.507059e+37
    %v1343 = vand.u32 %v1218, 2147483648
    %v1344 = vor.u32 1.1754944e-38, %v1343
    %v1345 = vsel %vm1342, %v1344, %v1340
    %v1346 = vmul.f32 1.0, %v1345
    %v1347 = vrcp.pop %v1219
    %v1348 = vmul.f32 %v1219, %v1347
    %v1349 = vsub.f32 1.0, %v1348
    %v1350 = vmul.f32 %v1347, %v1349
    %v1351 = vadd.f32 %v1347, %v1350
    %vm1352 = vweird.f32 %v1219
    %vm1353 = vweird.f32 %v1347
    %vm1354 = vmor %vm1352, %vm1353
    %v1355 = vsel %vm1354, %v1347, %v1351
    %v1356 = vand.u32 2147483647, %v1219
    %vm1357 = vcmp.eq.f32.partialorder %v1356, 8.507059e+37
    %v1358 = vand.u32 %v1219, 2147483648
    %v1359 = vor.u32 1.1754944e-38, %v1358
    %v1360 = vsel %vm1357, %v1359, %v1355
    %v1361 = vmul.f32 1.0, %v1360
    %v1362 = vrcp.pop %v1220
    %v1363 = vmul.f32 %v1220, %v1362
    %v1364 = vsub.f32 1.0, %v1363
    %v1365 = vmul.f32 %v1362, %v1364
    %v1366 = vadd.f32 %v1362, %v1365
    %vm1367 = vweird.f32 %v1220
    %vm1368 = vweird.f32 %v1362
    %vm1369 = vmor %vm1367, %vm1368
    %v1370 = vsel %vm1369, %v1362, %v1366
    %v1371 = vand.u32 2147483647, %v1220
    %vm1372 = vcmp.eq.f32.partialorder %v1371, 8.507059e+37
    %v1373 = vand.u32 %v1220, 2147483648
    %v1374 = vor.u32 1.1754944e-38, %v1373
    %v1375 = vsel %vm1372, %v1374, %v1370
    %v1376 = vmul.f32 1.0, %v1375
    %v1377 = vrcp.pop %v1221
    %v1378 = vmul.f32 %v1221, %v1377
    %v1379 = vsub.f32 1.0, %v1378
    %v1380 = vmul.f32 %v1377, %v1379
    %v1381 = vadd.f32 %v1377, %v1380
    %vm1382 = vweird.f32 %v1221
    %vm1383 = vweird.f32 %v1377
    %vm1384 = vmor %vm1382, %vm1383
    %v1385 = vsel %vm1384, %v1377, %v1381
    %v1386 = vand.u32 2147483647, %v1221
    %vm1387 = vcmp.eq.f32.partialorder %v1386, 8.507059e+37
    %v1388 = vand.u32 %v1221, 2147483648
    %v1389 = vor.u32 1.1754944e-38, %v1388
    %v1390 = vsel %vm1387, %v1389, %v1385
    %v1391 = vmul.f32 1.0, %v1390
    %v1392 = vrcp.pop %v1222
    %v1393 = vmul.f32 %v1222, %v1392
    %v1394 = vsub.f32 1.0, %v1393
    %v1395 = vmul.f32 %v1392, %v1394
    %v1396 = vadd.f32 %v1392, %v1395
    %vm1397 = vweird.f32 %v1222
    %vm1398 = vweird.f32 %v1392
    %vm1399 = vmor %vm1397, %vm1398
    %v1400 = vsel %vm1399, %v1392, %v1396
    %v1401 = vand.u32 2147483647, %v1222
    %vm1402 = vcmp.eq.f32.partialorder %v1401, 8.507059e+37
    %v1403 = vand.u32 %v1222, 2147483648
    %v1404 = vor.u32 1.1754944e-38, %v1403
    %v1405 = vsel %vm1402, %v1404, %v1400
    %v1406 = vmul.f32 1.0, %v1405
    %v1407 = vrcp.pop %v1223
    %v1408 = vmul.f32 %v1223, %v1407
    %v1409 = vsub.f32 1.0, %v1408
    %v1410 = vmul.f32 %v1407, %v1409
    %v1411 = vadd.f32 %v1407, %v1410
    %vm1412 = vweird.f32 %v1223
    %vm1413 = vweird.f32 %v1407
    %vm1414 = vmor %vm1412, %vm1413
    %v1415 = vsel %vm1414, %v1407, %v1411
    %v1416 = vand.u32 2147483647, %v1223
    %vm1417 = vcmp.eq.f32.partialorder %v1416, 8.507059e+37
    %v1418 = vand.u32 %v1223, 2147483648
    %v1419 = vor.u32 1.1754944e-38, %v1418
    %v1420 = vsel %vm1417, %v1419, %v1415
    %v1421 = vmul.f32 1.0, %v1420
    %v1422 = vrcp.pop %v1224
    %v1423 = vmul.f32 %v1224, %v1422
    %v1424 = vsub.f32 1.0, %v1423
    %v1425 = vmul.f32 %v1422, %v1424
    %v1426 = vadd.f32 %v1422, %v1425
    %vm1427 = vweird.f32 %v1224
    %vm1428 = vweird.f32 %v1422
    %vm1429 = vmor %vm1427, %vm1428
    %v1430 = vsel %vm1429, %v1422, %v1426
    %v1431 = vand.u32 2147483647, %v1224
    %vm1432 = vcmp.eq.f32.partialorder %v1431, 8.507059e+37
    %v1433 = vand.u32 %v1224, 2147483648
    %v1434 = vor.u32 1.1754944e-38, %v1433
    %v1435 = vsel %vm1432, %v1434, %v1430
    %v1436 = vmul.f32 1.0, %v1435
    %v1437 = vrcp.pop %v1225
    %v1438 = vmul.f32 %v1225, %v1437
    %v1439 = vsub.f32 1.0, %v1438
    %v1440 = vmul.f32 %v1437, %v1439
    %v1441 = vadd.f32 %v1437, %v1440
    %vm1442 = vweird.f32 %v1225
    %vm1443 = vweird.f32 %v1437
    %vm1444 = vmor %vm1442, %vm1443
    %v1445 = vsel %vm1444, %v1437, %v1441
    %v1446 = vand.u32 2147483647, %v1225
    %vm1447 = vcmp.eq.f32.partialorder %v1446, 8.507059e+37
    %v1448 = vand.u32 %v1225, 2147483648
    %v1449 = vor.u32 1.1754944e-38, %v1448
    %v1450 = vsel %vm1447, %v1449, %v1445
    %v1451 = vmul.f32 1.0, %v1450
    %v1452 = vrcp.pop %v1226
    %v1453 = vmul.f32 %v1226, %v1452
    %v1454 = vsub.f32 1.0, %v1453
    %v1455 = vmul.f32 %v1452, %v1454
    %v1456 = vadd.f32 %v1452, %v1455
    %vm1457 = vweird.f32 %v1226
    %vm1458 = vweird.f32 %v1452
    %vm1459 = vmor %vm1457, %vm1458
    %v1460 = vsel %vm1459, %v1452, %v1456
    %v1461 = vand.u32 2147483647, %v1226
    %vm1462 = vcmp.eq.f32.partialorder %v1461, 8.507059e+37
    %v1463 = vand.u32 %v1226, 2147483648
    %v1464 = vor.u32 1.1754944e-38, %v1463
    %v1465 = vsel %vm1462, %v1464, %v1460
    %v1466 = vmul.f32 1.0, %v1465
    %v1467 = vmul.f32 %v1086, %v1241
    %v1468 = vmul.f32 %v1144, %v1256
    %v1469 = vmul.f32 %v1088, %v1271
    %v1470 = vmul.f32 %v1146, %v1286
    %v1471 = vmul.f32 %v1091, %v1301
    %v1472 = vmul.f32 %v1149, %v1316
    %v1473 = vmul.f32 %v1093, %v1331
    %v1474 = vmul.f32 %v1151, %v1346
    %v1475 = vmul.f32 %v1096, %v1361
    %v1476 = vmul.f32 %v1154, %v1376
    %v1477 = vmul.f32 %v1098, %v1391
    %v1478 = vmul.f32 %v1156, %v1406
    %v1479 = vmul.f32 %v1101, %v1421
    %v1480 = vmul.f32 %v1159, %v1436
    %v1481 = vmul.f32 %v1103, %v1451
    %v1482 = vmul.f32 %v1161, %v1466
    %v1483 = vmul.f32 %v1467, %v135
    %v1484 = vmul.f32 %v1468, %v136
    %v1485 = vmul.f32 %v1469, %v137
    %v1486 = vmul.f32 %v1470, %v138
    %v1487 = vmul.f32 %v1471, %v139
    %v1488 = vmul.f32 %v1472, %v140
    %v1489 = vmul.f32 %v1473, %v141
    %v1490 = vmul.f32 %v1474, %v142
    %v1491 = vmul.f32 %v1475, %v143
    %v1492 = vmul.f32 %v1476, %v144
    %v1493 = vmul.f32 %v1477, %v145
    %v1494 = vmul.f32 %v1478, %v146
    %v1495 = vmul.f32 %v1479, %v147
    %v1496 = vmul.f32 %v1480, %v148
    %v1497 = vmul.f32 %v1481, %v149
    %v1498 = vmul.f32 %v1482, %v150
    %v1499 = vperm.slane %v847, 1
    %v1500 = vperm.slane %v847, 5
    %v1503 = vperm.slane %v1499, 1
    %v1504 = vperm.slane %v1500, 1
    %v1505 = vmul.f32 %v1483, %v1503
    %v1506 = vmul.f32 %v1484, %v1504
    %v1507 = vmul.f32 %v1485, %v1503
    %v1508 = vmul.f32 %v1486, %v1504
    %v1509 = vmul.f32 %v1487, %v1503
    %v1510 = vmul.f32 %v1488, %v1504
    %v1511 = vmul.f32 %v1489, %v1503
    %v1512 = vmul.f32 %v1490, %v1504
    %v1513 = vmul.f32 %v1491, %v1503
    %v1514 = vmul.f32 %v1492, %v1504
    %v1515 = vmul.f32 %v1493, %v1503
    %v1516 = vmul.f32 %v1494, %v1504
    %v1517 = vmul.f32 %v1495, %v1503
    %v1518 = vmul.f32 %v1496, %v1504
    %v1519 = vmul.f32 %v1497, %v1503
    %v1520 = vmul.f32 %v1498, %v1504
    %v1521 = vperm.slane %v847, 2
    %v1522 = vperm.slane %v847, 6
    %v1525 = vperm.slane %v1521, 2
    %v1526 = vperm.slane %v1522, 2
    %v1527 = vmul.f32 %v770, %v1525
    %v1528 = vmul.f32 %v828, %v1526
    %v1529 = vmul.f32 %v772, %v1525
    %v1530 = vmul.f32 %v830, %v1526
    %v1531 = vmul.f32 %v775, %v1525
    %v1532 = vmul.f32 %v833, %v1526
    %v1533 = vmul.f32 %v777, %v1525
    %v1534 = vmul.f32 %v835, %v1526
    %v1535 = vmul.f32 %v780, %v1525
    %v1536 = vmul.f32 %v838, %v1526
    %v1537 = vmul.f32 %v782, %v1525
    %v1538 = vmul.f32 %v840, %v1526
    %v1539 = vmul.f32 %v785, %v1525
    %v1540 = vmul.f32 %v843, %v1526
    %v1541 = vmul.f32 %v787, %v1525
    %v1542 = vmul.f32 %v845, %v1526
    %v1543 = vadd.f32 %v1505, %v1527
    %v1544 = vadd.f32 %v1506, %v1528
    %v1545 = vadd.f32 %v1507, %v1529
    %v1546 = vadd.f32 %v1508, %v1530
    %v1547 = vadd.f32 %v1509, %v1531
    %v1548 = vadd.f32 %v1510, %v1532
    %v1549 = vadd.f32 %v1511, %v1533
    %v1550 = vadd.f32 %v1512, %v1534
    %v1551 = vadd.f32 %v1513, %v1535
    %v1552 = vadd.f32 %v1514, %v1536
    %v1553 = vadd.f32 %v1515, %v1537
    %v1554 = vadd.f32 %v1516, %v1538
    %v1555 = vadd.f32 %v1517, %v1539
    %v1556 = vadd.f32 %v1518, %v1540
    %v1557 = vadd.f32 %v1519, %v1541
    %v1558 = vadd.f32 %v1520, %v1542
    %v1559 = vpack.c.bf16 %v1545, %v1543
    %v1560 = vpack.c.bf16 %v1546, %v1544
    %v1561 = vpack.c.bf16 %v1549, %v1547
    %v1562 = vpack.c.bf16 %v1550, %v1548
    %v1563 = vpack.c.bf16 %v1553, %v1551
    %v1564 = vpack.c.bf16 %v1554, %v1552
    %v1565 = vpack.c.bf16 %v1557, %v1555
    %v1566 = vpack.c.bf16 %v1558, %v1556
    %v1567 = vld [vmem:[#allocation10] sm:$0xff]
    %v1568 = vld [vmem:[#allocation10 + $0x8] sm:$0xff]
    %v1569 = vld [vmem:[#allocation10 + $0x10] sm:$0xff]
    %v1570 = vld [vmem:[#allocation10 + $0x18] sm:$0xff]
    %v1571 = vld [vmem:[#allocation10 + $0x20] sm:$0xff]
    %v1572 = vld [vmem:[#allocation10 + $0x28] sm:$0xff]
    %v1573 = vld [vmem:[#allocation10 + $0x30] sm:$0xff]
    %v1574 = vld [vmem:[#allocation10 + $0x38] sm:$0xff]
    %v1575 = vld [vmem:[#allocation10 + $0x40] sm:$0xff]
    %v1576 = vld [vmem:[#allocation10 + $0x48] sm:$0xff]
    %v1577 = vld [vmem:[#allocation10 + $0x50] sm:$0xff]
    %v1578 = vld [vmem:[#allocation10 + $0x58] sm:$0xff]
    %v1579 = vld [vmem:[#allocation10 + $0x60] sm:$0xff]
    %v1580 = vld [vmem:[#allocation10 + $0x68] sm:$0xff]
    %v1581 = vld [vmem:[#allocation10 + $0x70] sm:$0xff]
    %v1582 = vld [vmem:[#allocation10 + $0x78] sm:$0xff]
    %v1583 = vld [vmem:[#allocation10 + $0x80] sm:$0xff]
    %v1584 = vld [vmem:[#allocation10 + $0x88] sm:$0xff]
    %v1585 = vld [vmem:[#allocation10 + $0x90] sm:$0xff]
    %v1586 = vld [vmem:[#allocation10 + $0x98] sm:$0xff]
    %v1587 = vld [vmem:[#allocation10 + $0xa0] sm:$0xff]
    %v1588 = vld [vmem:[#allocation10 + $0xa8] sm:$0xff]
    %v1589 = vld [vmem:[#allocation10 + $0xb0] sm:$0xff]
    %v1590 = vld [vmem:[#allocation10 + $0xb8] sm:$0xff]
    %v1591 = vld [vmem:[#allocation10 + $0xc0] sm:$0xff]
    %v1592 = vld [vmem:[#allocation10 + $0xc8] sm:$0xff]
    %v1593 = vld [vmem:[#allocation10 + $0xd0] sm:$0xff]
    %v1594 = vld [vmem:[#allocation10 + $0xd8] sm:$0xff]
    %v1595 = vld [vmem:[#allocation10 + $0xe0] sm:$0xff]
    %v1596 = vld [vmem:[#allocation10 + $0xe8] sm:$0xff]
    %v1597 = vld [vmem:[#allocation10 + $0xf0] sm:$0xff]
    %v1598 = vld [vmem:[#allocation10 + $0xf8] sm:$0xff]
    %v1599 = vperm.slane %v847, 3
    %v1600 = vperm.slane %v847, 7
    %v1603 = vperm.slane %v1599, 3
    %v1604 = vperm.slane %v1600, 3
    %v1637 = vunpack.c.l.b16 %v1567
    %v1638 = vunpack.c.h.b16 %v1567
    %v1639 = vunpack.c.l.b16 %v1568
    %v1640 = vunpack.c.h.b16 %v1568
    %v1641 = vunpack.c.l.b16 %v1569
    %v1642 = vunpack.c.h.b16 %v1569
    %v1643 = vunpack.c.l.b16 %v1570
    %v1644 = vunpack.c.h.b16 %v1570
    %v1645 = vunpack.c.l.b16 %v1571
    %v1646 = vunpack.c.h.b16 %v1571
    %v1647 = vunpack.c.l.b16 %v1572
    %v1648 = vunpack.c.h.b16 %v1572
    %v1649 = vunpack.c.l.b16 %v1573
    %v1650 = vunpack.c.h.b16 %v1573
    %v1651 = vunpack.c.l.b16 %v1574
    %v1652 = vunpack.c.h.b16 %v1574
    %v1653 = vunpack.c.l.b16 %v1575
    %v1654 = vunpack.c.h.b16 %v1575
    %v1655 = vunpack.c.l.b16 %v1576
    %v1656 = vunpack.c.h.b16 %v1576
    %v1657 = vunpack.c.l.b16 %v1577
    %v1658 = vunpack.c.h.b16 %v1577
    %v1659 = vunpack.c.l.b16 %v1578
    %v1660 = vunpack.c.h.b16 %v1578
    %v1661 = vunpack.c.l.b16 %v1579
    %v1662 = vunpack.c.h.b16 %v1579
    %v1663 = vunpack.c.l.b16 %v1580
    %v1664 = vunpack.c.h.b16 %v1580
    %v1665 = vunpack.c.l.b16 %v1581
    %v1666 = vunpack.c.h.b16 %v1581
    %v1667 = vunpack.c.l.b16 %v1582
    %v1668 = vunpack.c.h.b16 %v1582
    %v1669 = vunpack.c.l.b16 %v1583
    %v1670 = vunpack.c.h.b16 %v1583
    %v1671 = vunpack.c.l.b16 %v1584
    %v1672 = vunpack.c.h.b16 %v1584
    %v1673 = vunpack.c.l.b16 %v1585
    %v1674 = vunpack.c.h.b16 %v1585
    %v1675 = vunpack.c.l.b16 %v1586
    %v1676 = vunpack.c.h.b16 %v1586
    %v1677 = vunpack.c.l.b16 %v1587
    %v1678 = vunpack.c.h.b16 %v1587
    %v1679 = vunpack.c.l.b16 %v1588
    %v1680 = vunpack.c.h.b16 %v1588
    %v1681 = vunpack.c.l.b16 %v1589
    %v1682 = vunpack.c.h.b16 %v1589
    %v1683 = vunpack.c.l.b16 %v1590
    %v1684 = vunpack.c.h.b16 %v1590
    %v1685 = vunpack.c.l.b16 %v1591
    %v1686 = vunpack.c.h.b16 %v1591
    %v1687 = vunpack.c.l.b16 %v1592
    %v1688 = vunpack.c.h.b16 %v1592
    %v1689 = vunpack.c.l.b16 %v1593
    %v1690 = vunpack.c.h.b16 %v1593
    %v1691 = vunpack.c.l.b16 %v1594
    %v1692 = vunpack.c.h.b16 %v1594
    %v1693 = vunpack.c.l.b16 %v1595
    %v1694 = vunpack.c.h.b16 %v1595
    %v1695 = vunpack.c.l.b16 %v1596
    %v1696 = vunpack.c.h.b16 %v1596
    %v1697 = vunpack.c.l.b16 %v1597
    %v1698 = vunpack.c.h.b16 %v1597
    %v1699 = vunpack.c.l.b16 %v1598
    %v1700 = vunpack.c.h.b16 %v1598
    %v1701 = vpack.c.b16 %v1639, %v1637
    %v1702 = vpack.c.b16 %v1640, %v1638
    %v1703 = vpack.c.b16 %v1643, %v1641
    %v1704 = vpack.c.b16 %v1644, %v1642
    %v1705 = vpack.c.b16 %v1647, %v1645
    %v1706 = vpack.c.b16 %v1648, %v1646
    %v1707 = vpack.c.b16 %v1651, %v1649
    %v1708 = vpack.c.b16 %v1652, %v1650
    %v1709 = vpack.c.b16 %v1655, %v1653
    %v1710 = vpack.c.b16 %v1656, %v1654
    %v1711 = vpack.c.b16 %v1659, %v1657
    %v1712 = vpack.c.b16 %v1660, %v1658
    %v1713 = vpack.c.b16 %v1663, %v1661
    %v1714 = vpack.c.b16 %v1664, %v1662
    %v1715 = vpack.c.b16 %v1667, %v1665
    %v1716 = vpack.c.b16 %v1668, %v1666
    %v1717 = vpack.c.b16 %v1671, %v1669
    %v1718 = vpack.c.b16 %v1672, %v1670
    %v1719 = vpack.c.b16 %v1675, %v1673
    %v1720 = vpack.c.b16 %v1676, %v1674
    %v1721 = vpack.c.b16 %v1679, %v1677
    %v1722 = vpack.c.b16 %v1680, %v1678
    %v1723 = vpack.c.b16 %v1683, %v1681
    %v1724 = vpack.c.b16 %v1684, %v1682
    %v1725 = vpack.c.b16 %v1687, %v1685
    %v1726 = vpack.c.b16 %v1688, %v1686
    %v1727 = vpack.c.b16 %v1691, %v1689
    %v1728 = vpack.c.b16 %v1692, %v1690
    %v1729 = vpack.c.b16 %v1695, %v1693
    %v1730 = vpack.c.b16 %v1696, %v1694
    %v1731 = vpack.c.b16 %v1699, %v1697
    %v1732 = vpack.c.b16 %v1700, %v1698
    %1765 = vmatpush.bf16.msra.mxu0 %v1715
    %1766 = vmatpush.bf16.msra.mxu0 %v1713
    %1767 = vmatpush.bf16.msra.mxu0 %v1711
    %1768 = vmatpush.bf16.msra.mxu0 %v1709
    %1769 = vmatpush.bf16.msra.mxu0 %v1707
    %1770 = vmatpush.bf16.msra.mxu0 %v1705
    %1771 = vmatpush.bf16.msra.mxu0 %v1703
    %1772 = vmatpush.bf16.msra.mxu0 %v1701
    %1773 = vmatmul.bf16.gmra.mxu0 %v1559
    %v1774 = vpop.f32.mrf.mxu0
    %v1775 = vadd.f32 %v1603, %v1774
    %v1776 = vpop.f32.mrf.mxu0
    %v1777 = vadd.f32 %v1603, %v1776
    %1778 = vmatmul.bf16.gmra.mxu0 %v1561
    %v1779 = vpop.f32.mrf.mxu0
    %v1780 = vadd.f32 %v1603, %v1779
    %v1781 = vpop.f32.mrf.mxu0
    %v1782 = vadd.f32 %v1603, %v1781
    %1783 = vmatmul.bf16.gmra.mxu0 %v1563
    %v1784 = vpop.f32.mrf.mxu0
    %v1785 = vadd.f32 %v1603, %v1784
    %v1786 = vpop.f32.mrf.mxu0
    %v1787 = vadd.f32 %v1603, %v1786
    %1788 = vmatmul.bf16.gmra.mxu0 %v1565
    %v1789 = vpop.f32.mrf.mxu0
    %v1790 = vadd.f32 %v1603, %v1789
    %v1791 = vpop.f32.mrf.mxu0
    %v1792 = vadd.f32 %v1603, %v1791
    %1793 = vdwg.mxu0
    %1794 = vmatpush.bf16.msra.mxu0 %v1731
    %1795 = vmatpush.bf16.msra.mxu0 %v1729
    %1796 = vmatpush.bf16.msra.mxu0 %v1727
    %1797 = vmatpush.bf16.msra.mxu0 %v1725
    %1798 = vmatpush.bf16.msra.mxu0 %v1723
    %1799 = vmatpush.bf16.msra.mxu0 %v1721
    %1800 = vmatpush.bf16.msra.mxu0 %v1719
    %1801 = vmatpush.bf16.msra.mxu0 %v1717
    %1802 = vmatmul.bf16.gmra.mxu0 %v1560
    %v1803 = vpop.f32.mrf.mxu0
    %v1804 = vadd.f32 %v1775, %v1803
    %v1805 = vpop.f32.mrf.mxu0
    %v1806 = vadd.f32 %v1777, %v1805
    %1807 = vmatmul.bf16.gmra.mxu0 %v1562
    %v1808 = vpop.f32.mrf.mxu0
    %v1809 = vadd.f32 %v1780, %v1808
    %v1810 = vpop.f32.mrf.mxu0
    %v1811 = vadd.f32 %v1782, %v1810
    %1812 = vmatmul.bf16.gmra.mxu0 %v1564
    %v1813 = vpop.f32.mrf.mxu0
    %v1814 = vadd.f32 %v1785, %v1813
    %v1815 = vpop.f32.mrf.mxu0
    %v1816 = vadd.f32 %v1787, %v1815
    %1817 = vmatmul.bf16.gmra.mxu0 %v1566
    %v1818 = vpop.f32.mrf.mxu0
    %v1819 = vadd.f32 %v1790, %v1818
    %v1820 = vpop.f32.mrf.mxu0
    %v1821 = vadd.f32 %v1792, %v1820
    %1822 = vdwg.mxu0
    %1823 = vmatpush.bf16.msra.mxu0 %v1716
    %1824 = vmatpush.bf16.msra.mxu0 %v1714
    %1825 = vmatpush.bf16.msra.mxu0 %v1712
    %1826 = vmatpush.bf16.msra.mxu0 %v1710
    %1827 = vmatpush.bf16.msra.mxu0 %v1708
    %1828 = vmatpush.bf16.msra.mxu0 %v1706
    %1829 = vmatpush.bf16.msra.mxu0 %v1704
    %1830 = vmatpush.bf16.msra.mxu0 %v1702
    %1831 = vmatmul.bf16.gmra.mxu0 %v1559
    %v1832 = vpop.f32.mrf.mxu0
    %v1833 = vadd.f32 %v1604, %v1832
    %v1834 = vpop.f32.mrf.mxu0
    %v1835 = vadd.f32 %v1604, %v1834
    %1836 = vmatmul.bf16.gmra.mxu0 %v1561
    %v1837 = vpop.f32.mrf.mxu0
    %v1838 = vadd.f32 %v1604, %v1837
    %v1839 = vpop.f32.mrf.mxu0
    %v1840 = vadd.f32 %v1604, %v1839
    %1841 = vmatmul.bf16.gmra.mxu0 %v1563
    %v1842 = vpop.f32.mrf.mxu0
    %v1843 = vadd.f32 %v1604, %v1842
    %v1844 = vpop.f32.mrf.mxu0
    %v1845 = vadd.f32 %v1604, %v1844
    %1846 = vmatmul.bf16.gmra.mxu0 %v1565
    %v1847 = vpop.f32.mrf.mxu0
    %v1848 = vadd.f32 %v1604, %v1847
    %v1849 = vpop.f32.mrf.mxu0
    %v1850 = vadd.f32 %v1604, %v1849
    %1851 = vdwg.mxu0
    %1852 = vmatpush.bf16.msra.mxu0 %v1732
    %1853 = vmatpush.bf16.msra.mxu0 %v1730
    %1854 = vmatpush.bf16.msra.mxu0 %v1728
    %1855 = vmatpush.bf16.msra.mxu0 %v1726
    %1856 = vmatpush.bf16.msra.mxu0 %v1724
    %1857 = vmatpush.bf16.msra.mxu0 %v1722
    %1858 = vmatpush.bf16.msra.mxu0 %v1720
    %1859 = vmatpush.bf16.msra.mxu0 %v1718
    %1860 = vmatmul.bf16.gmra.mxu0 %v1560
    %v1861 = vpop.f32.mrf.mxu0
    %v1862 = vadd.f32 %v1833, %v1861
    %v1863 = vpop.f32.mrf.mxu0
    %v1864 = vadd.f32 %v1835, %v1863
    %1865 = vmatmul.bf16.gmra.mxu0 %v1562
    %v1866 = vpop.f32.mrf.mxu0
    %v1867 = vadd.f32 %v1838, %v1866
    %v1868 = vpop.f32.mrf.mxu0
    %v1869 = vadd.f32 %v1840, %v1868
    %1870 = vmatmul.bf16.gmra.mxu0 %v1564
    %v1871 = vpop.f32.mrf.mxu0
    %v1872 = vadd.f32 %v1843, %v1871
    %v1873 = vpop.f32.mrf.mxu0
    %v1874 = vadd.f32 %v1845, %v1873
    %1875 = vmatmul.bf16.gmra.mxu0 %v1566
    %v1876 = vpop.f32.mrf.mxu0
    %v1877 = vadd.f32 %v1848, %v1876
    %v1878 = vpop.f32.mrf.mxu0
    %v1879 = vadd.f32 %v1850, %v1878
    %1880 = vdwg.mxu0
    %1881 = vst [vmem:[#allocation13] sm:$0xff] %v1804
    %1882 = vst [vmem:[#allocation13 + $0x8] sm:$0xff] %v1862
    %1883 = vst [vmem:[#allocation13 + $0x10] sm:$0xff] %v1806
    %1884 = vst [vmem:[#allocation13 + $0x18] sm:$0xff] %v1864
    %1885 = vst [vmem:[#allocation13 + $0x20] sm:$0xff] %v1809
    %1886 = vst [vmem:[#allocation13 + $0x28] sm:$0xff] %v1867
    %1887 = vst [vmem:[#allocation13 + $0x30] sm:$0xff] %v1811
    %1888 = vst [vmem:[#allocation13 + $0x38] sm:$0xff] %v1869
    %1889 = vst [vmem:[#allocation13 + $0x40] sm:$0xff] %v1814
    %1890 = vst [vmem:[#allocation13 + $0x48] sm:$0xff] %v1872
    %1891 = vst [vmem:[#allocation13 + $0x50] sm:$0xff] %v1816
    %1892 = vst [vmem:[#allocation13 + $0x58] sm:$0xff] %v1874
    %1893 = vst [vmem:[#allocation13 + $0x60] sm:$0xff] %v1819
    %1894 = vst [vmem:[#allocation13 + $0x68] sm:$0xff] %v1877
    %1895 = vst [vmem:[#allocation13 + $0x70] sm:$0xff] %v1821
    %1896 = vst [vmem:[#allocation13 + $0x78] sm:$0xff] %v1879
    %1897 = vst [vmem:[#allocation14] sm:$0xff] %v770
    %1898 = vst [vmem:[#allocation14 + $0x8] sm:$0xff] %v828
    %1899 = vst [vmem:[#allocation14 + $0x10] sm:$0xff] %v772
    %1900 = vst [vmem:[#allocation14 + $0x18] sm:$0xff] %v830
    %1901 = vst [vmem:[#allocation14 + $0x20] sm:$0xff] %v775
    %1902 = vst [vmem:[#allocation14 + $0x28] sm:$0xff] %v833
    %1903 = vst [vmem:[#allocation14 + $0x30] sm:$0xff] %v777
    %1904 = vst [vmem:[#allocation14 + $0x38] sm:$0xff] %v835
    %1905 = vst [vmem:[#allocation14 + $0x40] sm:$0xff] %v780
    %1906 = vst [vmem:[#allocation14 + $0x48] sm:$0xff] %v838
    %1907 = vst [vmem:[#allocation14 + $0x50] sm:$0xff] %v782
    %1908 = vst [vmem:[#allocation14 + $0x58] sm:$0xff] %v840
    %1909 = vst [vmem:[#allocation14 + $0x60] sm:$0xff] %v785
    %1910 = vst [vmem:[#allocation14 + $0x68] sm:$0xff] %v843
    %1911 = vst [vmem:[#allocation14 + $0x70] sm:$0xff] %v787
    %1912 = vst [vmem:[#allocation14 + $0x78] sm:$0xff] %v845
    // Predicated region
    $region50: #{tpu_custom_call.1} parent=1 // pred_check
      _
    $region51: #{tpu_custom_call.1} parent=1 // pred_check_branch
      %1914 = sbr.rel (0) target = $region53
    $region52: #{tpu_custom_call.1} parent=1 // pred_region
      %1916 = vsyncadd [#allocation4], 0
      %s1917 = sshll.u32 [#allocation13], 4
      %s1918 = int_to_ptr.vmem [resolvable:$true] %s1917
      %s1919 = sshll.u32 %s6, 4
      %s1920 = int_to_ptr.hbm [resolvable:$true] %s1919
      %1925 = dma.vmem_to_hbm [thread:$0]  %s1918, 2048, %s1920, [#allocation4], 256, 256, 16
    $region53: #{tpu_custom_call.1} parent=1 // pred_fallthru
      _
    // Predicated region
    $region54: #{tpu_custom_call.1} parent=1 // pred_check
      _
    $region55: #{tpu_custom_call.1} parent=1 // pred_check_branch
      %1927 = sbr.rel (0) target = $region57
    $region56: #{tpu_custom_call.1} parent=1 // pred_region
      %1929 = vsyncadd [#allocation15], 0
      %s1930 = sshll.u32 [#allocation14], 4
      %s1931 = int_to_ptr.vmem [resolvable:$true] %s1930
      %s1932 = sshll.u32 %s7, 4
      %s1933 = int_to_ptr.hbm [resolvable:$true] %s1932
      %1938 = dma.vmem_to_hbm [thread:$0]  %s1931, 2048, %s1933, [#allocation15], 256, 256, 16
    $region57: #{tpu_custom_call.1} parent=1 // pred_fallthru
      _
    // Predicated region
    $region58: #{tpu_custom_call.1} parent=1 // pred_check
      _
    $region59: #{tpu_custom_call.1} parent=1 // pred_check_branch
      %1940 = sbr.rel (0) target = $region61
    $region60: #{tpu_custom_call.1} parent=1 // pred_region
      %1942 = dma.done [#allocation4], 2048
    $region61: #{tpu_custom_call.1} parent=1 // pred_fallthru
      _
    // Predicated region
    $region62: #{tpu_custom_call.1} parent=1 // pred_check
      _
    $region63: #{tpu_custom_call.1} parent=1 // pred_check_branch
      %1944 = sbr.rel (0) target = $region65
    $region64: #{tpu_custom_call.1} parent=1 // pred_region
      %1946 = dma.done [#allocation15], 2048
    $region65: #{tpu_custom_call.1} parent=1 // pred_fallthru
      _
    %1947 = vsyncpa [#allocation3], 1
    %1948 = vsyncpa [#allocation6], 1
    %1949 = vsyncpa [#allocation9], 1
    %1950 = vsyncpa [#allocation12], 1
    %1951 = vsyncpa [#allocation4], 1
    %1952 = vsyncpa [#allocation15], 1

// kernel: tpu_custom_call.1
$region0: #{tpu_custom_call.1}
  #allocation0 [shape = 'u32[]', space=smem, size = 0x4, offset = 0x4, fixed_abs, tag = 'smem constant byte address 0x4 - core index']
  #allocation1 [shape = 'u32[72,128]{1,0:T(1,128)}', space=vmem, size = 0x9000, scoped, tag = 'internal scratch']
  %s0 = inlined_call_operand.hbm [shape: bf16[64,256], index: 0, kind: input, shape index: {}]
  %s1 = inlined_call_operand.hbm [shape: bf16[64,256], index: 1, kind: input, shape index: {}]
  %s2 = inlined_call_operand.hbm [shape: bf16[512,256], index: 2, kind: input, shape index: {}]
  %s3 = inlined_call_operand.hbm [shape: bf16[256,256], index: 3, kind: input, shape index: {}]
  %s4 = inlined_call_operand.hbm [shape: bf16[256,256], index: 4, kind: input, shape index: {}]
  %s5 = inlined_call_operand.hbm [shape: f32[4,256], index: 5, kind: input, shape index: {}]
  %s6 = inlined_call_operand.hbm [shape: f32[64,256], index: 6, kind: output, shape index: {0}]
  %s7 = inlined_call_operand.hbm [shape: f32[64,256], index: 7, kind: output, shape index: {1}]
  %8 = xla_tuple %s6, %s7
  %s9 = sld [smem:[#allocation0]]
  $region66: #{tpu_custom_call.1} parent=0
    _
  %s11 = ssub.s32 1, %s9
  %s12 = scalar_select 0, %s11, %s9
  $region1: #{tpu_custom_call.1} parent=0
    #allocation2 [shape = 'u8[32768]{0}', space=vmem, size = 0x8000, scoped, tag = 'input window, operand 0, single buffered']
    #allocation3 [shape = 's32[1]{0}', space=sflag, size = 0x4, scoped, tag = 'scoped memory for tpu_custom_call.1']
    #allocation4 [shape = 's32[1]{0}', space=sflag, size = 0x4, scoped, tag = 'scoped memory for tpu_custom_call.1']
    #allocation5 [shape = 'u8[32768]{0}', space=vmem, size = 0x8000, scoped, tag = 'input window, operand 1, single buffered']
    #allocation6 [shape = 's32[1]{0}', space=sflag, size = 0x4, scoped, tag = 'scoped memory for tpu_custom_call.1']
    #allocation7 [shape = 'u8[262144]{0}', space=vmem, size = 0x40000, scoped, tag = 'input window, operand 2, single buffered']
    #allocation8 [shape = 'u8[131072]{0}', space=vmem, size = 0x20000, scoped, tag = 'input window, operand 3, single buffered']
    #allocation9 [shape = 's32[1]{0}', space=sflag, size = 0x4, scoped, tag = 'scoped memory for tpu_custom_call.1']
    #allocation10 [shape = 'u8[131072]{0}', space=vmem, size = 0x20000, scoped, tag = 'input window, operand 4, single buffered']
    #allocation11 [shape = 'u8[4096]{0}', space=vmem, size = 0x1000, scoped, tag = 'input window, operand 5, single buffered']
    #allocation12 [shape = 's32[1]{0}', space=sflag, size = 0x4, scoped, tag = 'scoped memory for tpu_custom_call.1']
    #allocation13 [shape = 'u8[65536]{0}', space=vmem, size = 0x10000, scoped, tag = 'output window, operand 0, single buffered']
    #allocation14 [shape = 'u8[65536]{0}', space=vmem, size = 0x10000, scoped, tag = 'output window, operand 1, single buffered']
    #allocation15 [shape = 's32[1]{0}', space=sflag, size = 0x4, scoped, tag = 'scoped memory for tpu_custom_call.1']
    %13 = vsyncpa [#allocation3], 0
    %14 = vsyncpa [#allocation6], 0
    %15 = vsyncpa [#allocation9], 0
    %16 = vsyncpa [#allocation12], 0
    %17 = vsyncpa [#allocation4], 0
    %18 = vsyncpa [#allocation15], 0
    // Predicated region
    $region2: #{tpu_custom_call.1} parent=1 // pred_check
      _
    $region3: #{tpu_custom_call.1} parent=1 // pred_check_branch
      %20 = sbr.rel (0) target = $region5
    $region4: #{tpu_custom_call.1} parent=1 // pred_region
      %22 = vsyncadd [#allocation3], 0
      %s23 = sshll.u32 %s0, 4
      %s24 = int_to_ptr.hbm [resolvable:$true] %s23
      %s25 = sshll.u32 [#allocation2], 4
      %s26 = int_to_ptr.vmem [resolvable:$true] %s25
      %31 = dma.hbm_to_vmem [thread:$0]  %s24, 1024, %s26, [#allocation3], 128, 128, 8
    $region5: #{tpu_custom_call.1} parent=1 // pred_fallthru
      _
    // Predicated region
    $region6: #{tpu_custom_call.1} parent=1 // pred_check
      _
    $region7: #{tpu_custom_call.1} parent=1 // pred_check_branch
      %33 = sbr.rel (0) target = $region9
    $region8: #{tpu_custom_call.1} parent=1 // pred_region
      %35 = vsyncadd [#allocation6], 0
      %s36 = sshll.u32 %s1, 4
      %s37 = int_to_ptr.hbm [resolvable:$true] %s36
      %s38 = sshll.u32 [#allocation5], 4
      %s39 = int_to_ptr.vmem [resolvable:$true] %s38
      %44 = dma.hbm_to_vmem [thread:$0]  %s37, 1024, %s39, [#allocation6], 128, 128, 8
    $region9: #{tpu_custom_call.1} parent=1 // pred_fallthru
      _
    // Predicated region
    $region10: #{tpu_custom_call.1} parent=1 // pred_check
      _
    $region11: #{tpu_custom_call.1} parent=1 // pred_check_branch
      %46 = sbr.rel (0) target = $region13
    $region12: #{tpu_custom_call.1} parent=1 // pred_region
      %48 = vsyncadd [#allocation6], 0
      %s49 = sshll.u32 %s2, 4
      %s50 = int_to_ptr.hbm [resolvable:$true] %s49
      %s51 = sshll.u32 [#allocation7], 4
      %s52 = int_to_ptr.vmem [resolvable:$true] %s51
      %57 = dma.hbm_to_vmem [thread:$0]  %s50, 8192, %s52, [#allocation6], 128, 128, 8
    $region13: #{tpu_custom_call.1} parent=1 // pred_fallthru
      _
    // Predicated region
    $region14: #{tpu_custom_call.1} parent=1 // pred_check
      _
    $region15: #{tpu_custom_call.1} parent=1 // pred_check_branch
      %59 = sbr.rel (0) target = $region17
    $region16: #{tpu_custom_call.1} parent=1 // pred_region
      %61 = vsyncadd [#allocation9], 0
      %s62 = sshll.u32 %s3, 4
      %s63 = int_to_ptr.hbm [resolvable:$true] %s62
      %s64 = sshll.u32 [#allocation8], 4
      %s65 = int_to_ptr.vmem [resolvable:$true] %s64
      %70 = dma.hbm_to_vmem [thread:$0]  %s63, 4096, %s65, [#allocation9], 128, 128, 8
    $region17: #{tpu_custom_call.1} parent=1 // pred_fallthru
      _
    // Predicated region
    $region18: #{tpu_custom_call.1} parent=1 // pred_check
      _
    $region19: #{tpu_custom_call.1} parent=1 // pred_check_branch
      %72 = sbr.rel (0) target = $region21
    $region20: #{tpu_custom_call.1} parent=1 // pred_region
      %74 = vsyncadd [#allocation9], 0
      %s75 = sshll.u32 %s4, 4
      %s76 = int_to_ptr.hbm [resolvable:$true] %s75
      %s77 = sshll.u32 [#allocation10], 4
      %s78 = int_to_ptr.vmem [resolvable:$true] %s77
      %83 = dma.hbm_to_vmem [thread:$0]  %s76, 4096, %s78, [#allocation9], 128, 128, 8
    $region21: #{tpu_custom_call.1} parent=1 // pred_fallthru
      _
    // Predicated region
    $region22: #{tpu_custom_call.1} parent=1 // pred_check
      _
    $region23: #{tpu_custom_call.1} parent=1 // pred_check_branch
      %85 = sbr.rel (0) target = $region25
    $region24: #{tpu_custom_call.1} parent=1 // pred_region
      %87 = vsyncadd [#allocation12], 0
      %s89 = sshll.u32 %s5, 4
      %s90 = int_to_ptr.hbm [resolvable:$true] %s89
      %s91 = sshll.u32 [#allocation11], 4
      %s92 = int_to_ptr.vmem [resolvable:$true] %s91
      %94 = dma.hbm_to_vmem [thread:$0]  %s90, 128, %s92, [#allocation12]
    $region25: #{tpu_custom_call.1} parent=1 // pred_fallthru
      _
    // Predicated region
    $region26: #{tpu_custom_call.1} parent=1 // pred_check
      _
    $region27: #{tpu_custom_call.1} parent=1 // pred_check_branch
      %96 = sbr.rel (0) target = $region29
    $region28: #{tpu_custom_call.1} parent=1 // pred_region
      %98 = dma.done [#allocation3], 1024
    $region29: #{tpu_custom_call.1} parent=1 // pred_fallthru
      _
    // Predicated region
    $region30: #{tpu_custom_call.1} parent=1 // pred_check
      _
    $region31: #{tpu_custom_call.1} parent=1 // pred_check_branch
      %100 = sbr.rel (0) target = $region33
    $region32: #{tpu_custom_call.1} parent=1 // pred_region
      %102 = dma.done [#allocation6], 1024
    $region33: #{tpu_custom_call.1} parent=1 // pred_fallthru
      _
    // Predicated region
    $region34: #{tpu_custom_call.1} parent=1 // pred_check
      _
    $region35: #{tpu_custom_call.1} parent=1 // pred_check_branch
      %104 = sbr.rel (0) target = $region37
    $region36: #{tpu_custom_call.1} parent=1 // pred_region
      %106 = dma.done [#allocation6], 8192
    $region37: #{tpu_custom_call.1} parent=1 // pred_fallthru
      _
    // Predicated region
    $region38: #{tpu_custom_call.1} parent=1 // pred_check
      _
    $region39: #{tpu_custom_call.1} parent=1 // pred_check_branch
      %108 = sbr.rel (0) target = $region41
    $region40: #{tpu_custom_call.1} parent=1 // pred_region
      %110 = dma.done [#allocation9], 4096
    $region41: #{tpu_custom_call.1} parent=1 // pred_fallthru
      _
    // Predicated region
    $region42: #{tpu_custom_call.1} parent=1 // pred_check
      _
    $region43: #{tpu_custom_call.1} parent=1 // pred_check_branch
      %112 = sbr.rel (0) target = $region45
    $region44: #{tpu_custom_call.1} parent=1 // pred_region
      %114 = dma.done [#allocation9], 4096
    $region45: #{tpu_custom_call.1} parent=1 // pred_fallthru
      _
    // Predicated region
    $region46: #{tpu_custom_call.1} parent=1 // pred_check
      _
    $region47: #{tpu_custom_call.1} parent=1 // pred_check_branch
      %116 = sbr.rel (0) target = $region49
    $region48: #{tpu_custom_call.1} parent=1 // pred_region
      %118 = dma.done [#allocation12], 128
    $region49: #{tpu_custom_call.1} parent=1 // pred_fallthru
      _
    %v119 = vld [vmem:[#allocation2] sm:$0xff]
    %v120 = vld [vmem:[#allocation2 + $0x8] sm:$0xff]
    %v121 = vld [vmem:[#allocation2 + $0x10] sm:$0xff]
    %v122 = vld [vmem:[#allocation2 + $0x18] sm:$0xff]
    %v123 = vld [vmem:[#allocation2 + $0x20] sm:$0xff]
    %v124 = vld [vmem:[#allocation2 + $0x28] sm:$0xff]
    %v125 = vld [vmem:[#allocation2 + $0x30] sm:$0xff]
    %v126 = vld [vmem:[#allocation2 + $0x38] sm:$0xff]
    %v127 = vld [vmem:[#allocation5] sm:$0xff]
    %v128 = vld [vmem:[#allocation5 + $0x8] sm:$0xff]
    %v129 = vld [vmem:[#allocation5 + $0x10] sm:$0xff]
    %v130 = vld [vmem:[#allocation5 + $0x18] sm:$0xff]
    %v131 = vld [vmem:[#allocation5 + $0x20] sm:$0xff]
    %v132 = vld [vmem:[#allocation5 + $0x28] sm:$0xff]
    %v133 = vld [vmem:[#allocation5 + $0x30] sm:$0xff]
    %v134 = vld [vmem:[#allocation5 + $0x38] sm:$0xff]
    %v135 = vunpack.c.l.bf16 %v119
    %v136 = vunpack.c.h.bf16 %v119
    %v137 = vunpack.c.l.bf16 %v120
    %v138 = vunpack.c.h.bf16 %v120
    %v139 = vunpack.c.l.bf16 %v121
    %v140 = vunpack.c.h.bf16 %v121
    %v141 = vunpack.c.l.bf16 %v122
    %v142 = vunpack.c.h.bf16 %v122
    %v143 = vunpack.c.l.bf16 %v123
    %v144 = vunpack.c.h.bf16 %v123
    %v145 = vunpack.c.l.bf16 %v124
    %v146 = vunpack.c.h.bf16 %v124
    %v147 = vunpack.c.l.bf16 %v125
    %v148 = vunpack.c.h.bf16 %v125
    %v149 = vunpack.c.l.bf16 %v126
    %v150 = vunpack.c.h.bf16 %v126
    %v151 = vld [vmem:[#allocation7] sm:$0xff]
    %v152 = vld [vmem:[#allocation7 + $0x8] sm:$0xff]
    %v153 = vld [vmem:[#allocation7 + $0x10] sm:$0xff]
    %v154 = vld [vmem:[#allocation7 + $0x18] sm:$0xff]
    %v155 = vld [vmem:[#allocation7 + $0x20] sm:$0xff]
    %v156 = vld [vmem:[#allocation7 + $0x28] sm:$0xff]
    %v157 = vld [vmem:[#allocation7 + $0x30] sm:$0xff]
    %v158 = vld [vmem:[#allocation7 + $0x38] sm:$0xff]
    %v159 = vld [vmem:[#allocation7 + $0x40] sm:$0xff]
    %v160 = vld [vmem:[#allocation7 + $0x48] sm:$0xff]
    %v161 = vld [vmem:[#allocation7 + $0x50] sm:$0xff]
    %v162 = vld [vmem:[#allocation7 + $0x58] sm:$0xff]
    %v163 = vld [vmem:[#allocation7 + $0x60] sm:$0xff]
    %v164 = vld [vmem:[#allocation7 + $0x68] sm:$0xff]
    %v165 = vld [vmem:[#allocation7 + $0x70] sm:$0xff]
    %v166 = vld [vmem:[#allocation7 + $0x78] sm:$0xff]
    %v167 = vld [vmem:[#allocation7 + $0x80] sm:$0xff]
    %v168 = vld [vmem:[#allocation7 + $0x88] sm:$0xff]
    %v169 = vld [vmem:[#allocation7 + $0x90] sm:$0xff]
    %v170 = vld [vmem:[#allocation7 + $0x98] sm:$0xff]
    %v171 = vld [vmem:[#allocation7 + $0xa0] sm:$0xff]
    %v172 = vld [vmem:[#allocation7 + $0xa8] sm:$0xff]
    %v173 = vld [vmem:[#allocation7 + $0xb0] sm:$0xff]
    %v174 = vld [vmem:[#allocation7 + $0xb8] sm:$0xff]
    %v175 = vld [vmem:[#allocation7 + $0xc0] sm:$0xff]
    %v176 = vld [vmem:[#allocation7 + $0xc8] sm:$0xff]
    %v177 = vld [vmem:[#allocation7 + $0xd0] sm:$0xff]
    %v178 = vld [vmem:[#allocation7 + $0xd8] sm:$0xff]
    %v179 = vld [vmem:[#allocation7 + $0xe0] sm:$0xff]
    %v180 = vld [vmem:[#allocation7 + $0xe8] sm:$0xff]
    %v181 = vld [vmem:[#allocation7 + $0xf0] sm:$0xff]
    %v182 = vld [vmem:[#allocation7 + $0xf8] sm:$0xff]
    %v183 = vld [vmem:[#allocation7 + $0x100] sm:$0xff]
    %v184 = vld [vmem:[#allocation7 + $0x108] sm:$0xff]
    %v185 = vld [vmem:[#allocation7 + $0x110] sm:$0xff]
    %v186 = vld [vmem:[#allocation7 + $0x118] sm:$0xff]
    %v187 = vld [vmem:[#allocation7 + $0x120] sm:$0xff]
    %v188 = vld [vmem:[#allocation7 + $0x128] sm:$0xff]
    %v189 = vld [vmem:[#allocation7 + $0x130] sm:$0xff]
    %v190 = vld [vmem:[#allocation7 + $0x138] sm:$0xff]
    %v191 = vld [vmem:[#allocation7 + $0x140] sm:$0xff]
    %v192 = vld [vmem:[#allocation7 + $0x148] sm:$0xff]
    %v193 = vld [vmem:[#allocation7 + $0x150] sm:$0xff]
    %v194 = vld [vmem:[#allocation7 + $0x158] sm:$0xff]
    %v195 = vld [vmem:[#allocation7 + $0x160] sm:$0xff]
    %v196 = vld [vmem:[#allocation7 + $0x168] sm:$0xff]
    %v197 = vld [vmem:[#allocation7 + $0x170] sm:$0xff]
    %v198 = vld [vmem:[#allocation7 + $0x178] sm:$0xff]
    %v199 = vld [vmem:[#allocation7 + $0x180] sm:$0xff]
    %v200 = vld [vmem:[#allocation7 + $0x188] sm:$0xff]
    %v201 = vld [vmem:[#allocation7 + $0x190] sm:$0xff]
    %v202 = vld [vmem:[#allocation7 + $0x198] sm:$0xff]
    %v203 = vld [vmem:[#allocation7 + $0x1a0] sm:$0xff]
    %v204 = vld [vmem:[#allocation7 + $0x1a8] sm:$0xff]
    %v205 = vld [vmem:[#allocation7 + $0x1b0] sm:$0xff]
    %v206 = vld [vmem:[#allocation7 + $0x1b8] sm:$0xff]
    %v207 = vld [vmem:[#allocation7 + $0x1c0] sm:$0xff]
    %v208 = vld [vmem:[#allocation7 + $0x1c8] sm:$0xff]
    %v209 = vld [vmem:[#allocation7 + $0x1d0] sm:$0xff]
    %v210 = vld [vmem:[#allocation7 + $0x1d8] sm:$0xff]
    %v211 = vld [vmem:[#allocation7 + $0x1e0] sm:$0xff]
    %v212 = vld [vmem:[#allocation7 + $0x1e8] sm:$0xff]
    %v213 = vld [vmem:[#allocation7 + $0x1f0] sm:$0xff]
    %v214 = vld [vmem:[#allocation7 + $0x1f8] sm:$0xff]
    %v223 = vunpack.c.l.b16 %v119
    %v224 = vunpack.c.h.b16 %v119
    %v225 = vunpack.c.l.b16 %v120
    %v226 = vunpack.c.h.b16 %v120
    %v227 = vunpack.c.l.b16 %v121
    %v228 = vunpack.c.h.b16 %v121
    %v229 = vunpack.c.l.b16 %v122
    %v230 = vunpack.c.h.b16 %v122
    %v231 = vunpack.c.l.b16 %v123
    %v232 = vunpack.c.h.b16 %v123
    %v233 = vunpack.c.l.b16 %v124
    %v234 = vunpack.c.h.b16 %v124
    %v235 = vunpack.c.l.b16 %v125
    %v236 = vunpack.c.h.b16 %v125
    %v237 = vunpack.c.l.b16 %v126
    %v238 = vunpack.c.h.b16 %v126
    %v239 = vpack.c.b16 %v225, %v223
    %v240 = vpack.c.b16 %v226, %v224
    %v241 = vpack.c.b16 %v229, %v227
    %v242 = vpack.c.b16 %v230, %v228
    %v243 = vpack.c.b16 %v233, %v231
    %v244 = vpack.c.b16 %v234, %v232
    %v245 = vpack.c.b16 %v237, %v235
    %v246 = vpack.c.b16 %v238, %v236
    %v287 = vunpack.c.l.b16 %v183
    %v288 = vunpack.c.h.b16 %v183
    %v289 = vunpack.c.l.b16 %v184
    %v290 = vunpack.c.h.b16 %v184
    %v291 = vunpack.c.l.b16 %v185
    %v292 = vunpack.c.h.b16 %v185
    %v293 = vunpack.c.l.b16 %v186
    %v294 = vunpack.c.h.b16 %v186
    %v295 = vunpack.c.l.b16 %v187
    %v296 = vunpack.c.h.b16 %v187
    %v297 = vunpack.c.l.b16 %v188
    %v298 = vunpack.c.h.b16 %v188
    %v299 = vunpack.c.l.b16 %v189
    %v300 = vunpack.c.h.b16 %v189
    %v301 = vunpack.c.l.b16 %v190
    %v302 = vunpack.c.h.b16 %v190
    %v303 = vunpack.c.l.b16 %v191
    %v304 = vunpack.c.h.b16 %v191
    %v305 = vunpack.c.l.b16 %v192
    %v306 = vunpack.c.h.b16 %v192
    %v307 = vunpack.c.l.b16 %v193
    %v308 = vunpack.c.h.b16 %v193
    %v309 = vunpack.c.l.b16 %v194
    %v310 = vunpack.c.h.b16 %v194
    %v311 = vunpack.c.l.b16 %v195
    %v312 = vunpack.c.h.b16 %v195
    %v313 = vunpack.c.l.b16 %v196
    %v314 = vunpack.c.h.b16 %v196
    %v315 = vunpack.c.l.b16 %v197
    %v316 = vunpack.c.h.b16 %v197
    %v317 = vunpack.c.l.b16 %v198
    %v318 = vunpack.c.h.b16 %v198
    %v319 = vunpack.c.l.b16 %v199
    %v320 = vunpack.c.h.b16 %v199
    %v321 = vunpack.c.l.b16 %v200
    %v322 = vunpack.c.h.b16 %v200
    %v323 = vunpack.c.l.b16 %v201
    %v324 = vunpack.c.h.b16 %v201
    %v325 = vunpack.c.l.b16 %v202
    %v326 = vunpack.c.h.b16 %v202
    %v327 = vunpack.c.l.b16 %v203
    %v328 = vunpack.c.h.b16 %v203
    %v329 = vunpack.c.l.b16 %v204
    %v330 = vunpack.c.h.b16 %v204
    %v331 = vunpack.c.l.b16 %v205
    %v332 = vunpack.c.h.b16 %v205
    %v333 = vunpack.c.l.b16 %v206
    %v334 = vunpack.c.h.b16 %v206
    %v335 = vunpack.c.l.b16 %v207
    %v336 = vunpack.c.h.b16 %v207
    %v337 = vunpack.c.l.b16 %v208
    %v338 = vunpack.c.h.b16 %v208
    %v339 = vunpack.c.l.b16 %v209
    %v340 = vunpack.c.h.b16 %v209
    %v341 = vunpack.c.l.b16 %v210
    %v342 = vunpack.c.h.b16 %v210
    %v343 = vunpack.c.l.b16 %v211
    %v344 = vunpack.c.h.b16 %v211
    %v345 = vunpack.c.l.b16 %v212
    %v346 = vunpack.c.h.b16 %v212
    %v347 = vunpack.c.l.b16 %v213
    %v348 = vunpack.c.h.b16 %v213
    %v349 = vunpack.c.l.b16 %v214
    %v350 = vunpack.c.h.b16 %v214
    %v351 = vpack.c.b16 %v289, %v287
    %v352 = vpack.c.b16 %v290, %v288
    %v353 = vpack.c.b16 %v293, %v291
    %v354 = vpack.c.b16 %v294, %v292
    %v355 = vpack.c.b16 %v297, %v295
    %v356 = vpack.c.b16 %v298, %v296
    %v357 = vpack.c.b16 %v301, %v299
    %v358 = vpack.c.b16 %v302, %v300
    %v359 = vpack.c.b16 %v305, %v303
    %v360 = vpack.c.b16 %v306, %v304
    %v361 = vpack.c.b16 %v309, %v307
    %v362 = vpack.c.b16 %v310, %v308
    %v363 = vpack.c.b16 %v313, %v311
    %v364 = vpack.c.b16 %v314, %v312
    %v365 = vpack.c.b16 %v317, %v315
    %v366 = vpack.c.b16 %v318, %v316
    %v367 = vpack.c.b16 %v321, %v319
    %v368 = vpack.c.b16 %v322, %v320
    %v369 = vpack.c.b16 %v325, %v323
    %v370 = vpack.c.b16 %v326, %v324
    %v371 = vpack.c.b16 %v329, %v327
    %v372 = vpack.c.b16 %v330, %v328
    %v373 = vpack.c.b16 %v333, %v331
    %v374 = vpack.c.b16 %v334, %v332
    %v375 = vpack.c.b16 %v337, %v335
    %v376 = vpack.c.b16 %v338, %v336
    %v377 = vpack.c.b16 %v341, %v339
    %v378 = vpack.c.b16 %v342, %v340
    %v379 = vpack.c.b16 %v345, %v343
    %v380 = vpack.c.b16 %v346, %v344
    %v381 = vpack.c.b16 %v349, %v347
    %v382 = vpack.c.b16 %v350, %v348
    %415 = vmatpush.bf16.msra.mxu0 %v365
    %416 = vmatpush.bf16.msra.mxu0 %v363
    %417 = vmatpush.bf16.msra.mxu0 %v361
    %418 = vmatpush.bf16.msra.mxu0 %v359
    %419 = vmatpush.bf16.msra.mxu0 %v357
    %420 = vmatpush.bf16.msra.mxu0 %v355
    %421 = vmatpush.bf16.msra.mxu0 %v353
    %422 = vmatpush.bf16.msra.mxu0 %v351
    %423 = vmatmul.bf16.gmra.mxu0 %v239
    %v424 = vpop.f32.mrf.mxu0
    %v425 = vadd.f32 0.0, %v424
    %v426 = vpop.f32.mrf.mxu0
    %v427 = vadd.f32 0.0, %v426
    %428 = vmatmul.bf16.gmra.mxu0 %v241
    %v429 = vpop.f32.mrf.mxu0
    %v430 = vadd.f32 0.0, %v429
    %v431 = vpop.f32.mrf.mxu0
    %v432 = vadd.f32 0.0, %v431
    %433 = vmatmul.bf16.gmra.mxu0 %v243
    %v434 = vpop.f32.mrf.mxu0
    %v435 = vadd.f32 0.0, %v434
    %v436 = vpop.f32.mrf.mxu0
    %v437 = vadd.f32 0.0, %v436
    %438 = vmatmul.bf16.gmra.mxu0 %v245
    %v439 = vpop.f32.mrf.mxu0
    %v440 = vadd.f32 0.0, %v439
    %v441 = vpop.f32.mrf.mxu0
    %v442 = vadd.f32 0.0, %v441
    %443 = vdwg.mxu0
    %444 = vmatpush.bf16.msra.mxu0 %v381
    %445 = vmatpush.bf16.msra.mxu0 %v379
    %446 = vmatpush.bf16.msra.mxu0 %v377
    %447 = vmatpush.bf16.msra.mxu0 %v375
    %448 = vmatpush.bf16.msra.mxu0 %v373
    %449 = vmatpush.bf16.msra.mxu0 %v371
    %450 = vmatpush.bf16.msra.mxu0 %v369
    %451 = vmatpush.bf16.msra.mxu0 %v367
    %452 = vmatmul.bf16.gmra.mxu0 %v240
    %v453 = vpop.f32.mrf.mxu0
    %v454 = vadd.f32 %v425, %v453
    %v455 = vpop.f32.mrf.mxu0
    %v456 = vadd.f32 %v427, %v455
    %457 = vmatmul.bf16.gmra.mxu0 %v242
    %v458 = vpop.f32.mrf.mxu0
    %v459 = vadd.f32 %v430, %v458
    %v460 = vpop.f32.mrf.mxu0
    %v461 = vadd.f32 %v432, %v460
    %462 = vmatmul.bf16.gmra.mxu0 %v244
    %v463 = vpop.f32.mrf.mxu0
    %v464 = vadd.f32 %v435, %v463
    %v465 = vpop.f32.mrf.mxu0
    %v466 = vadd.f32 %v437, %v465
    %467 = vmatmul.bf16.gmra.mxu0 %v246
    %v468 = vpop.f32.mrf.mxu0
    %v469 = vadd.f32 %v440, %v468
    %v470 = vpop.f32.mrf.mxu0
    %v471 = vadd.f32 %v442, %v470
    %472 = vdwg.mxu0
    %473 = vmatpush.bf16.msra.mxu0 %v366
    %474 = vmatpush.bf16.msra.mxu0 %v364
    %475 = vmatpush.bf16.msra.mxu0 %v362
    %476 = vmatpush.bf16.msra.mxu0 %v360
    %477 = vmatpush.bf16.msra.mxu0 %v358
    %478 = vmatpush.bf16.msra.mxu0 %v356
    %479 = vmatpush.bf16.msra.mxu0 %v354
    %480 = vmatpush.bf16.msra.mxu0 %v352
    %481 = vmatmul.bf16.gmra.mxu0 %v239
    %v482 = vpop.f32.mrf.mxu0
    %v483 = vadd.f32 0.0, %v482
    %v484 = vpop.f32.mrf.mxu0
    %v485 = vadd.f32 0.0, %v484
    %486 = vmatmul.bf16.gmra.mxu0 %v241
    %v487 = vpop.f32.mrf.mxu0
    %v488 = vadd.f32 0.0, %v487
    %v489 = vpop.f32.mrf.mxu0
    %v490 = vadd.f32 0.0, %v489
    %491 = vmatmul.bf16.gmra.mxu0 %v243
    %v492 = vpop.f32.mrf.mxu0
    %v493 = vadd.f32 0.0, %v492
    %v494 = vpop.f32.mrf.mxu0
    %v495 = vadd.f32 0.0, %v494
    %496 = vmatmul.bf16.gmra.mxu0 %v245
    %v497 = vpop.f32.mrf.mxu0
    %v498 = vadd.f32 0.0, %v497
    %v499 = vpop.f32.mrf.mxu0
    %v500 = vadd.f32 0.0, %v499
    %501 = vdwg.mxu0
    %502 = vmatpush.bf16.msra.mxu0 %v382
    %503 = vmatpush.bf16.msra.mxu0 %v380
    %504 = vmatpush.bf16.msra.mxu0 %v378
    %505 = vmatpush.bf16.msra.mxu0 %v376
    %506 = vmatpush.bf16.msra.mxu0 %v374
    %507 = vmatpush.bf16.msra.mxu0 %v372
    %508 = vmatpush.bf16.msra.mxu0 %v370
    %509 = vmatpush.bf16.msra.mxu0 %v368
    %510 = vmatmul.bf16.gmra.mxu0 %v240
    %v511 = vpop.f32.mrf.mxu0
    %v512 = vadd.f32 %v483, %v511
    %v513 = vpop.f32.mrf.mxu0
    %v514 = vadd.f32 %v485, %v513
    %515 = vmatmul.bf16.gmra.mxu0 %v242
    %v516 = vpop.f32.mrf.mxu0
    %v517 = vadd.f32 %v488, %v516
    %v518 = vpop.f32.mrf.mxu0
    %v519 = vadd.f32 %v490, %v518
    %520 = vmatmul.bf16.gmra.mxu0 %v244
    %v521 = vpop.f32.mrf.mxu0
    %v522 = vadd.f32 %v493, %v521
    %v523 = vpop.f32.mrf.mxu0
    %v524 = vadd.f32 %v495, %v523
    %525 = vmatmul.bf16.gmra.mxu0 %v246
    %v526 = vpop.f32.mrf.mxu0
    %v527 = vadd.f32 %v498, %v526
    %v528 = vpop.f32.mrf.mxu0
    %v529 = vadd.f32 %v500, %v528
    %530 = vdwg.mxu0
    %v539 = vunpack.c.l.b16 %v127
    %v540 = vunpack.c.h.b16 %v127
    %v541 = vunpack.c.l.b16 %v128
    %v542 = vunpack.c.h.b16 %v128
    %v543 = vunpack.c.l.b16 %v129
    %v544 = vunpack.c.h.b16 %v129
    %v545 = vunpack.c.l.b16 %v130
    %v546 = vunpack.c.h.b16 %v130
    %v547 = vunpack.c.l.b16 %v131
    %v548 = vunpack.c.h.b16 %v131
    %v549 = vunpack.c.l.b16 %v132
    %v550 = vunpack.c.h.b16 %v132
    %v551 = vunpack.c.l.b16 %v133
    %v552 = vunpack.c.h.b16 %v133
    %v553 = vunpack.c.l.b16 %v134
    %v554 = vunpack.c.h.b16 %v134
    %v555 = vpack.c.b16 %v541, %v539
    %v556 = vpack.c.b16 %v542, %v540
    %v557 = vpack.c.b16 %v545, %v543
    %v558 = vpack.c.b16 %v546, %v544
    %v559 = vpack.c.b16 %v549, %v547
    %v560 = vpack.c.b16 %v550, %v548
    %v561 = vpack.c.b16 %v553, %v551
    %v562 = vpack.c.b16 %v554, %v552
    %v603 = vunpack.c.l.b16 %v151
    %v604 = vunpack.c.h.b16 %v151
    %v605 = vunpack.c.l.b16 %v152
    %v606 = vunpack.c.h.b16 %v152
    %v607 = vunpack.c.l.b16 %v153
    %v608 = vunpack.c.h.b16 %v153
    %v609 = vunpack.c.l.b16 %v154
    %v610 = vunpack.c.h.b16 %v154
    %v611 = vunpack.c.l.b16 %v155
    %v612 = vunpack.c.h.b16 %v155
    %v613 = vunpack.c.l.b16 %v156
    %v614 = vunpack.c.h.b16 %v156
    %v615 = vunpack.c.l.b16 %v157
    %v616 = vunpack.c.h.b16 %v157
    %v617 = vunpack.c.l.b16 %v158
    %v618 = vunpack.c.h.b16 %v158
    %v619 = vunpack.c.l.b16 %v159
    %v620 = vunpack.c.h.b16 %v159
    %v621 = vunpack.c.l.b16 %v160
    %v622 = vunpack.c.h.b16 %v160
    %v623 = vunpack.c.l.b16 %v161
    %v624 = vunpack.c.h.b16 %v161
    %v625 = vunpack.c.l.b16 %v162
    %v626 = vunpack.c.h.b16 %v162
    %v627 = vunpack.c.l.b16 %v163
    %v628 = vunpack.c.h.b16 %v163
    %v629 = vunpack.c.l.b16 %v164
    %v630 = vunpack.c.h.b16 %v164
    %v631 = vunpack.c.l.b16 %v165
    %v632 = vunpack.c.h.b16 %v165
    %v633 = vunpack.c.l.b16 %v166
    %v634 = vunpack.c.h.b16 %v166
    %v635 = vunpack.c.l.b16 %v167
    %v636 = vunpack.c.h.b16 %v167
    %v637 = vunpack.c.l.b16 %v168
    %v638 = vunpack.c.h.b16 %v168
    %v639 = vunpack.c.l.b16 %v169
    %v640 = vunpack.c.h.b16 %v169
    %v641 = vunpack.c.l.b16 %v170
    %v642 = vunpack.c.h.b16 %v170
    %v643 = vunpack.c.l.b16 %v171
    %v644 = vunpack.c.h.b16 %v171
    %v645 = vunpack.c.l.b16 %v172
    %v646 = vunpack.c.h.b16 %v172
    %v647 = vunpack.c.l.b16 %v173
    %v648 = vunpack.c.h.b16 %v173
    %v649 = vunpack.c.l.b16 %v174
    %v650 = vunpack.c.h.b16 %v174
    %v651 = vunpack.c.l.b16 %v175
    %v652 = vunpack.c.h.b16 %v175
    %v653 = vunpack.c.l.b16 %v176
    %v654 = vunpack.c.h.b16 %v176
    %v655 = vunpack.c.l.b16 %v177
    %v656 = vunpack.c.h.b16 %v177
    %v657 = vunpack.c.l.b16 %v178
    %v658 = vunpack.c.h.b16 %v178
    %v659 = vunpack.c.l.b16 %v179
    %v660 = vunpack.c.h.b16 %v179
    %v661 = vunpack.c.l.b16 %v180
    %v662 = vunpack.c.h.b16 %v180
    %v663 = vunpack.c.l.b16 %v181
    %v664 = vunpack.c.h.b16 %v181
    %v665 = vunpack.c.l.b16 %v182
    %v666 = vunpack.c.h.b16 %v182
    %v667 = vpack.c.b16 %v605, %v603
    %v668 = vpack.c.b16 %v606, %v604
    %v669 = vpack.c.b16 %v609, %v607
    %v670 = vpack.c.b16 %v610, %v608
    %v671 = vpack.c.b16 %v613, %v611
    %v672 = vpack.c.b16 %v614, %v612
    %v673 = vpack.c.b16 %v617, %v615
    %v674 = vpack.c.b16 %v618, %v616
    %v675 = vpack.c.b16 %v621, %v619
    %v676 = vpack.c.b16 %v622, %v620
    %v677 = vpack.c.b16 %v625, %v623
    %v678 = vpack.c.b16 %v626, %v624
    %v679 = vpack.c.b16 %v629, %v627
    %v680 = vpack.c.b16 %v630, %v628
    %v681 = vpack.c.b16 %v633, %v631
    %v682 = vpack.c.b16 %v634, %v632
    %v683 = vpack.c.b16 %v637, %v635
    %v684 = vpack.c.b16 %v638, %v636
    %v685 = vpack.c.b16 %v641, %v639
    %v686 = vpack.c.b16 %v642, %v640
    %v687 = vpack.c.b16 %v645, %v643
    %v688 = vpack.c.b16 %v646, %v644
    %v689 = vpack.c.b16 %v649, %v647
    %v690 = vpack.c.b16 %v650, %v648
    %v691 = vpack.c.b16 %v653, %v651
    %v692 = vpack.c.b16 %v654, %v652
    %v693 = vpack.c.b16 %v657, %v655
    %v694 = vpack.c.b16 %v658, %v656
    %v695 = vpack.c.b16 %v661, %v659
    %v696 = vpack.c.b16 %v662, %v660
    %v697 = vpack.c.b16 %v665, %v663
    %v698 = vpack.c.b16 %v666, %v664
    %731 = vmatpush.bf16.msra.mxu0 %v681
    %732 = vmatpush.bf16.msra.mxu0 %v679
    %733 = vmatpush.bf16.msra.mxu0 %v677
    %734 = vmatpush.bf16.msra.mxu0 %v675
    %735 = vmatpush.bf16.msra.mxu0 %v673
    %736 = vmatpush.bf16.msra.mxu0 %v671
    %737 = vmatpush.bf16.msra.mxu0 %v669
    %738 = vmatpush.bf16.msra.mxu0 %v667
    %739 = vmatmul.bf16.gmra.mxu0 %v555
    %v740 = vpop.f32.mrf.mxu0
    %v741 = vadd.f32 %v454, %v740
    %v742 = vpop.f32.mrf.mxu0
    %v743 = vadd.f32 %v456, %v742
    %744 = vmatmul.bf16.gmra.mxu0 %v557
    %v745 = vpop.f32.mrf.mxu0
    %v746 = vadd.f32 %v459, %v745
    %v747 = vpop.f32.mrf.mxu0
    %v748 = vadd.f32 %v461, %v747
    %749 = vmatmul.bf16.gmra.mxu0 %v559
    %v750 = vpop.f32.mrf.mxu0
    %v751 = vadd.f32 %v464, %v750
    %v752 = vpop.f32.mrf.mxu0
    %v753 = vadd.f32 %v466, %v752
    %754 = vmatmul.bf16.gmra.mxu0 %v561
    %v755 = vpop.f32.mrf.mxu0
    %v756 = vadd.f32 %v469, %v755
    %v757 = vpop.f32.mrf.mxu0
    %v758 = vadd.f32 %v471, %v757
    %759 = vdwg.mxu0
    %760 = vmatpush.bf16.msra.mxu0 %v697
    %761 = vmatpush.bf16.msra.mxu0 %v695
    %762 = vmatpush.bf16.msra.mxu0 %v693
    %763 = vmatpush.bf16.msra.mxu0 %v691
    %764 = vmatpush.bf16.msra.mxu0 %v689
    %765 = vmatpush.bf16.msra.mxu0 %v687
    %766 = vmatpush.bf16.msra.mxu0 %v685
    %767 = vmatpush.bf16.msra.mxu0 %v683
    %768 = vmatmul.bf16.gmra.mxu0 %v556
    %v769 = vpop.f32.mrf.mxu0
    %v770 = vadd.f32 %v741, %v769
    %v771 = vpop.f32.mrf.mxu0
    %v772 = vadd.f32 %v743, %v771
    %773 = vmatmul.bf16.gmra.mxu0 %v558
    %v774 = vpop.f32.mrf.mxu0
    %v775 = vadd.f32 %v746, %v774
    %v776 = vpop.f32.mrf.mxu0
    %v777 = vadd.f32 %v748, %v776
    %778 = vmatmul.bf16.gmra.mxu0 %v560
    %v779 = vpop.f32.mrf.mxu0
    %v780 = vadd.f32 %v751, %v779
    %v781 = vpop.f32.mrf.mxu0
    %v782 = vadd.f32 %v753, %v781
    %783 = vmatmul.bf16.gmra.mxu0 %v562
    %v784 = vpop.f32.mrf.mxu0
    %v785 = vadd.f32 %v756, %v784
    %v786 = vpop.f32.mrf.mxu0
    %v787 = vadd.f32 %v758, %v786
    %788 = vdwg.mxu0
    %789 = vmatpush.bf16.msra.mxu0 %v682
    %790 = vmatpush.bf16.msra.mxu0 %v680
    %791 = vmatpush.bf16.msra.mxu0 %v678
    %792 = vmatpush.bf16.msra.mxu0 %v676
    %793 = vmatpush.bf16.msra.mxu0 %v674
    %794 = vmatpush.bf16.msra.mxu0 %v672
    %795 = vmatpush.bf16.msra.mxu0 %v670
    %796 = vmatpush.bf16.msra.mxu0 %v668
    %797 = vmatmul.bf16.gmra.mxu0 %v555
    %v798 = vpop.f32.mrf.mxu0
    %v799 = vadd.f32 %v512, %v798
    %v800 = vpop.f32.mrf.mxu0
    %v801 = vadd.f32 %v514, %v800
    %802 = vmatmul.bf16.gmra.mxu0 %v557
    %v803 = vpop.f32.mrf.mxu0
    %v804 = vadd.f32 %v517, %v803
    %v805 = vpop.f32.mrf.mxu0
    %v806 = vadd.f32 %v519, %v805
    %807 = vmatmul.bf16.gmra.mxu0 %v559
    %v808 = vpop.f32.mrf.mxu0
    %v809 = vadd.f32 %v522, %v808
    %v810 = vpop.f32.mrf.mxu0
    %v811 = vadd.f32 %v524, %v810
    %812 = vmatmul.bf16.gmra.mxu0 %v561
    %v813 = vpop.f32.mrf.mxu0
    %v814 = vadd.f32 %v527, %v813
    %v815 = vpop.f32.mrf.mxu0
    %v816 = vadd.f32 %v529, %v815
    %817 = vdwg.mxu0
    %818 = vmatpush.bf16.msra.mxu0 %v698
    %819 = vmatpush.bf16.msra.mxu0 %v696
    %820 = vmatpush.bf16.msra.mxu0 %v694
    %821 = vmatpush.bf16.msra.mxu0 %v692
    %822 = vmatpush.bf16.msra.mxu0 %v690
    %823 = vmatpush.bf16.msra.mxu0 %v688
    %824 = vmatpush.bf16.msra.mxu0 %v686
    %825 = vmatpush.bf16.msra.mxu0 %v684
    %826 = vmatmul.bf16.gmra.mxu0 %v556
    %v827 = vpop.f32.mrf.mxu0
    %v828 = vadd.f32 %v799, %v827
    %v829 = vpop.f32.mrf.mxu0
    %v830 = vadd.f32 %v801, %v829
    %831 = vmatmul.bf16.gmra.mxu0 %v558
    %v832 = vpop.f32.mrf.mxu0
    %v833 = vadd.f32 %v804, %v832
    %v834 = vpop.f32.mrf.mxu0
    %v835 = vadd.f32 %v806, %v834
    %836 = vmatmul.bf16.gmra.mxu0 %v560
    %v837 = vpop.f32.mrf.mxu0
    %v838 = vadd.f32 %v809, %v837
    %v839 = vpop.f32.mrf.mxu0
    %v840 = vadd.f32 %v811, %v839
    %841 = vmatmul.bf16.gmra.mxu0 %v562
    %v842 = vpop.f32.mrf.mxu0
    %v843 = vadd.f32 %v814, %v842
    %v844 = vpop.f32.mrf.mxu0
    %v845 = vadd.f32 %v816, %v844
    %846 = vdwg.mxu0
    %v847 = vld [vmem:[#allocation11] sm:$0xff]
    %v848 = vld [vmem:[#allocation8] sm:$0xff]
    %v849 = vld [vmem:[#allocation8 + $0x8] sm:$0xff]
    %v850 = vld [vmem:[#allocation8 + $0x10] sm:$0xff]
    %v851 = vld [vmem:[#allocation8 + $0x18] sm:$0xff]
    %v852 = vld [vmem:[#allocation8 + $0x20] sm:$0xff]
    %v853 = vld [vmem:[#allocation8 + $0x28] sm:$0xff]
    %v854 = vld [vmem:[#allocation8 + $0x30] sm:$0xff]
    %v855 = vld [vmem:[#allocation8 + $0x38] sm:$0xff]
    %v856 = vld [vmem:[#allocation8 + $0x40] sm:$0xff]
    %v857 = vld [vmem:[#allocation8 + $0x48] sm:$0xff]
    %v858 = vld [vmem:[#allocation8 + $0x50] sm:$0xff]
    %v859 = vld [vmem:[#allocation8 + $0x58] sm:$0xff]
    %v860 = vld [vmem:[#allocation8 + $0x60] sm:$0xff]
    %v861 = vld [vmem:[#allocation8 + $0x68] sm:$0xff]
    %v862 = vld [vmem:[#allocation8 + $0x70] sm:$0xff]
    %v863 = vld [vmem:[#allocation8 + $0x78] sm:$0xff]
    %v864 = vld [vmem:[#allocation8 + $0x80] sm:$0xff]
    %v865 = vld [vmem:[#allocation8 + $0x88] sm:$0xff]
    %v866 = vld [vmem:[#allocation8 + $0x90] sm:$0xff]
    %v867 = vld [vmem:[#allocation8 + $0x98] sm:$0xff]
    %v868 = vld [vmem:[#allocation8 + $0xa0] sm:$0xff]
    %v869 = vld [vmem:[#allocation8 + $0xa8] sm:$0xff]
    %v870 = vld [vmem:[#allocation8 + $0xb0] sm:$0xff]
    %v871 = vld [vmem:[#allocation8 + $0xb8] sm:$0xff]
    %v872 = vld [vmem:[#allocation8 + $0xc0] sm:$0xff]
    %v873 = vld [vmem:[#allocation8 + $0xc8] sm:$0xff]
    %v874 = vld [vmem:[#allocation8 + $0xd0] sm:$0xff]
    %v875 = vld [vmem:[#allocation8 + $0xd8] sm:$0xff]
    %v876 = vld [vmem:[#allocation8 + $0xe0] sm:$0xff]
    %v877 = vld [vmem:[#allocation8 + $0xe8] sm:$0xff]
    %v878 = vld [vmem:[#allocation8 + $0xf0] sm:$0xff]
    %v879 = vld [vmem:[#allocation8 + $0xf8] sm:$0xff]
    %v881 = vperm.slane %v847, 0
    %v882 = vperm.slane %v847, 4
    %v885 = vperm.slane %v881, 0
    %v886 = vperm.slane %v882, 0
    %v919 = vunpack.c.l.b16 %v848
    %v920 = vunpack.c.h.b16 %v848
    %v921 = vunpack.c.l.b16 %v849
    %v922 = vunpack.c.h.b16 %v849
    %v923 = vunpack.c.l.b16 %v850
    %v924 = vunpack.c.h.b16 %v850
    %v925 = vunpack.c.l.b16 %v851
    %v926 = vunpack.c.h.b16 %v851
    %v927 = vunpack.c.l.b16 %v852
    %v928 = vunpack.c.h.b16 %v852
    %v929 = vunpack.c.l.b16 %v853
    %v930 = vunpack.c.h.b16 %v853
    %v931 = vunpack.c.l.b16 %v854
    %v932 = vunpack.c.h.b16 %v854
    %v933 = vunpack.c.l.b16 %v855
    %v934 = vunpack.c.h.b16 %v855
    %v935 = vunpack.c.l.b16 %v856
    %v936 = vunpack.c.h.b16 %v856
    %v937 = vunpack.c.l.b16 %v857
    %v938 = vunpack.c.h.b16 %v857
    %v939 = vunpack.c.l.b16 %v858
    %v940 = vunpack.c.h.b16 %v858
    %v941 = vunpack.c.l.b16 %v859
    %v942 = vunpack.c.h.b16 %v859
    %v943 = vunpack.c.l.b16 %v860
    %v944 = vunpack.c.h.b16 %v860
    %v945 = vunpack.c.l.b16 %v861
    %v946 = vunpack.c.h.b16 %v861
    %v947 = vunpack.c.l.b16 %v862
    %v948 = vunpack.c.h.b16 %v862
    %v949 = vunpack.c.l.b16 %v863
    %v950 = vunpack.c.h.b16 %v863
    %v951 = vunpack.c.l.b16 %v864
    %v952 = vunpack.c.h.b16 %v864
    %v953 = vunpack.c.l.b16 %v865
    %v954 = vunpack.c.h.b16 %v865
    %v955 = vunpack.c.l.b16 %v866
    %v956 = vunpack.c.h.b16 %v866
    %v957 = vunpack.c.l.b16 %v867
    %v958 = vunpack.c.h.b16 %v867
    %v959 = vunpack.c.l.b16 %v868
    %v960 = vunpack.c.h.b16 %v868
    %v961 = vunpack.c.l.b16 %v869
    %v962 = vunpack.c.h.b16 %v869
    %v963 = vunpack.c.l.b16 %v870
    %v964 = vunpack.c.h.b16 %v870
    %v965 = vunpack.c.l.b16 %v871
    %v966 = vunpack.c.h.b16 %v871
    %v967 = vunpack.c.l.b16 %v872
    %v968 = vunpack.c.h.b16 %v872
    %v969 = vunpack.c.l.b16 %v873
    %v970 = vunpack.c.h.b16 %v873
    %v971 = vunpack.c.l.b16 %v874
    %v972 = vunpack.c.h.b16 %v874
    %v973 = vunpack.c.l.b16 %v875
    %v974 = vunpack.c.h.b16 %v875
    %v975 = vunpack.c.l.b16 %v876
    %v976 = vunpack.c.h.b16 %v876
    %v977 = vunpack.c.l.b16 %v877
    %v978 = vunpack.c.h.b16 %v877
    %v979 = vunpack.c.l.b16 %v878
    %v980 = vunpack.c.h.b16 %v878
    %v981 = vunpack.c.l.b16 %v879
    %v982 = vunpack.c.h.b16 %v879
    %v983 = vpack.c.b16 %v921, %v919
    %v984 = vpack.c.b16 %v922, %v920
    %v985 = vpack.c.b16 %v925, %v923
    %v986 = vpack.c.b16 %v926, %v924
    %v987 = vpack.c.b16 %v929, %v927
    %v988 = vpack.c.b16 %v930, %v928
    %v989 = vpack.c.b16 %v933, %v931
    %v990 = vpack.c.b16 %v934, %v932
    %v991 = vpack.c.b16 %v937, %v935
    %v992 = vpack.c.b16 %v938, %v936
    %v993 = vpack.c.b16 %v941, %v939
    %v994 = vpack.c.b16 %v942, %v940
    %v995 = vpack.c.b16 %v945, %v943
    %v996 = vpack.c.b16 %v946, %v944
    %v997 = vpack.c.b16 %v949, %v947
    %v998 = vpack.c.b16 %v950, %v948
    %v999 = vpack.c.b16 %v953, %v951
    %v1000 = vpack.c.b16 %v954, %v952
    %v1001 = vpack.c.b16 %v957, %v955
    %v1002 = vpack.c.b16 %v958, %v956
    %v1003 = vpack.c.b16 %v961, %v959
    %v1004 = vpack.c.b16 %v962, %v960
    %v1005 = vpack.c.b16 %v965, %v963
    %v1006 = vpack.c.b16 %v966, %v964
    %v1007 = vpack.c.b16 %v969, %v967
    %v1008 = vpack.c.b16 %v970, %v968
    %v1009 = vpack.c.b16 %v973, %v971
    %v1010 = vpack.c.b16 %v974, %v972
    %v1011 = vpack.c.b16 %v977, %v975
    %v1012 = vpack.c.b16 %v978, %v976
    %v1013 = vpack.c.b16 %v981, %v979
    %v1014 = vpack.c.b16 %v982, %v980
    %1047 = vmatpush.bf16.msra.mxu0 %v997
    %1048 = vmatpush.bf16.msra.mxu0 %v995
    %1049 = vmatpush.bf16.msra.mxu0 %v993
    %1050 = vmatpush.bf16.msra.mxu0 %v991
    %1051 = vmatpush.bf16.msra.mxu0 %v989
    %1052 = vmatpush.bf16.msra.mxu0 %v987
    %1053 = vmatpush.bf16.msra.mxu0 %v985
    %1054 = vmatpush.bf16.msra.mxu0 %v983
    %1055 = vmatmul.bf16.gmra.mxu0 %v239
    %v1056 = vpop.f32.mrf.mxu0
    %v1057 = vadd.f32 %v885, %v1056
    %v1058 = vpop.f32.mrf.mxu0
    %v1059 = vadd.f32 %v885, %v1058
    %1060 = vmatmul.bf16.gmra.mxu0 %v241
    %v1061 = vpop.f32.mrf.mxu0
    %v1062 = vadd.f32 %v885, %v1061
    %v1063 = vpop.f32.mrf.mxu0
    %v1064 = vadd.f32 %v885, %v1063
    %1065 = vmatmul.bf16.gmra.mxu0 %v243
    %v1066 = vpop.f32.mrf.mxu0
    %v1067 = vadd.f32 %v885, %v1066
    %v1068 = vpop.f32.mrf.mxu0
    %v1069 = vadd.f32 %v885, %v1068
    %1070 = vmatmul.bf16.gmra.mxu0 %v245
    %v1071 = vpop.f32.mrf.mxu0
    %v1072 = vadd.f32 %v885, %v1071
    %v1073 = vpop.f32.mrf.mxu0
    %v1074 = vadd.f32 %v885, %v1073
    %1075 = vdwg.mxu0
    %1076 = vmatpush.bf16.msra.mxu0 %v1013
    %1077 = vmatpush.bf16.msra.mxu0 %v1011
    %1078 = vmatpush.bf16.msra.mxu0 %v1009
    %1079 = vmatpush.bf16.msra.mxu0 %v1007
    %1080 = vmatpush.bf16.msra.mxu0 %v1005
    %1081 = vmatpush.bf16.msra.mxu0 %v1003
    %1082 = vmatpush.bf16.msra.mxu0 %v1001
    %1083 = vmatpush.bf16.msra.mxu0 %v999
    %1084 = vmatmul.bf16.gmra.mxu0 %v240
    %v1085 = vpop.f32.mrf.mxu0
    %v1086 = vadd.f32 %v1057, %v1085
    %v1087 = vpop.f32.mrf.mxu0
    %v1088 = vadd.f32 %v1059, %v1087
    %1089 = vmatmul.bf16.gmra.mxu0 %v242
    %v1090 = vpop.f32.mrf.mxu0
    %v1091 = vadd.f32 %v1062, %v1090
    %v1092 = vpop.f32.mrf.mxu0
    %v1093 = vadd.f32 %v1064, %v1092
    %1094 = vmatmul.bf16.gmra.mxu0 %v244
    %v1095 = vpop.f32.mrf.mxu0
    %v1096 = vadd.f32 %v1067, %v1095
    %v1097 = vpop.f32.mrf.mxu0
    %v1098 = vadd.f32 %v1069, %v1097
    %1099 = vmatmul.bf16.gmra.mxu0 %v246
    %v1100 = vpop.f32.mrf.mxu0
    %v1101 = vadd.f32 %v1072, %v1100
    %v1102 = vpop.f32.mrf.mxu0
    %v1103 = vadd.f32 %v1074, %v1102
    %1104 = vdwg.mxu0
    %1105 = vmatpush.bf16.msra.mxu0 %v998
    %1106 = vmatpush.bf16.msra.mxu0 %v996
    %1107 = vmatpush.bf16.msra.mxu0 %v994
    %1108 = vmatpush.bf16.msra.mxu0 %v992
    %1109 = vmatpush.bf16.msra.mxu0 %v990
    %1110 = vmatpush.bf16.msra.mxu0 %v988
    %1111 = vmatpush.bf16.msra.mxu0 %v986
    %1112 = vmatpush.bf16.msra.mxu0 %v984
    %1113 = vmatmul.bf16.gmra.mxu0 %v239
    %v1114 = vpop.f32.mrf.mxu0
    %v1115 = vadd.f32 %v886, %v1114
    %v1116 = vpop.f32.mrf.mxu0
    %v1117 = vadd.f32 %v886, %v1116
    %1118 = vmatmul.bf16.gmra.mxu0 %v241
    %v1119 = vpop.f32.mrf.mxu0
    %v1120 = vadd.f32 %v886, %v1119
    %v1121 = vpop.f32.mrf.mxu0
    %v1122 = vadd.f32 %v886, %v1121
    %1123 = vmatmul.bf16.gmra.mxu0 %v243
    %v1124 = vpop.f32.mrf.mxu0
    %v1125 = vadd.f32 %v886, %v1124
    %v1126 = vpop.f32.mrf.mxu0
    %v1127 = vadd.f32 %v886, %v1126
    %1128 = vmatmul.bf16.gmra.mxu0 %v245
    %v1129 = vpop.f32.mrf.mxu0
    %v1130 = vadd.f32 %v886, %v1129
    %v1131 = vpop.f32.mrf.mxu0
    %v1132 = vadd.f32 %v886, %v1131
    %1133 = vdwg.mxu0
    %1134 = vmatpush.bf16.msra.mxu0 %v1014
    %1135 = vmatpush.bf16.msra.mxu0 %v1012
    %1136 = vmatpush.bf16.msra.mxu0 %v1010
    %1137 = vmatpush.bf16.msra.mxu0 %v1008
    %1138 = vmatpush.bf16.msra.mxu0 %v1006
    %1139 = vmatpush.bf16.msra.mxu0 %v1004
    %1140 = vmatpush.bf16.msra.mxu0 %v1002
    %1141 = vmatpush.bf16.msra.mxu0 %v1000
    %1142 = vmatmul.bf16.gmra.mxu0 %v240
    %v1143 = vpop.f32.mrf.mxu0
    %v1144 = vadd.f32 %v1115, %v1143
    %v1145 = vpop.f32.mrf.mxu0
    %v1146 = vadd.f32 %v1117, %v1145
    %1147 = vmatmul.bf16.gmra.mxu0 %v242
    %v1148 = vpop.f32.mrf.mxu0
    %v1149 = vadd.f32 %v1120, %v1148
    %v1150 = vpop.f32.mrf.mxu0
    %v1151 = vadd.f32 %v1122, %v1150
    %1152 = vmatmul.bf16.gmra.mxu0 %v244
    %v1153 = vpop.f32.mrf.mxu0
    %v1154 = vadd.f32 %v1125, %v1153
    %v1155 = vpop.f32.mrf.mxu0
    %v1156 = vadd.f32 %v1127, %v1155
    %1157 = vmatmul.bf16.gmra.mxu0 %v246
    %v1158 = vpop.f32.mrf.mxu0
    %v1159 = vadd.f32 %v1130, %v1158
    %v1160 = vpop.f32.mrf.mxu0
    %v1161 = vadd.f32 %v1132, %v1160
    %1162 = vdwg.mxu0
    %v1163 = vxor.u32 %v1086, 2147483648
    %v1164 = vxor.u32 %v1144, 2147483648
    %v1165 = vxor.u32 %v1088, 2147483648
    %v1166 = vxor.u32 %v1146, 2147483648
    %v1167 = vxor.u32 %v1091, 2147483648
    %v1168 = vxor.u32 %v1149, 2147483648
    %v1169 = vxor.u32 %v1093, 2147483648
    %v1170 = vxor.u32 %v1151, 2147483648
    %v1171 = vxor.u32 %v1096, 2147483648
    %v1172 = vxor.u32 %v1154, 2147483648
    %v1173 = vxor.u32 %v1098, 2147483648
    %v1174 = vxor.u32 %v1156, 2147483648
    %v1175 = vxor.u32 %v1101, 2147483648
    %v1176 = vxor.u32 %v1159, 2147483648
    %v1177 = vxor.u32 %v1103, 2147483648
    %v1178 = vxor.u32 %v1161, 2147483648
    %v1179 = vmul.f32 %v1163, 1.442695
    %v1180 = vpow.pop %v1179
    %v1181 = vmul.f32 %v1164, 1.442695
    %v1182 = vpow.pop %v1181
    %v1183 = vmul.f32 %v1165, 1.442695
    %v1184 = vpow.pop %v1183
    %v1185 = vmul.f32 %v1166, 1.442695
    %v1186 = vpow.pop %v1185
    %v1187 = vmul.f32 %v1167, 1.442695
    %v1188 = vpow.pop %v1187
    %v1189 = vmul.f32 %v1168, 1.442695
    %v1190 = vpow.pop %v1189
    %v1191 = vmul.f32 %v1169, 1.442695
    %v1192 = vpow.pop %v1191
    %v1193 = vmul.f32 %v1170, 1.442695
    %v1194 = vpow.pop %v1193
    %v1195 = vmul.f32 %v1171, 1.442695
    %v1196 = vpow.pop %v1195
    %v1197 = vmul.f32 %v1172, 1.442695
    %v1198 = vpow.pop %v1197
    %v1199 = vmul.f32 %v1173, 1.442695
    %v1200 = vpow.pop %v1199
    %v1201 = vmul.f32 %v1174, 1.442695
    %v1202 = vpow.pop %v1201
    %v1203 = vmul.f32 %v1175, 1.442695
    %v1204 = vpow.pop %v1203
    %v1205 = vmul.f32 %v1176, 1.442695
    %v1206 = vpow.pop %v1205
    %v1207 = vmul.f32 %v1177, 1.442695
    %v1208 = vpow.pop %v1207
    %v1209 = vmul.f32 %v1178, 1.442695
    %v1210 = vpow.pop %v1209
    %v1211 = vadd.f32 %v1180, 1.0
    %v1212 = vadd.f32 %v1182, 1.0
    %v1213 = vadd.f32 %v1184, 1.0
    %v1214 = vadd.f32 %v1186, 1.0
    %v1215 = vadd.f32 %v1188, 1.0
    %v1216 = vadd.f32 %v1190, 1.0
    %v1217 = vadd.f32 %v1192, 1.0
    %v1218 = vadd.f32 %v1194, 1.0
    %v1219 = vadd.f32 %v1196, 1.0
    %v1220 = vadd.f32 %v1198, 1.0
    %v1221 = vadd.f32 %v1200, 1.0
    %v1222 = vadd.f32 %v1202, 1.0
    %v1223 = vadd.f32 %v1204, 1.0
    %v1224 = vadd.f32 %v1206, 1.0
    %v1225 = vadd.f32 %v1208, 1.0
    %v1226 = vadd.f32 %v1210, 1.0
    %v1227 = vrcp.pop %v1211
    %v1228 = vmul.f32 %v1211, %v1227
    %v1229 = vsub.f32 1.0, %v1228
    %v1230 = vmul.f32 %v1227, %v1229
    %v1231 = vadd.f32 %v1227, %v1230
    %vm1232 = vweird.f32 %v1211
    %vm1233 = vweird.f32 %v1227
    %vm1234 = vmor %vm1232, %vm1233
    %v1235 = vsel %vm1234, %v1227, %v1231
    %v1236 = vand.u32 2147483647, %v1211
    %vm1237 = vcmp.eq.f32.partialorder %v1236, 8.507059e+37
    %v1238 = vand.u32 %v1211, 2147483648
    %v1239 = vor.u32 1.1754944e-38, %v1238
    %v1240 = vsel %vm1237, %v1239, %v1235
    %v1241 = vmul.f32 1.0, %v1240
    %v1242 = vrcp.pop %v1212
    %v1243 = vmul.f32 %v1212, %v1242
    %v1244 = vsub.f32 1.0, %v1243
    %v1245 = vmul.f32 %v1242, %v1244
    %v1246 = vadd.f32 %v1242, %v1245
    %vm1247 = vweird.f32 %v1212
    %vm1248 = vweird.f32 %v1242
    %vm1249 = vmor %vm1247, %vm1248
    %v1250 = vsel %vm1249, %v1242, %v1246
    %v1251 = vand.u32 2147483647, %v1212
    %vm1252 = vcmp.eq.f32.partialorder %v1251, 8.507059e+37
    %v1253 = vand.u32 %v1212, 2147483648
    %v1254 = vor.u32 1.1754944e-38, %v1253
    %v1255 = vsel %vm1252, %v1254, %v1250
    %v1256 = vmul.f32 1.0, %v1255
    %v1257 = vrcp.pop %v1213
    %v1258 = vmul.f32 %v1213, %v1257
    %v1259 = vsub.f32 1.0, %v1258
    %v1260 = vmul.f32 %v1257, %v1259
    %v1261 = vadd.f32 %v1257, %v1260
    %vm1262 = vweird.f32 %v1213
    %vm1263 = vweird.f32 %v1257
    %vm1264 = vmor %vm1262, %vm1263
    %v1265 = vsel %vm1264, %v1257, %v1261
    %v1266 = vand.u32 2147483647, %v1213
    %vm1267 = vcmp.eq.f32.partialorder %v1266, 8.507059e+37
    %v1268 = vand.u32 %v1213, 2147483648
    %v1269 = vor.u32 1.1754944e-38, %v1268
    %v1270 = vsel %vm1267, %v1269, %v1265
    %v1271 = vmul.f32 1.0, %v1270
    %v1272 = vrcp.pop %v1214
    %v1273 = vmul.f32 %v1214, %v1272
    %v1274 = vsub.f32 1.0, %v1273
    %v1275 = vmul.f32 %v1272, %v1274
    %v1276 = vadd.f32 %v1272, %v1275
    %vm1277 = vweird.f32 %v1214
    %vm1278 = vweird.f32 %v1272
    %vm1279 = vmor %vm1277, %vm1278
    %v1280 = vsel %vm1279, %v1272, %v1276
    %v1281 = vand.u32 2147483647, %v1214
    %vm1282 = vcmp.eq.f32.partialorder %v1281, 8.507059e+37
    %v1283 = vand.u32 %v1214, 2147483648
    %v1284 = vor.u32 1.1754944e-38, %v1283
    %v1285 = vsel %vm1282, %v1284, %v1280
    %v1286 = vmul.f32 1.0, %v1285
    %v1287 = vrcp.pop %v1215
    %v1288 = vmul.f32 %v1215, %v1287
    %v1289 = vsub.f32 1.0, %v1288
    %v1290 = vmul.f32 %v1287, %v1289
    %v1291 = vadd.f32 %v1287, %v1290
    %vm1292 = vweird.f32 %v1215
    %vm1293 = vweird.f32 %v1287
    %vm1294 = vmor %vm1292, %vm1293
    %v1295 = vsel %vm1294, %v1287, %v1291
    %v1296 = vand.u32 2147483647, %v1215
    %vm1297 = vcmp.eq.f32.partialorder %v1296, 8.507059e+37
    %v1298 = vand.u32 %v1215, 2147483648
    %v1299 = vor.u32 1.1754944e-38, %v1298
    %v1300 = vsel %vm1297, %v1299, %v1295
    %v1301 = vmul.f32 1.0, %v1300
    %v1302 = vrcp.pop %v1216
    %v1303 = vmul.f32 %v1216, %v1302
    %v1304 = vsub.f32 1.0, %v1303
    %v1305 = vmul.f32 %v1302, %v1304
    %v1306 = vadd.f32 %v1302, %v1305
    %vm1307 = vweird.f32 %v1216
    %vm1308 = vweird.f32 %v1302
    %vm1309 = vmor %vm1307, %vm1308
    %v1310 = vsel %vm1309, %v1302, %v1306
    %v1311 = vand.u32 2147483647, %v1216
    %vm1312 = vcmp.eq.f32.partialorder %v1311, 8.507059e+37
    %v1313 = vand.u32 %v1216, 2147483648
    %v1314 = vor.u32 1.1754944e-38, %v1313
    %v1315 = vsel %vm1312, %v1314, %v1310
    %v1316 = vmul.f32 1.0, %v1315
    %v1317 = vrcp.pop %v1217
    %v1318 = vmul.f32 %v1217, %v1317
    %v1319 = vsub.f32 1.0, %v1318
    %v1320 = vmul.f32 %v1317, %v1319
    %v1321 = vadd.f32 %v1317, %v1320
    %vm1322 = vweird.f32 %v1217
    %vm1323 = vweird.f32 %v1317
    %vm1324 = vmor %vm1322, %vm1323
    %v1325 = vsel %vm1324, %v1317, %v1321
    %v1326 = vand.u32 2147483647, %v1217
    %vm1327 = vcmp.eq.f32.partialorder %v1326, 8.507059e+37
    %v1328 = vand.u32 %v1217, 2147483648
    %v1329 = vor.u32 1.1754944e-38, %v1328
    %v1330 = vsel %vm1327, %v1329, %v1325
    %v1331 = vmul.f32 1.0, %v1330
    %v1332 = vrcp.pop %v1218
    %v1333 = vmul.f32 %v1218, %v1332
    %v1334 = vsub.f32 1.0, %v1333
    %v1335 = vmul.f32 %v1332, %v1334
    %v1336 = vadd.f32 %v1332, %v1335
    %vm1337 = vweird.f32 %v1218
    %vm1338 = vweird.f32 %v1332
    %vm1339 = vmor %vm1337, %vm1338
    %v1340 = vsel %vm1339, %v1332, %v1336
    %v1341 = vand.u32 2147483647, %v1218
    %vm1342 = vcmp.eq.f32.partialorder %v1341, 8.507059e+37
    %v1343 = vand.u32 %v1218, 2147483648
    %v1344 = vor.u32 1.1754944e-38, %v1343
    %v1345 = vsel %vm1342, %v1344, %v1340
    %v1346 = vmul.f32 1.0, %v1345
    %v1347 = vrcp.pop %v1219
    %v1348 = vmul.f32 %v1219, %v1347
    %v1349 = vsub.f32 1.0, %v1348
    %v1350 = vmul.f32 %v1347, %v1349
    %v1351 = vadd.f32 %v1347, %v1350
    %vm1352 = vweird.f32 %v1219
    %vm1353 = vweird.f32 %v1347
    %vm1354 = vmor %vm1352, %vm1353
    %v1355 = vsel %vm1354, %v1347, %v1351
    %v1356 = vand.u32 2147483647, %v1219
    %vm1357 = vcmp.eq.f32.partialorder %v1356, 8.507059e+37
    %v1358 = vand.u32 %v1219, 2147483648
    %v1359 = vor.u32 1.1754944e-38, %v1358
    %v1360 = vsel %vm1357, %v1359, %v1355
    %v1361 = vmul.f32 1.0, %v1360
    %v1362 = vrcp.pop %v1220
    %v1363 = vmul.f32 %v1220, %v1362
    %v1364 = vsub.f32 1.0, %v1363
    %v1365 = vmul.f32 %v1362, %v1364
    %v1366 = vadd.f32 %v1362, %v1365
    %vm1367 = vweird.f32 %v1220
    %vm1368 = vweird.f32 %v1362
    %vm1369 = vmor %vm1367, %vm1368
    %v1370 = vsel %vm1369, %v1362, %v1366
    %v1371 = vand.u32 2147483647, %v1220
    %vm1372 = vcmp.eq.f32.partialorder %v1371, 8.507059e+37
    %v1373 = vand.u32 %v1220, 2147483648
    %v1374 = vor.u32 1.1754944e-38, %v1373
    %v1375 = vsel %vm1372, %v1374, %v1370
    %v1376 = vmul.f32 1.0, %v1375
    %v1377 = vrcp.pop %v1221
    %v1378 = vmul.f32 %v1221, %v1377
    %v1379 = vsub.f32 1.0, %v1378
    %v1380 = vmul.f32 %v1377, %v1379
    %v1381 = vadd.f32 %v1377, %v1380
    %vm1382 = vweird.f32 %v1221
    %vm1383 = vweird.f32 %v1377
    %vm1384 = vmor %vm1382, %vm1383
    %v1385 = vsel %vm1384, %v1377, %v1381
    %v1386 = vand.u32 2147483647, %v1221
    %vm1387 = vcmp.eq.f32.partialorder %v1386, 8.507059e+37
    %v1388 = vand.u32 %v1221, 2147483648
    %v1389 = vor.u32 1.1754944e-38, %v1388
    %v1390 = vsel %vm1387, %v1389, %v1385
    %v1391 = vmul.f32 1.0, %v1390
    %v1392 = vrcp.pop %v1222
    %v1393 = vmul.f32 %v1222, %v1392
    %v1394 = vsub.f32 1.0, %v1393
    %v1395 = vmul.f32 %v1392, %v1394
    %v1396 = vadd.f32 %v1392, %v1395
    %vm1397 = vweird.f32 %v1222
    %vm1398 = vweird.f32 %v1392
    %vm1399 = vmor %vm1397, %vm1398
    %v1400 = vsel %vm1399, %v1392, %v1396
    %v1401 = vand.u32 2147483647, %v1222
    %vm1402 = vcmp.eq.f32.partialorder %v1401, 8.507059e+37
    %v1403 = vand.u32 %v1222, 2147483648
    %v1404 = vor.u32 1.1754944e-38, %v1403
    %v1405 = vsel %vm1402, %v1404, %v1400
    %v1406 = vmul.f32 1.0, %v1405
    %v1407 = vrcp.pop %v1223
    %v1408 = vmul.f32 %v1223, %v1407
    %v1409 = vsub.f32 1.0, %v1408
    %v1410 = vmul.f32 %v1407, %v1409
    %v1411 = vadd.f32 %v1407, %v1410
    %vm1412 = vweird.f32 %v1223
    %vm1413 = vweird.f32 %v1407
    %vm1414 = vmor %vm1412, %vm1413
    %v1415 = vsel %vm1414, %v1407, %v1411
    %v1416 = vand.u32 2147483647, %v1223
    %vm1417 = vcmp.eq.f32.partialorder %v1416, 8.507059e+37
    %v1418 = vand.u32 %v1223, 2147483648
    %v1419 = vor.u32 1.1754944e-38, %v1418
    %v1420 = vsel %vm1417, %v1419, %v1415
    %v1421 = vmul.f32 1.0, %v1420
    %v1422 = vrcp.pop %v1224
    %v1423 = vmul.f32 %v1224, %v1422
    %v1424 = vsub.f32 1.0, %v1423
    %v1425 = vmul.f32 %v1422, %v1424
    %v1426 = vadd.f32 %v1422, %v1425
    %vm1427 = vweird.f32 %v1224
    %vm1428 = vweird.f32 %v1422
    %vm1429 = vmor %vm1427, %vm1428
    %v1430 = vsel %vm1429, %v1422, %v1426
    %v1431 = vand.u32 2147483647, %v1224
    %vm1432 = vcmp.eq.f32.partialorder %v1431, 8.507059e+37
    %v1433 = vand.u32 %v1224, 2147483648
    %v1434 = vor.u32 1.1754944e-38, %v1433
    %v1435 = vsel %vm1432, %v1434, %v1430
    %v1436 = vmul.f32 1.0, %v1435
    %v1437 = vrcp.pop %v1225
    %v1438 = vmul.f32 %v1225, %v1437
    %v1439 = vsub.f32 1.0, %v1438
    %v1440 = vmul.f32 %v1437, %v1439
    %v1441 = vadd.f32 %v1437, %v1440
    %vm1442 = vweird.f32 %v1225
    %vm1443 = vweird.f32 %v1437
    %vm1444 = vmor %vm1442, %vm1443
    %v1445 = vsel %vm1444, %v1437, %v1441
    %v1446 = vand.u32 2147483647, %v1225
    %vm1447 = vcmp.eq.f32.partialorder %v1446, 8.507059e+37
    %v1448 = vand.u32 %v1225, 2147483648
    %v1449 = vor.u32 1.1754944e-38, %v1448
    %v1450 = vsel %vm1447, %v1449, %v1445
    %v1451 = vmul.f32 1.0, %v1450
    %v1452 = vrcp.pop %v1226
    %v1453 = vmul.f32 %v1226, %v1452
    %v1454 = vsub.f32 1.0, %v1453
    %v1455 = vmul.f32 %v1452, %v1454
    %v1456 = vadd.f32 %v1452, %v1455
    %vm1457 = vweird.f32 %v1226
    %vm1458 = vweird.f32 %v1452
    %vm1459 = vmor %vm1457, %vm1458
    %v1460 = vsel %vm1459, %v1452, %v1456
    %v1461 = vand.u32 2147483647, %v1226
    %vm1462 = vcmp.eq.f32.partialorder %v1461, 8.507059e+37
    %v1463 = vand.u32 %v1226, 2147483648
    %v1464 = vor.u32 1.1754944e-38, %v1463
    %v1465 = vsel %vm1462, %v1464, %v1460
    %v1466 = vmul.f32 1.0, %v1465
    %v1467 = vmul.f32 %v1086, %v1241
    %v1468 = vmul.f32 %v1144, %v1256
    %v1469 = vmul.f32 %v1088, %v1271
    %v1470 = vmul.f32 %v1146, %v1286
    %v1471 = vmul.f32 %v1091, %v1301
    %v1472 = vmul.f32 %v1149, %v1316
    %v1473 = vmul.f32 %v1093, %v1331
    %v1474 = vmul.f32 %v1151, %v1346
    %v1475 = vmul.f32 %v1096, %v1361
    %v1476 = vmul.f32 %v1154, %v1376
    %v1477 = vmul.f32 %v1098, %v1391
    %v1478 = vmul.f32 %v1156, %v1406
    %v1479 = vmul.f32 %v1101, %v1421
    %v1480 = vmul.f32 %v1159, %v1436
    %v1481 = vmul.f32 %v1103, %v1451
    %v1482 = vmul.f32 %v1161, %v1466
    %v1483 = vmul.f32 %v1467, %v135
    %v1484 = vmul.f32 %v1468, %v136
    %v1485 = vmul.f32 %v1469, %v137
    %v1486 = vmul.f32 %v1470, %v138
    %v1487 = vmul.f32 %v1471, %v139
    %v1488 = vmul.f32 %v1472, %v140
    %v1489 = vmul.f32 %v1473, %v141
    %v1490 = vmul.f32 %v1474, %v142
    %v1491 = vmul.f32 %v1475, %v143
    %v1492 = vmul.f32 %v1476, %v144
    %v1493 = vmul.f32 %v1477, %v145
    %v1494 = vmul.f32 %v1478, %v146
    %v1495 = vmul.f32 %v1479, %v147
    %v1496 = vmul.f32 %v1480, %v148
    %v1497 = vmul.f32 %v1481, %v149
    %v1498 = vmul.f32 %v1482, %v150
    %v1499 = vperm.slane %v847, 1
    %v1500 = vperm.slane %v847, 5
    %v1503 = vperm.slane %v1499, 1
    %v1504 = vperm.slane %v1500, 1
    %v1505 = vmul.f32 %v1483, %v1503
    %v1506 = vmul.f32 %v1484, %v1504
    %v1507 = vmul.f32 %v1485, %v1503
    %v1508 = vmul.f32 %v1486, %v1504
    %v1509 = vmul.f32 %v1487, %v1503
    %v1510 = vmul.f32 %v1488, %v1504
    %v1511 = vmul.f32 %v1489, %v1503
    %v1512 = vmul.f32 %v1490, %v1504
    %v1513 = vmul.f32 %v1491, %v1503
    %v1514 = vmul.f32 %v1492, %v1504
    %v1515 = vmul.f32 %v1493, %v1503
    %v1516 = vmul.f32 %v1494, %v1504
    %v1517 = vmul.f32 %v1495, %v1503
    %v1518 = vmul.f32 %v1496, %v1504
    %v1519 = vmul.f32 %v1497, %v1503
    %v1520 = vmul.f32 %v1498, %v1504
    %v1521 = vperm.slane %v847, 2
    %v1522 = vperm.slane %v847, 6
    %v1525 = vperm.slane %v1521, 2
    %v1526 = vperm.slane %v1522, 2
    %v1527 = vmul.f32 %v770, %v1525
    %v1528 = vmul.f32 %v828, %v1526
    %v1529 = vmul.f32 %v772, %v1525
    %v1530 = vmul.f32 %v830, %v1526
    %v1531 = vmul.f32 %v775, %v1525
    %v1532 = vmul.f32 %v833, %v1526
    %v1533 = vmul.f32 %v777, %v1525
    %v1534 = vmul.f32 %v835, %v1526
    %v1535 = vmul.f32 %v780, %v1525
    %v1536 = vmul.f32 %v838, %v1526
    %v1537 = vmul.f32 %v782, %v1525
    %v1538 = vmul.f32 %v840, %v1526
    %v1539 = vmul.f32 %v785, %v1525
    %v1540 = vmul.f32 %v843, %v1526
    %v1541 = vmul.f32 %v787, %v1525
    %v1542 = vmul.f32 %v845, %v1526
    %v1543 = vadd.f32 %v1505, %v1527
    %v1544 = vadd.f32 %v1506, %v1528
    %v1545 = vadd.f32 %v1507, %v1529
    %v1546 = vadd.f32 %v1508, %v1530
    %v1547 = vadd.f32 %v1509, %v1531
    %v1548 = vadd.f32 %v1510, %v1532
    %v1549 = vadd.f32 %v1511, %v1533
    %v1550 = vadd.f32 %v1512, %v1534
    %v1551 = vadd.f32 %v1513, %v1535
    %v1552 = vadd.f32 %v1514, %v1536
    %v1553 = vadd.f32 %v1515, %v1537
    %v1554 = vadd.f32 %v1516, %v1538
    %v1555 = vadd.f32 %v1517, %v1539
    %v1556 = vadd.f32 %v1518, %v1540
    %v1557 = vadd.f32 %v1519, %v1541
    %v1558 = vadd.f32 %v1520, %v1542
    %v1559 = vpack.c.bf16 %v1545, %v1543
    %v1560 = vpack.c.bf16 %v1546, %v1544
    %v1561 = vpack.c.bf16 %v1549, %v1547
    %v1562 = vpack.c.bf16 %v1550, %v1548
    %v1563 = vpack.c.bf16 %v1553, %v1551
    %v1564 = vpack.c.bf16 %v1554, %v1552
    %v1565 = vpack.c.bf16 %v1557, %v1555
    %v1566 = vpack.c.bf16 %v1558, %v1556
    %v1567 = vld [vmem:[#allocation10] sm:$0xff]
    %v1568 = vld [vmem:[#allocation10 + $0x8] sm:$0xff]
    %v1569 = vld [vmem:[#allocation10 + $0x10] sm:$0xff]
    %v1570 = vld [vmem:[#allocation10 + $0x18] sm:$0xff]
    %v1571 = vld [vmem:[#allocation10 + $0x20] sm:$0xff]
    %v1572 = vld [vmem:[#allocation10 + $0x28] sm:$0xff]
    %v1573 = vld [vmem:[#allocation10 + $0x30] sm:$0xff]
    %v1574 = vld [vmem:[#allocation10 + $0x38] sm:$0xff]
    %v1575 = vld [vmem:[#allocation10 + $0x40] sm:$0xff]
    %v1576 = vld [vmem:[#allocation10 + $0x48] sm:$0xff]
    %v1577 = vld [vmem:[#allocation10 + $0x50] sm:$0xff]
    %v1578 = vld [vmem:[#allocation10 + $0x58] sm:$0xff]
    %v1579 = vld [vmem:[#allocation10 + $0x60] sm:$0xff]
    %v1580 = vld [vmem:[#allocation10 + $0x68] sm:$0xff]
    %v1581 = vld [vmem:[#allocation10 + $0x70] sm:$0xff]
    %v1582 = vld [vmem:[#allocation10 + $0x78] sm:$0xff]
    %v1583 = vld [vmem:[#allocation10 + $0x80] sm:$0xff]
    %v1584 = vld [vmem:[#allocation10 + $0x88] sm:$0xff]
    %v1585 = vld [vmem:[#allocation10 + $0x90] sm:$0xff]
    %v1586 = vld [vmem:[#allocation10 + $0x98] sm:$0xff]
    %v1587 = vld [vmem:[#allocation10 + $0xa0] sm:$0xff]
    %v1588 = vld [vmem:[#allocation10 + $0xa8] sm:$0xff]
    %v1589 = vld [vmem:[#allocation10 + $0xb0] sm:$0xff]
    %v1590 = vld [vmem:[#allocation10 + $0xb8] sm:$0xff]
    %v1591 = vld [vmem:[#allocation10 + $0xc0] sm:$0xff]
    %v1592 = vld [vmem:[#allocation10 + $0xc8] sm:$0xff]
    %v1593 = vld [vmem:[#allocation10 + $0xd0] sm:$0xff]
    %v1594 = vld [vmem:[#allocation10 + $0xd8] sm:$0xff]
    %v1595 = vld [vmem:[#allocation10 + $0xe0] sm:$0xff]
    %v1596 = vld [vmem:[#allocation10 + $0xe8] sm:$0xff]
    %v1597 = vld [vmem:[#allocation10 + $0xf0] sm:$0xff]
    %v1598 = vld [vmem:[#allocation10 + $0xf8] sm:$0xff]
    %v1599 = vperm.slane %v847, 3
    %v1600 = vperm.slane %v847, 7
    %v1603 = vperm.slane %v1599, 3
    %v1604 = vperm.slane %v1600, 3
    %v1637 = vunpack.c.l.b16 %v1567
    %v1638 = vunpack.c.h.b16 %v1567
    %v1639 = vunpack.c.l.b16 %v1568
    %v1640 = vunpack.c.h.b16 %v1568
    %v1641 = vunpack.c.l.b16 %v1569
    %v1642 = vunpack.c.h.b16 %v1569
    %v1643 = vunpack.c.l.b16 %v1570
    %v1644 = vunpack.c.h.b16 %v1570
    %v1645 = vunpack.c.l.b16 %v1571
    %v1646 = vunpack.c.h.b16 %v1571
    %v1647 = vunpack.c.l.b16 %v1572
    %v1648 = vunpack.c.h.b16 %v1572
    %v1649 = vunpack.c.l.b16 %v1573
    %v1650 = vunpack.c.h.b16 %v1573
    %v1651 = vunpack.c.l.b16 %v1574
    %v1652 = vunpack.c.h.b16 %v1574
    %v1653 = vunpack.c.l.b16 %v1575
    %v1654 = vunpack.c.h.b16 %v1575
    %v1655 = vunpack.c.l.b16 %v1576
    %v1656 = vunpack.c.h.b16 %v1576
    %v1657 = vunpack.c.l.b16 %v1577
    %v1658 = vunpack.c.h.b16 %v1577
    %v1659 = vunpack.c.l.b16 %v1578
    %v1660 = vunpack.c.h.b16 %v1578
    %v1661 = vunpack.c.l.b16 %v1579
    %v1662 = vunpack.c.h.b16 %v1579
    %v1663 = vunpack.c.l.b16 %v1580
    %v1664 = vunpack.c.h.b16 %v1580
    %v1665 = vunpack.c.l.b16 %v1581
    %v1666 = vunpack.c.h.b16 %v1581
    %v1667 = vunpack.c.l.b16 %v1582
    %v1668 = vunpack.c.h.b16 %v1582
    %v1669 = vunpack.c.l.b16 %v1583
    %v1670 = vunpack.c.h.b16 %v1583
    %v1671 = vunpack.c.l.b16 %v1584
    %v1672 = vunpack.c.h.b16 %v1584
    %v1673 = vunpack.c.l.b16 %v1585
    %v1674 = vunpack.c.h.b16 %v1585
    %v1675 = vunpack.c.l.b16 %v1586
    %v1676 = vunpack.c.h.b16 %v1586
    %v1677 = vunpack.c.l.b16 %v1587
    %v1678 = vunpack.c.h.b16 %v1587
    %v1679 = vunpack.c.l.b16 %v1588
    %v1680 = vunpack.c.h.b16 %v1588
    %v1681 = vunpack.c.l.b16 %v1589
    %v1682 = vunpack.c.h.b16 %v1589
    %v1683 = vunpack.c.l.b16 %v1590
    %v1684 = vunpack.c.h.b16 %v1590
    %v1685 = vunpack.c.l.b16 %v1591
    %v1686 = vunpack.c.h.b16 %v1591
    %v1687 = vunpack.c.l.b16 %v1592
    %v1688 = vunpack.c.h.b16 %v1592
    %v1689 = vunpack.c.l.b16 %v1593
    %v1690 = vunpack.c.h.b16 %v1593
    %v1691 = vunpack.c.l.b16 %v1594
    %v1692 = vunpack.c.h.b16 %v1594
    %v1693 = vunpack.c.l.b16 %v1595
    %v1694 = vunpack.c.h.b16 %v1595
    %v1695 = vunpack.c.l.b16 %v1596
    %v1696 = vunpack.c.h.b16 %v1596
    %v1697 = vunpack.c.l.b16 %v1597
    %v1698 = vunpack.c.h.b16 %v1597
    %v1699 = vunpack.c.l.b16 %v1598
    %v1700 = vunpack.c.h.b16 %v1598
    %v1701 = vpack.c.b16 %v1639, %v1637
    %v1702 = vpack.c.b16 %v1640, %v1638
    %v1703 = vpack.c.b16 %v1643, %v1641
    %v1704 = vpack.c.b16 %v1644, %v1642
    %v1705 = vpack.c.b16 %v1647, %v1645
    %v1706 = vpack.c.b16 %v1648, %v1646
    %v1707 = vpack.c.b16 %v1651, %v1649
    %v1708 = vpack.c.b16 %v1652, %v1650
    %v1709 = vpack.c.b16 %v1655, %v1653
    %v1710 = vpack.c.b16 %v1656, %v1654
    %v1711 = vpack.c.b16 %v1659, %v1657
    %v1712 = vpack.c.b16 %v1660, %v1658
    %v1713 = vpack.c.b16 %v1663, %v1661
    %v1714 = vpack.c.b16 %v1664, %v1662
    %v1715 = vpack.c.b16 %v1667, %v1665
    %v1716 = vpack.c.b16 %v1668, %v1666
    %v1717 = vpack.c.b16 %v1671, %v1669
    %v1718 = vpack.c.b16 %v1672, %v1670
    %v1719 = vpack.c.b16 %v1675, %v1673
    %v1720 = vpack.c.b16 %v1676, %v1674
    %v1721 = vpack.c.b16 %v1679, %v1677
    %v1722 = vpack.c.b16 %v1680, %v1678
    %v1723 = vpack.c.b16 %v1683, %v1681
    %v1724 = vpack.c.b16 %v1684, %v1682
    %v1725 = vpack.c.b16 %v1687, %v1685
    %v1726 = vpack.c.b16 %v1688, %v1686
    %v1727 = vpack.c.b16 %v1691, %v1689
    %v1728 = vpack.c.b16 %v1692, %v1690
    %v1729 = vpack.c.b16 %v1695, %v1693
    %v1730 = vpack.c.b16 %v1696, %v1694
    %v1731 = vpack.c.b16 %v1699, %v1697
    %v1732 = vpack.c.b16 %v1700, %v1698
    %1765 = vmatpush.bf16.msra.mxu0 %v1715
    %1766 = vmatpush.bf16.msra.mxu0 %v1713
    %1767 = vmatpush.bf16.msra.mxu0 %v1711
    %1768 = vmatpush.bf16.msra.mxu0 %v1709
    %1769 = vmatpush.bf16.msra.mxu0 %v1707
    %1770 = vmatpush.bf16.msra.mxu0 %v1705
    %1771 = vmatpush.bf16.msra.mxu0 %v1703
    %1772 = vmatpush.bf16.msra.mxu0 %v1701
    %1773 = vmatmul.bf16.gmra.mxu0 %v1559
    %v1774 = vpop.f32.mrf.mxu0
    %v1775 = vadd.f32 %v1603, %v1774
    %v1776 = vpop.f32.mrf.mxu0
    %v1777 = vadd.f32 %v1603, %v1776
    %1778 = vmatmul.bf16.gmra.mxu0 %v1561
    %v1779 = vpop.f32.mrf.mxu0
    %v1780 = vadd.f32 %v1603, %v1779
    %v1781 = vpop.f32.mrf.mxu0
    %v1782 = vadd.f32 %v1603, %v1781
    %1783 = vmatmul.bf16.gmra.mxu0 %v1563
    %v1784 = vpop.f32.mrf.mxu0
    %v1785 = vadd.f32 %v1603, %v1784
    %v1786 = vpop.f32.mrf.mxu0
    %v1787 = vadd.f32 %v1603, %v1786
    %1788 = vmatmul.bf16.gmra.mxu0 %v1565
    %v1789 = vpop.f32.mrf.mxu0
    %v1790 = vadd.f32 %v1603, %v1789
    %v1791 = vpop.f32.mrf.mxu0
    %v1792 = vadd.f32 %v1603, %v1791
    %1793 = vdwg.mxu0
    %1794 = vmatpush.bf16.msra.mxu0 %v1731
    %1795 = vmatpush.bf16.msra.mxu0 %v1729
    %1796 = vmatpush.bf16.msra.mxu0 %v1727
    %1797 = vmatpush.bf16.msra.mxu0 %v1725
    %1798 = vmatpush.bf16.msra.mxu0 %v1723
    %1799 = vmatpush.bf16.msra.mxu0 %v1721
    %1800 = vmatpush.bf16.msra.mxu0 %v1719
    %1801 = vmatpush.bf16.msra.mxu0 %v1717
    %1802 = vmatmul.bf16.gmra.mxu0 %v1560
    %v1803 = vpop.f32.mrf.mxu0
    %v1804 = vadd.f32 %v1775, %v1803
    %v1805 = vpop.f32.mrf.mxu0
    %v1806 = vadd.f32 %v1777, %v1805
    %1807 = vmatmul.bf16.gmra.mxu0 %v1562
    %v1808 = vpop.f32.mrf.mxu0
    %v1809 = vadd.f32 %v1780, %v1808
    %v1810 = vpop.f32.mrf.mxu0
    %v1811 = vadd.f32 %v1782, %v1810
    %1812 = vmatmul.bf16.gmra.mxu0 %v1564
    %v1813 = vpop.f32.mrf.mxu0
    %v1814 = vadd.f32 %v1785, %v1813
    %v1815 = vpop.f32.mrf.mxu0
    %v1816 = vadd.f32 %v1787, %v1815
    %1817 = vmatmul.bf16.gmra.mxu0 %v1566
    %v1818 = vpop.f32.mrf.mxu0
    %v1819 = vadd.f32 %v1790, %v1818
    %v1820 = vpop.f32.mrf.mxu0
    %v1821 = vadd.f32 %v1792, %v1820
    %1822 = vdwg.mxu0
    %1823 = vmatpush.bf16.msra.mxu0 %v1716
    %1824 = vmatpush.bf16.msra.mxu0 %v1714
    %1825 = vmatpush.bf16.msra.mxu0 %v1712
    %1826 = vmatpush.bf16.msra.mxu0 %v1710
    %1827 = vmatpush.bf16.msra.mxu0 %v1708
    %1828 = vmatpush.bf16.msra.mxu0 %v1706
    %1829 = vmatpush.bf16.msra.mxu0 %v1704
    %1830 = vmatpush.bf16.msra.mxu0 %v1702
    %1831 = vmatmul.bf16.gmra.mxu0 %v1559
    %v1832 = vpop.f32.mrf.mxu0
    %v1833 = vadd.f32 %v1604, %v1832
    %v1834 = vpop.f32.mrf.mxu0
    %v1835 = vadd.f32 %v1604, %v1834
    %1836 = vmatmul.bf16.gmra.mxu0 %v1561
    %v1837 = vpop.f32.mrf.mxu0
    %v1838 = vadd.f32 %v1604, %v1837
    %v1839 = vpop.f32.mrf.mxu0
    %v1840 = vadd.f32 %v1604, %v1839
    %1841 = vmatmul.bf16.gmra.mxu0 %v1563
    %v1842 = vpop.f32.mrf.mxu0
    %v1843 = vadd.f32 %v1604, %v1842
    %v1844 = vpop.f32.mrf.mxu0
    %v1845 = vadd.f32 %v1604, %v1844
    %1846 = vmatmul.bf16.gmra.mxu0 %v1565
    %v1847 = vpop.f32.mrf.mxu0
    %v1848 = vadd.f32 %v1604, %v1847
    %v1849 = vpop.f32.mrf.mxu0
    %v1850 = vadd.f32 %v1604, %v1849
    %1851 = vdwg.mxu0
    %1852 = vmatpush.bf16.msra.mxu0 %v1732
    %1853 = vmatpush.bf16.msra.mxu0 %v1730
    %1854 = vmatpush.bf16.msra.mxu0 %v1728
    %1855 = vmatpush.bf16.msra.mxu0 %v1726
    %1856 = vmatpush.bf16.msra.mxu0 %v1724
    %1857 = vmatpush.bf16.msra.mxu0 %v1722
    %1858 = vmatpush.bf16.msra.mxu0 %v1720
    %1859 = vmatpush.bf16.msra.mxu0 %v1718
    %1860 = vmatmul.bf16.gmra.mxu0 %v1560
    %v1861 = vpop.f32.mrf.mxu0
    %v1862 = vadd.f32 %v1833, %v1861
    %v1863 = vpop.f32.mrf.mxu0
    %v1864 = vadd.f32 %v1835, %v1863
    %1865 = vmatmul.bf16.gmra.mxu0 %v1562
    %v1866 = vpop.f32.mrf.mxu0
    %v1867 = vadd.f32 %v1838, %v1866
    %v1868 = vpop.f32.mrf.mxu0
    %v1869 = vadd.f32 %v1840, %v1868
    %1870 = vmatmul.bf16.gmra.mxu0 %v1564
    %v1871 = vpop.f32.mrf.mxu0
    %v1872 = vadd.f32 %v1843, %v1871
    %v1873 = vpop.f32.mrf.mxu0
    %v1874 = vadd.f32 %v1845, %v1873
    %1875 = vmatmul.bf16.gmra.mxu0 %v1566
    %v1876 = vpop.f32.mrf.mxu0
    %v1877 = vadd.f32 %v1848, %v1876
    %v1878 = vpop.f32.mrf.mxu0
    %v1879 = vadd.f32 %v1850, %v1878
    %1880 = vdwg.mxu0
    %1881 = vst [vmem:[#allocation13] sm:$0xff] %v1804
    %1882 = vst [vmem:[#allocation13 + $0x8] sm:$0xff] %v1862
    %1883 = vst [vmem:[#allocation13 + $0x10] sm:$0xff] %v1806
    %1884 = vst [vmem:[#allocation13 + $0x18] sm:$0xff] %v1864
    %1885 = vst [vmem:[#allocation13 + $0x20] sm:$0xff] %v1809
    %1886 = vst [vmem:[#allocation13 + $0x28] sm:$0xff] %v1867
    %1887 = vst [vmem:[#allocation13 + $0x30] sm:$0xff] %v1811
    %1888 = vst [vmem:[#allocation13 + $0x38] sm:$0xff] %v1869
    %1889 = vst [vmem:[#allocation13 + $0x40] sm:$0xff] %v1814
    %1890 = vst [vmem:[#allocation13 + $0x48] sm:$0xff] %v1872
    %1891 = vst [vmem:[#allocation13 + $0x50] sm:$0xff] %v1816
    %1892 = vst [vmem:[#allocation13 + $0x58] sm:$0xff] %v1874
    %1893 = vst [vmem:[#allocation13 + $0x60] sm:$0xff] %v1819
    %1894 = vst [vmem:[#allocation13 + $0x68] sm:$0xff] %v1877
    %1895 = vst [vmem:[#allocation13 + $0x70] sm:$0xff] %v1821
    %1896 = vst [vmem:[#allocation13 + $0x78] sm:$0xff] %v1879
    %1897 = vst [vmem:[#allocation14] sm:$0xff] %v770
    %1898 = vst [vmem:[#allocation14 + $0x8] sm:$0xff] %v828
    %1899 = vst [vmem:[#allocation14 + $0x10] sm:$0xff] %v772
    %1900 = vst [vmem:[#allocation14 + $0x18] sm:$0xff] %v830
    %1901 = vst [vmem:[#allocation14 + $0x20] sm:$0xff] %v775
    %1902 = vst [vmem:[#allocation14 + $0x28] sm:$0xff] %v833
    %1903 = vst [vmem:[#allocation14 + $0x30] sm:$0xff] %v777
    %1904 = vst [vmem:[#allocation14 + $0x38] sm:$0xff] %v835
    %1905 = vst [vmem:[#allocation14 + $0x40] sm:$0xff] %v780
    %1906 = vst [vmem:[#allocation14 + $0x48] sm:$0xff] %v838
    %1907 = vst [vmem:[#allocation14 + $0x50] sm:$0xff] %v782
    %1908 = vst [vmem:[#allocation14 + $0x58] sm:$0xff] %v840
    %1909 = vst [vmem:[#allocation14 + $0x60] sm:$0xff] %v785
    %1910 = vst [vmem:[#allocation14 + $0x68] sm:$0xff] %v843
    %1911 = vst [vmem:[#allocation14 + $0x70] sm:$0xff] %v787
    %1912 = vst [vmem:[#allocation14 + $0x78] sm:$0xff] %v845
    // Predicated region
    $region50: #{tpu_custom_call.1} parent=1 // pred_check
      _
    $region51: #{tpu_custom_call.1} parent=1 // pred_check_branch
      %1914 = sbr.rel (0) target = $region53
    $region52: #{tpu_custom_call.1} parent=1 // pred_region
      %1916 = vsyncadd [#allocation4], 0
      %s1917 = sshll.u32 [#allocation13], 4
      %s1918 = int_to_ptr.vmem [resolvable:$true] %s1917
      %s1919 = sshll.u32 %s6, 4
      %s1920 = int_to_ptr.hbm [resolvable:$true] %s1919
      %1925 = dma.vmem_to_hbm [thread:$0]  %s1918, 2048, %s1920, [#allocation4], 256, 256, 16
    $region53: #{tpu_custom_call.1} parent=1 // pred_fallthru
      _
    // Predicated region
    $region54: #{tpu_custom_call.1} parent=1 // pred_check
      _
    $region55: #{tpu_custom_call.1} parent=1 // pred_check_branch
      %1927 = sbr.rel (0) target = $region57
    $region56: #{tpu_custom_call.1} parent=1 // pred_region
      %1929 = vsyncadd [#allocation15], 0
      %s1930 = sshll.u32 [#allocation14], 4
      %s1931 = int_to_ptr.vmem [resolvable:$true] %s1930
      %s1932 = sshll.u32 %s7, 4
      %s1933 = int_to_ptr.hbm [resolvable:$true] %s1932
      %1938 = dma.vmem_to_hbm [thread:$0]  %s1931, 2048, %s1933, [#allocation15], 256, 256, 16
    $region57: #{tpu_custom_call.1} parent=1 // pred_fallthru
      _
    // Predicated region
    $region58: #{tpu_custom_call.1} parent=1 // pred_check
      _
    $region59: #{tpu_custom_call.1} parent=1 // pred_check_branch
      %1940 = sbr.rel (0) target = $region61
    $region60: #{tpu_custom_call.1} parent=1 // pred_region
      %1942 = dma.done [#allocation4], 2048
    $region61: #{tpu_custom_call.1} parent=1 // pred_fallthru
      _
    // Predicated region
    $region62: #{tpu_custom_call.1} parent=1 // pred_check
      _
    $region63: #{tpu_custom_call.1} parent=1 // pred_check_branch
      %1944 = sbr.rel (0) target = $region65
    $region64: #{tpu_custom_call.1} parent=1 // pred_region
      %1946 = dma.done [#allocation15], 2048
    $region65: #{tpu_custom_call.1} parent=1 // pred_fallthru
      _
    %1947 = vsyncpa [#allocation3], 1
    %1948 = vsyncpa [#allocation6], 1
    %1949 = vsyncpa [#allocation9], 1
    %1950 = vsyncpa [#allocation12], 1
    %1951 = vsyncpa [#allocation4], 1
    %1952 = vsyncpa [#allocation15], 1

</llo_original>
